<compile_context>
chip_gen: v7x
topology: tpu7x:2x2x1
jax: 0.10.0
libtpu: 0.0.40
codegen_flags: <defaults>
</compile_context>

<pallas_src>
import jax
import jax.numpy as jnp
from jax.experimental import pallas as pl
from jax.experimental.pallas import tpu as pltpu

# ---------------- synthetic config (stands in for bert-base-multilingual-cased) --
VOCAB = 100
TYPE_VOCAB = 2
MAX_POS = 16
BERT_H = 32          # bert.config.hidden_size (768 in the real model)
N_HEADS = 4
HEAD_D = BERT_H // N_HEADS
FFN_I = 64
N_BERT_LAYERS = 2
LSTM_H = 32          # hidden_dim (256 in the real model)
LSTM_LAYERS = 2      # num_layers
GATES = 4 * LSTM_H   # 128 -> gate vector is exactly one lane-dense row
LN_EPS = 1e-12

B, T = 2, 8          # batch, sequence length
R = B * T            # folded row count (time-major: row r = t*B + b)
ATTN_SCALE = 1.0 / (HEAD_D ** 0.5)
NEG_INF = -1e9

# ---------------- slab layout ------------------------------------------------------
W_ROWS = 64          # every MXU weight zero-padded into a (64, 128) bf16 slot
LANES = 128

NW_PER_LAYER = 4                                   # wqkv | wo | w1 | w2
W_BERT0 = 0
W_LSTM0 = W_BERT0 + N_BERT_LAYERS * NW_PER_LAYER   # + 2*l : wih, whh
W_WC = W_LSTM0 + 2 * LSTM_LAYERS                   # classifier weight
NW = W_WC + 1

NV_PER_LAYER = 8                                   # bqkv|bo|ln1g|ln1b|b1|b2|ln2g|ln2b
V_EMB_G, V_EMB_B = 0, 1
V_BERT0 = 2
V_LSTM0 = V_BERT0 + N_BERT_LAYERS * NV_PER_LAYER   # + l : combined LSTM bias
V_BC = V_LSTM0 + LSTM_LAYERS                       # classifier bias
NV = V_BC + 1


def _bf16(x):
    return x.astype(jnp.bfloat16)


# ---------------- the fused kernel -------------------------------------------------
def fused_forward_kernel(x_ref, bias_ref, w_ref, v_ref, out_ref, seq_a, seq_b):
    # Everything below stays in VMEM/vregs; a single invocation does the whole
    # batch (rows are time-major folded batch*time).

    def layernorm(x, g_idx, b_idx):
        g = v_ref[g_idx, :, 0:BERT_H]                                  # (1, 32)
        b = v_ref[b_idx, :, 0:BERT_H]
        mu = jnp.mean(x, axis=-1, keepdims=True)
        d = x - mu
        var = jnp.mean(d * d, axis=-1, keepdims=True)
        return d * jax.lax.rsqrt(var + LN_EPS) * g + b

    x = layernorm(x_ref[...], V_EMB_G, V_EMB_B)                        # (R, 32) f32

    # block-diagonal (same batch) + padding-mask additive bias, shared by all
    # layers and heads; loaded once.
    attn_bias = bias_ref[...]                                          # (R, R) f32

    # ---------------- BERT encoder (statically unrolled layers) ----------------
    for l in range(N_BERT_LAYERS):
        wb = W_BERT0 + l * NW_PER_LAYER
        vb = V_BERT0 + l * NV_PER_LAYER

        # fused, lane-dense QKV projection: one (R,32)@(32,128) bf16 MXU pass
        wqkv = w_ref[wb + 0, 0:BERT_H, :]                              # (32, 128)
        qkv = (jnp.dot(_bf16(x), wqkv, preferred_element_type=jnp.float32)
               + v_ref[vb + 0, :, :])                                  # (R, 128)

        # per-head attention; the head concat is absorbed into the output
        # projection by accumulating ctx_h @ wo[h*D:(h+1)*D, :] per head.
        attn = jnp.zeros((R, BERT_H), jnp.float32)
        for h in range(N_HEADS):
            q_h = qkv[:, h * HEAD_D:(h + 1) * HEAD_D]
            k_h = qkv[:, BERT_H + h * HEAD_D: BERT_H + (h + 1) * HEAD_D]
            v_h = qkv[:, 2 * BERT_H + h * HEAD_D: 2 * BERT_H + (h + 1) * HEAD_D]
            s = jnp.einsum("qd,kd->qk", _bf16(q_h), _bf16(k_h),
                           preferred_element_type=jnp.float32) * ATTN_SCALE
            s = s + attn_bias                                          # (R, R)
            s = s - jnp.max(s, axis=-1, keepdims=True)
            p = jnp.exp(s)
            # approx reciprocal (EUP slot) + bf16 probs: small, documented
            # deviation from the f32 PyTorch reference (inference tolerance).
            p = p * pl.reciprocal(jnp.sum(p, axis=-1, keepdims=True), approx=True)
            ctx_h = jnp.dot(_bf16(p), _bf16(v_h),
                            preferred_element_type=jnp.float32)        # (R, 8)
            wo_h = w_ref[wb + 1, h * HEAD_D:(h + 1) * HEAD_D, 0:BERT_H]  # (8, 32)
            attn = attn + jnp.dot(_bf16(ctx_h), wo_h,
                                  preferred_element_type=jnp.float32)
        attn = attn + v_ref[vb + 1, :, 0:BERT_H]                       # + b_o
        x = layernorm(attn + x, vb + 2, vb + 3)

        # FFN + residual + LayerNorm (fused)
        w1 = w_ref[wb + 2, 0:BERT_H, 0:FFN_I]                          # (32, 64)
        h1 = (jnp.dot(_bf16(x), w1, preferred_element_type=jnp.float32)
              + v_ref[vb + 4, :, 0:FFN_I])
        # TODO(synk): HF BERT uses exact erf-GELU; tanh-approx GELU used here.
        h1 = jax.nn.gelu(h1)
        w2 = w_ref[wb + 3, 0:FFN_I, 0:BERT_H]                          # (64, 32)
        ffn = (jnp.dot(_bf16(h1), w2, preferred_element_type=jnp.float32)
               + v_ref[vb + 5, :, 0:BERT_H])
        x = layernorm(ffn + x, vb + 6, vb + 7)

    # ---------------- 2-layer LSTM (h/c batched over B; rows are time-major) ----
    seq = x                                                            # (R, 32)
    seq_refs = (seq_a, seq_b)
    for l in range(LSTM_LAYERS):
        din = BERT_H if l == 0 else LSTM_H
        wih = w_ref[W_LSTM0 + 2 * l + 0, 0:din, :]                     # (32, 128)
        whh = w_ref[W_LSTM0 + 2 * l + 1, 0:LSTM_H, :]                  # held in vregs
        # input projection hoisted off the serial critical path: all T steps at once
        xp = (jnp.dot(_bf16(seq), wih, preferred_element_type=jnp.float32)
              + v_ref[V_LSTM0 + l, :, :])                              # (R, 128)

        h = jnp.zeros((B, LSTM_H), jnp.float32)
        c = jnp.zeros((B, LSTM_H), jnp.float32)
        out_scr = seq_refs[l]
        for t in range(T):                                             # unrolled
            # TODO(synk): W_hh could be held in MXU weight regs via
            # pltpu.matmul_push_rhs across the 8 steps; kept as jnp.dot for
            # portability/robustness.
            gates = xp[t * B:(t + 1) * B, :] + jnp.dot(
                _bf16(h), whh, preferred_element_type=jnp.float32)     # (B, 128)
            sig = jax.nn.sigmoid(gates)        # one pass over the full 128 lanes
            i_g = sig[:, 0:LSTM_H]
            f_g = sig[:, LSTM_H:2 * LSTM_H]
            o_g = sig[:, 3 * LSTM_H:4 * LSTM_H]
            g_g = jnp.tanh(gates[:, 2 * LSTM_H:3 * LSTM_H])
            c = f_g * c + i_g * g_g
            h = o_g * jnp.tanh(c)
            out_scr[t * B:(t + 1) * B, :] = h      # scratch row store, no concat
        seq = out_scr[...]                                             # (R, 32)
        # inter-layer dropout(p=0.3) is identity at inference

    # ---------------- classifier (bf16 MXU, lane-dense 128-wide output) ---------
    wc = w_ref[W_WC, 0:LSTM_H, :]                                      # (32, 128)
    logits = (jnp.dot(_bf16(seq), wc, preferred_element_type=jnp.float32)
              + v_ref[V_BC, :, :])                                     # (R, 128)
    out_ref[...] = logits                      # column 0 holds the real logits


# ---------------- parameters (deterministic, synthetic) ----------------------------
def init_params(key):
    keys = iter(jax.random.split(key, 64))

    def nrm(shape, std=0.02):
        return jax.random.normal(next(keys), shape, jnp.float32) * std

    def pad_w(w):                     # (r, c) -> (W_ROWS, 128), zero padded
        r, c = w.shape
        return jnp.pad(w, ((0, W_ROWS - r), (0, LANES - c)))

    def pad_v(v):                     # (c,) -> (128,), zero padded
        return jnp.pad(v, (0, LANES - v.shape[0]))

    p = {
        "word_emb": nrm((VOCAB, BERT_H)),
        "pos_emb": nrm((MAX_POS, BERT_H)),
        "type_emb": nrm((TYPE_VOCAB, BERT_H)),
    }

    w_list = [None] * NW
    v_list = [None] * NV

    v_list[V_EMB_G] = pad_v(jnp.ones((BERT_H,), jnp.float32))
    v_list[V_EMB_B] = pad_v(jnp.zeros((BERT_H,), jnp.float32))

    for l in range(N_BERT_LAYERS):
        wb = W_BERT0 + l * NW_PER_LAYER
        vb = V_BERT0 + l * NV_PER_LAYER
        wq, wk, wv = (nrm((BERT_H, BERT_H)), nrm((BERT_H, BERT_H)),
                      nrm((BERT_H, BERT_H)))
        w_list[wb + 0] = pad_w(jnp.concatenate([wq, wk, wv], axis=1))   # (32, 96)
        w_list[wb + 1] = pad_w(nrm((BERT_H, BERT_H)))                   # wo
        w_list[wb + 2] = pad_w(nrm((BERT_H, FFN_I)))                    # w1
        w_list[wb + 3] = pad_w(nrm((FFN_I, BERT_H)))                    # w2
        v_list[vb + 0] = pad_v(jnp.zeros((3 * BERT_H,), jnp.float32))   # b_q|k|v
        v_list[vb + 1] = pad_v(jnp.zeros((BERT_H,), jnp.float32))       # b_o
        v_list[vb + 2] = pad_v(jnp.ones((BERT_H,), jnp.float32))        # ln1 gamma
        v_list[vb + 3] = pad_v(jnp.zeros((BERT_H,), jnp.float32))       # ln1 beta
        v_list[vb + 4] = pad_v(jnp.zeros((FFN_I,), jnp.float32))        # b1
        v_list[vb + 5] = pad_v(jnp.zeros((BERT_H,), jnp.float32))       # b2
        v_list[vb + 6] = pad_v(jnp.ones((BERT_H,), jnp.float32))        # ln2 gamma
        v_list[vb + 7] = pad_v(jnp.zeros((BERT_H,), jnp.float32))       # ln2 beta

    # LSTM: PyTorch gate order i,f,g,o; combined b_ih + b_hh bias.
    std = 1.0 / (LSTM_H ** 0.5)
    for l in range(LSTM_LAYERS):
        din = BERT_H if l == 0 else LSTM_H
        w_list[W_LSTM0 + 2 * l + 0] = pad_w(nrm((din, GATES), std))     # W_ih^T
        w_list[W_LSTM0 + 2 * l + 1] = pad_w(nrm((LSTM_H, GATES), std))  # W_hh^T
        v_list[V_LSTM0 + l] = pad_v(nrm((GATES,), std))                 # b_ih+b_hh

    w_list[W_WC] = pad_w(nrm((LSTM_H, 1)))                              # classifier
    v_list[V_BC] = pad_v(jnp.zeros((1,), jnp.float32))

    # one bf16 MXU-weight slab + one f32 bias/LN slab -> 2 DMAs total for params
    p["w_slab"] = jnp.stack(w_list, axis=0).astype(jnp.bfloat16)   # (NW, 64, 128)
    p["v_slab"] = jnp.stack(v_list, axis=0).reshape(NV, 1, LANES)  # (NV, 1, 128)
    return p


# ---------------- forward ------------------------------------------------------------
def bert_sum_lstm_forward(params, input_ids, attention_mask):
    Bn, Tn = input_ids.shape
    assert (Bn, Tn) == (B, T), (Bn, Tn)

    # embedding gathers stay in JAX (word + position + token_type=0)
    x_emb = (
        params["word_emb"][input_ids]
        + params["pos_emb"][jnp.arange(Tn)][None, :, :]
        + params["type_emb"][0][None, None, :]
    ).astype(jnp.float32)                                         # (B, T, H)
    # fold batch into rows, time-major: row r = t*B + b
    x_folded = x_emb.transpose(1, 0, 2).reshape(Tn * Bn, BERT_H)  # (R, H)

    # additive attention bias: allowed iff same batch element AND key not padded
    rows = jnp.arange(Tn * Bn)
    rb = rows % Bn
    key_valid = attention_mask.T.reshape(-1) > 0                  # (R,) key validity
    allowed = (rb[:, None] == rb[None, :]) & key_valid[None, :]
    attn_bias = jnp.where(allowed, 0.0, NEG_INF).astype(jnp.float32)   # (R, R)

    out = pl.pallas_call(
        fused_forward_kernel,
        out_shape=jax.ShapeDtypeStruct((R, LANES), jnp.float32),
        grid=(1,),
        in_specs=[
            pl.BlockSpec((R, BERT_H), lambda i: (0, 0)),
            pl.BlockSpec((R, R), lambda i: (0, 0)),
            pl.BlockSpec((NW, W_ROWS, LANES), lambda i: (0, 0, 0)),
            pl.BlockSpec((NV, 1, LANES), lambda i: (0, 0, 0)),
        ],
        out_specs=pl.BlockSpec((R, LANES), lambda i: (0, 0)),
        scratch_shapes=[
            pltpu.VMEM((R, LSTM_H), jnp.float32),   # LSTM layer-0 outputs
            pltpu.VMEM((R, LSTM_H), jnp.float32),   # LSTM layer-1 outputs
        ],
        compiler_params=pltpu.CompilerParams(
            dimension_semantics=("arbitrary",)),
    )(x_folded, attn_bias, params["w_slab"], params["v_slab"])

    # unfold: column 0 of the lane-dense slab, rows are time-major
    logits = out[:, 0].reshape(Tn, Bn).T                          # (B, T)
    return logits                      # matches classifier(...).squeeze(-1)


# ---------------- main ----------------------------------------------------------------
if __name__ == "__main__":
    key = jax.random.PRNGKey(0)
    k_ids, k_params = jax.random.split(key, 2)

    input_ids = jax.random.randint(k_ids, (B, T), 0, VOCAB, dtype=jnp.int32)
    attention_mask = jnp.ones((B, T), jnp.int32).at[1, 6:].set(0)

    params = init_params(k_params)

    fwd = jax.jit(bert_sum_lstm_forward)
    logits = jax.block_until_ready(fwd(params, input_ids, attention_mask))

    assert logits.shape == (B, T), logits.shape
    assert logits.dtype == jnp.float32
    assert bool(jnp.all(jnp.isfinite(logits)))
    print("KERNEL_OK")
</pallas_src>

<mosaic_0001>
module attributes {stable_mosaic.version = 11 : i64} {
  func.func @fused_forward_kernel(%arg0: i32, %arg1: memref<16x32xf32, #tpu.memory_space<vmem>>, %arg2: memref<16x16xf32, #tpu.memory_space<vmem>>, %arg3: memref<13x64x128xbf16, #tpu.memory_space<vmem>>, %arg4: memref<21x1x128xf32, #tpu.memory_space<vmem>>, %arg5: memref<16x128xf32, #tpu.memory_space<vmem>>, %arg6: memref<16x32xf32, #tpu.memory_space<vmem>>, %arg7: memref<16x32xf32, #tpu.memory_space<vmem>>) attributes {dimension_semantics = [#tpu.dimension_semantics<arbitrary>], iteration_bounds = array<i64: 1>, scalar_prefetch = 0 : i64, scratch_operands = 2 : i64, tpu.core_type = #tpu.core_type<tc>, window_params = [{pipeline_mode = #tpu.pipeline_mode<synchronous>, transform_indices = @transform_0, window_bounds = array<i64: 16, 32>}, {pipeline_mode = #tpu.pipeline_mode<synchronous>, transform_indices = @transform_1, window_bounds = array<i64: 16, 16>}, {pipeline_mode = #tpu.pipeline_mode<synchronous>, transform_indices = @transform_2, window_bounds = array<i64: 13, 64, 128>}, {pipeline_mode = #tpu.pipeline_mode<synchronous>, transform_indices = @transform_3, window_bounds = array<i64: 21, 1, 128>}, {pipeline_mode = #tpu.pipeline_mode<synchronous>, transform_indices = @transform_4, window_bounds = array<i64: 16, 128>}]} {
    %c0 = arith.constant 0 : index
    %c0_0 = arith.constant 0 : index
    %0 = vector.load %arg1[%c0, %c0_0] : memref<16x32xf32, #tpu.memory_space<vmem>>, vector<16x32xf32>
    %c0_1 = arith.constant 0 : index
    %c0_2 = arith.constant 0 : index
    %c0_3 = arith.constant 0 : index
    %1 = vector.load %arg4[%c0_1, %c0_2, %c0_3] : memref<21x1x128xf32, #tpu.memory_space<vmem>>, vector<1x1x32xf32>
    %2 = vector.shape_cast %1 : vector<1x1x32xf32> to vector<1x32xf32>
    %c1 = arith.constant 1 : index
    %c0_4 = arith.constant 0 : index
    %c0_5 = arith.constant 0 : index
    %3 = vector.load %arg4[%c1, %c0_4, %c0_5] : memref<21x1x128xf32, #tpu.memory_space<vmem>>, vector<1x1x32xf32>
    %4 = vector.shape_cast %3 : vector<1x1x32xf32> to vector<1x32xf32>
    %cst = arith.constant dense<0.000000e+00> : vector<16xf32>
    %5 = vector.multi_reduction <add>, %0, %cst [1] : vector<16x32xf32> to vector<16xf32>
    %6 = vector.shape_cast %5 : vector<16xf32> to vector<16x1xf32>
    %cst_6 = arith.constant 3.200000e+01 : f32
    %7 = vector.broadcast %cst_6 : f32 to vector<16x1xf32>
    %8 = arith.divf %6, %7 : vector<16x1xf32>
    %9 = vector.broadcast %8 : vector<16x1xf32> to vector<16x32xf32>
    %10 = arith.subf %0, %9 : vector<16x32xf32>
    %11 = arith.mulf %10, %10 : vector<16x32xf32>
    %cst_7 = arith.constant dense<0.000000e+00> : vector<16xf32>
    %12 = vector.multi_reduction <add>, %11, %cst_7 [1] : vector<16x32xf32> to vector<16xf32>
    %13 = vector.shape_cast %12 : vector<16xf32> to vector<16x1xf32>
    %cst_8 = arith.constant 3.200000e+01 : f32
    %14 = vector.broadcast %cst_8 : f32 to vector<16x1xf32>
    %15 = arith.divf %13, %14 : vector<16x1xf32>
    %cst_9 = arith.constant 9.99999996E-13 : f32
    %16 = vector.broadcast %cst_9 : f32 to vector<16x1xf32>
    %17 = arith.addf %15, %16 : vector<16x1xf32>
    %18 = math.rsqrt %17 : vector<16x1xf32>
    %19 = vector.broadcast %18 : vector<16x1xf32> to vector<16x32xf32>
    %20 = arith.mulf %10, %19 : vector<16x32xf32>
    %21 = vector.broadcast %2 : vector<1x32xf32> to vector<16x32xf32>
    %22 = arith.mulf %20, %21 : vector<16x32xf32>
    %23 = vector.broadcast %4 : vector<1x32xf32> to vector<16x32xf32>
    %24 = arith.addf %22, %23 : vector<16x32xf32>
    %c0_10 = arith.constant 0 : index
    %c0_11 = arith.constant 0 : index
    %25 = vector.load %arg2[%c0_10, %c0_11] : memref<16x16xf32, #tpu.memory_space<vmem>>, vector<16x16xf32>
    %c0_12 = arith.constant 0 : index
    %c0_13 = arith.constant 0 : index
    %c0_14 = arith.constant 0 : index
    %26 = vector.load %arg3[%c0_12, %c0_13, %c0_14] : memref<13x64x128xbf16, #tpu.memory_space<vmem>>, vector<1x32x128xbf16>
    %27 = vector.shape_cast %26 : vector<1x32x128xbf16> to vector<32x128xbf16>
    %28 = arith.truncf %24 : vector<16x32xf32> to vector<16x32xbf16>
    %cst_15 = arith.constant dense<0.000000e+00> : vector<16x128xf32>
    %29 = tpu.matmul %28, %27, %cst_15 {dimension_numbers = #tpu.dot_dimension_numbers<[1], [0], [0], [1], [0, 0, 1, 1], [], []>} : vector<16x32xbf16>, vector<32x128xbf16>, vector<16x128xf32> -> vector<16x128xf32>
    %c2 = arith.constant 2 : index
    %c0_16 = arith.constant 0 : index
    %c0_17 = arith.constant 0 : index
    %30 = vector.load %arg4[%c2, %c0_16, %c0_17] : memref<21x1x128xf32, #tpu.memory_space<vmem>>, vector<1x1x128xf32>
    %31 = vector.shape_cast %30 : vector<1x1x128xf32> to vector<1x128xf32>
    %32 = vector.broadcast %31 : vector<1x128xf32> to vector<16x128xf32>
    %33 = arith.addf %29, %32 : vector<16x128xf32>
    %cst_18 = arith.constant 0.000000e+00 : f32
    %34 = vector.broadcast %cst_18 : f32 to vector<16x32xf32>
    %35 = vector.extract_strided_slice %33 {offsets = [0, 0], sizes = [16, 8], strides = [1, 1]} : vector<16x128xf32> to vector<16x8xf32>
    %36 = vector.extract_strided_slice %33 {offsets = [0, 32], sizes = [16, 8], strides = [1, 1]} : vector<16x128xf32> to vector<16x8xf32>
    %37 = vector.extract_strided_slice %33 {offsets = [0, 64], sizes = [16, 8], strides = [1, 1]} : vector<16x128xf32> to vector<16x8xf32>
    %38 = arith.truncf %35 : vector<16x8xf32> to vector<16x8xbf16>
    %39 = arith.truncf %36 : vector<16x8xf32> to vector<16x8xbf16>
    "tpu.trace_start"() <{level = 10 : i32, message = "qd,kd->qk"}> : () -> ()
    %cst_19 = arith.constant dense<0.000000e+00> : vector<16x16xf32>
    %40 = tpu.matmul %38, %39, %cst_19 {dimension_numbers = #tpu.dot_dimension_numbers<[1], [1], [0], [0], [0, 0, 1, 0], [], []>} : vector<16x8xbf16>, vector<16x8xbf16>, vector<16x16xf32> -> vector<16x16xf32>
    "tpu.trace_stop"() : () -> ()
    %cst_20 = arith.constant 0.353553385 : f32
    %41 = vector.broadcast %cst_20 : f32 to vector<16x16xf32>
    %42 = arith.mulf %40, %41 : vector<16x16xf32>
    %43 = arith.addf %42, %25 : vector<16x16xf32>
    %cst_21 = arith.constant dense<0xFF800000> : vector<16xf32>
    %44 = vector.multi_reduction <maximumf>, %43, %cst_21 [1] : vector<16x16xf32> to vector<16xf32>
    %45 = vector.shape_cast %44 : vector<16xf32> to vector<16x1xf32>
    %46 = vector.broadcast %45 : vector<16x1xf32> to vector<16x16xf32>
    %47 = arith.subf %43, %46 : vector<16x16xf32>
    %48 = math.exp %47 : vector<16x16xf32>
    %cst_22 = arith.constant dense<0.000000e+00> : vector<16xf32>
    %49 = vector.multi_reduction <add>, %48, %cst_22 [1] : vector<16x16xf32> to vector<16xf32>
    %50 = vector.shape_cast %49 : vector<16xf32> to vector<16x1xf32>
    %51 = tpu.reciprocal %50 {approx = true} : vector<16x1xf32> -> vector<16x1xf32>
    %52 = vector.broadcast %51 : vector<16x1xf32> to vector<16x16xf32>
    %53 = arith.mulf %48, %52 : vector<16x16xf32>
    %54 = arith.truncf %53 : vector<16x16xf32> to vector<16x16xbf16>
    %55 = arith.truncf %37 : vector<16x8xf32> to vector<16x8xbf16>
    %cst_23 = arith.constant dense<0.000000e+00> : vector<16x8xf32>
    %56 = tpu.matmul %54, %55, %cst_23 {dimension_numbers = #tpu.dot_dimension_numbers<[1], [0], [0], [1], [0, 0, 1, 1], [], []>} : vector<16x16xbf16>, vector<16x8xbf16>, vector<16x8xf32> -> vector<16x8xf32>
    %c1_24 = arith.constant 1 : index
    %c0_25 = arith.constant 0 : index
    %c0_26 = arith.constant 0 : index
    %57 = vector.load %arg3[%c1_24, %c0_25, %c0_26] : memref<13x64x128xbf16, #tpu.memory_space<vmem>>, vector<1x8x32xbf16>
    %58 = vector.shape_cast %57 : vector<1x8x32xbf16> to vector<8x32xbf16>
    %59 = arith.truncf %56 : vector<16x8xf32> to vector<16x8xbf16>
    %cst_27 = arith.constant dense<0.000000e+00> : vector<16x32xf32>
    %60 = tpu.matmul %59, %58, %cst_27 {dimension_numbers = #tpu.dot_dimension_numbers<[1], [0], [0], [1], [0, 0, 1, 1], [], []>} : vector<16x8xbf16>, vector<8x32xbf16>, vector<16x32xf32> -> vector<16x32xf32>
    %61 = arith.addf %34, %60 : vector<16x32xf32>
    %62 = vector.extract_strided_slice %33 {offsets = [0, 8], sizes = [16, 8], strides = [1, 1]} : vector<16x128xf32> to vector<16x8xf32>
    %63 = vector.extract_strided_slice %33 {offsets = [0, 40], sizes = [16, 8], strides = [1, 1]} : vector<16x128xf32> to vector<16x8xf32>
    %64 = vector.extract_strided_slice %33 {offsets = [0, 72], sizes = [16, 8], strides = [1, 1]} : vector<16x128xf32> to vector<16x8xf32>
    %65 = arith.truncf %62 : vector<16x8xf32> to vector<16x8xbf16>
    %66 = arith.truncf %63 : vector<16x8xf32> to vector<16x8xbf16>
    "tpu.trace_start"() <{level = 10 : i32, message = "qd,kd->qk"}> : () -> ()
    %cst_28 = arith.constant dense<0.000000e+00> : vector<16x16xf32>
    %67 = tpu.matmul %65, %66, %cst_28 {dimension_numbers = #tpu.dot_dimension_numbers<[1], [1], [0], [0], [0, 0, 1, 0], [], []>} : vector<16x8xbf16>, vector<16x8xbf16>, vector<16x16xf32> -> vector<16x16xf32>
    "tpu.trace_stop"() : () -> ()
    %cst_29 = arith.constant 0.353553385 : f32
    %68 = vector.broadcast %cst_29 : f32 to vector<16x16xf32>
    %69 = arith.mulf %67, %68 : vector<16x16xf32>
    %70 = arith.addf %69, %25 : vector<16x16xf32>
    %cst_30 = arith.constant dense<0xFF800000> : vector<16xf32>
    %71 = vector.multi_reduction <maximumf>, %70, %cst_30 [1] : vector<16x16xf32> to vector<16xf32>
    %72 = vector.shape_cast %71 : vector<16xf32> to vector<16x1xf32>
    %73 = vector.broadcast %72 : vector<16x1xf32> to vector<16x16xf32>
    %74 = arith.subf %70, %73 : vector<16x16xf32>
    %75 = math.exp %74 : vector<16x16xf32>
    %cst_31 = arith.constant dense<0.000000e+00> : vector<16xf32>
    %76 = vector.multi_reduction <add>, %75, %cst_31 [1] : vector<16x16xf32> to vector<16xf32>
    %77 = vector.shape_cast %76 : vector<16xf32> to vector<16x1xf32>
    %78 = tpu.reciprocal %77 {approx = true} : vector<16x1xf32> -> vector<16x1xf32>
    %79 = vector.broadcast %78 : vector<16x1xf32> to vector<16x16xf32>
    %80 = arith.mulf %75, %79 : vector<16x16xf32>
    %81 = arith.truncf %80 : vector<16x16xf32> to vector<16x16xbf16>
    %82 = arith.truncf %64 : vector<16x8xf32> to vector<16x8xbf16>
    %cst_32 = arith.constant dense<0.000000e+00> : vector<16x8xf32>
    %83 = tpu.matmul %81, %82, %cst_32 {dimension_numbers = #tpu.dot_dimension_numbers<[1], [0], [0], [1], [0, 0, 1, 1], [], []>} : vector<16x16xbf16>, vector<16x8xbf16>, vector<16x8xf32> -> vector<16x8xf32>
    %c1_33 = arith.constant 1 : index
    %c8 = arith.constant 8 : index
    %c0_34 = arith.constant 0 : index
    %84 = vector.load %arg3[%c1_33, %c8, %c0_34] : memref<13x64x128xbf16, #tpu.memory_space<vmem>>, vector<1x8x32xbf16>
    %85 = vector.shape_cast %84 : vector<1x8x32xbf16> to vector<8x32xbf16>
    %86 = arith.truncf %83 : vector<16x8xf32> to vector<16x8xbf16>
    %cst_35 = arith.constant dense<0.000000e+00> : vector<16x32xf32>
    %87 = tpu.matmul %86, %85, %cst_35 {dimension_numbers = #tpu.dot_dimension_numbers<[1], [0], [0], [1], [0, 0, 1, 1], [], []>} : vector<16x8xbf16>, vector<8x32xbf16>, vector<16x32xf32> -> vector<16x32xf32>
    %88 = arith.addf %61, %87 : vector<16x32xf32>
    %89 = vector.extract_strided_slice %33 {offsets = [0, 16], sizes = [16, 8], strides = [1, 1]} : vector<16x128xf32> to vector<16x8xf32>
    %90 = vector.extract_strided_slice %33 {offsets = [0, 48], sizes = [16, 8], strides = [1, 1]} : vector<16x128xf32> to vector<16x8xf32>
    %91 = vector.extract_strided_slice %33 {offsets = [0, 80], sizes = [16, 8], strides = [1, 1]} : vector<16x128xf32> to vector<16x8xf32>
    %92 = arith.truncf %89 : vector<16x8xf32> to vector<16x8xbf16>
    %93 = arith.truncf %90 : vector<16x8xf32> to vector<16x8xbf16>
    "tpu.trace_start"() <{level = 10 : i32, message = "qd,kd->qk"}> : () -> ()
    %cst_36 = arith.constant dense<0.000000e+00> : vector<16x16xf32>
    %94 = tpu.matmul %92, %93, %cst_36 {dimension_numbers = #tpu.dot_dimension_numbers<[1], [1], [0], [0], [0, 0, 1, 0], [], []>} : vector<16x8xbf16>, vector<16x8xbf16>, vector<16x16xf32> -> vector<16x16xf32>
    "tpu.trace_stop"() : () -> ()
    %cst_37 = arith.constant 0.353553385 : f32
    %95 = vector.broadcast %cst_37 : f32 to vector<16x16xf32>
    %96 = arith.mulf %94, %95 : vector<16x16xf32>
    %97 = arith.addf %96, %25 : vector<16x16xf32>
    %cst_38 = arith.constant dense<0xFF800000> : vector<16xf32>
    %98 = vector.multi_reduction <maximumf>, %97, %cst_38 [1] : vector<16x16xf32> to vector<16xf32>
    %99 = vector.shape_cast %98 : vector<16xf32> to vector<16x1xf32>
    %100 = vector.broadcast %99 : vector<16x1xf32> to vector<16x16xf32>
    %101 = arith.subf %97, %100 : vector<16x16xf32>
    %102 = math.exp %101 : vector<16x16xf32>
    %cst_39 = arith.constant dense<0.000000e+00> : vector<16xf32>
    %103 = vector.multi_reduction <add>, %102, %cst_39 [1] : vector<16x16xf32> to vector<16xf32>
    %104 = vector.shape_cast %103 : vector<16xf32> to vector<16x1xf32>
    %105 = tpu.reciprocal %104 {approx = true} : vector<16x1xf32> -> vector<16x1xf32>
    %106 = vector.broadcast %105 : vector<16x1xf32> to vector<16x16xf32>
    %107 = arith.mulf %102, %106 : vector<16x16xf32>
    %108 = arith.truncf %107 : vector<16x16xf32> to vector<16x16xbf16>
    %109 = arith.truncf %91 : vector<16x8xf32> to vector<16x8xbf16>
    %cst_40 = arith.constant dense<0.000000e+00> : vector<16x8xf32>
    %110 = tpu.matmul %108, %109, %cst_40 {dimension_numbers = #tpu.dot_dimension_numbers<[1], [0], [0], [1], [0, 0, 1, 1], [], []>} : vector<16x16xbf16>, vector<16x8xbf16>, vector<16x8xf32> -> vector<16x8xf32>
    %c1_41 = arith.constant 1 : index
    %c16 = arith.constant 16 : index
    %c0_42 = arith.constant 0 : index
    %111 = vector.load %arg3[%c1_41, %c16, %c0_42] : memref<13x64x128xbf16, #tpu.memory_space<vmem>>, vector<1x8x32xbf16>
    %112 = vector.shape_cast %111 : vector<1x8x32xbf16> to vector<8x32xbf16>
    %113 = arith.truncf %110 : vector<16x8xf32> to vector<16x8xbf16>
    %cst_43 = arith.constant dense<0.000000e+00> : vector<16x32xf32>
    %114 = tpu.matmul %113, %112, %cst_43 {dimension_numbers = #tpu.dot_dimension_numbers<[1], [0], [0], [1], [0, 0, 1, 1], [], []>} : vector<16x8xbf16>, vector<8x32xbf16>, vector<16x32xf32> -> vector<16x32xf32>
    %115 = arith.addf %88, %114 : vector<16x32xf32>
    %116 = vector.extract_strided_slice %33 {offsets = [0, 24], sizes = [16, 8], strides = [1, 1]} : vector<16x128xf32> to vector<16x8xf32>
    %117 = vector.extract_strided_slice %33 {offsets = [0, 56], sizes = [16, 8], strides = [1, 1]} : vector<16x128xf32> to vector<16x8xf32>
    %118 = vector.extract_strided_slice %33 {offsets = [0, 88], sizes = [16, 8], strides = [1, 1]} : vector<16x128xf32> to vector<16x8xf32>
    %119 = arith.truncf %116 : vector<16x8xf32> to vector<16x8xbf16>
    %120 = arith.truncf %117 : vector<16x8xf32> to vector<16x8xbf16>
    "tpu.trace_start"() <{level = 10 : i32, message = "qd,kd->qk"}> : () -> ()
    %cst_44 = arith.constant dense<0.000000e+00> : vector<16x16xf32>
    %121 = tpu.matmul %119, %120, %cst_44 {dimension_numbers = #tpu.dot_dimension_numbers<[1], [1], [0], [0], [0, 0, 1, 0], [], []>} : vector<16x8xbf16>, vector<16x8xbf16>, vector<16x16xf32> -> vector<16x16xf32>
    "tpu.trace_stop"() : () -> ()
    %cst_45 = arith.constant 0.353553385 : f32
    %122 = vector.broadcast %cst_45 : f32 to vector<16x16xf32>
    %123 = arith.mulf %121, %122 : vector<16x16xf32>
    %124 = arith.addf %123, %25 : vector<16x16xf32>
    %cst_46 = arith.constant dense<0xFF800000> : vector<16xf32>
    %125 = vector.multi_reduction <maximumf>, %124, %cst_46 [1] : vector<16x16xf32> to vector<16xf32>
    %126 = vector.shape_cast %125 : vector<16xf32> to vector<16x1xf32>
    %127 = vector.broadcast %126 : vector<16x1xf32> to vector<16x16xf32>
    %128 = arith.subf %124, %127 : vector<16x16xf32>
    %129 = math.exp %128 : vector<16x16xf32>
    %cst_47 = arith.constant dense<0.000000e+00> : vector<16xf32>
    %130 = vector.multi_reduction <add>, %129, %cst_47 [1] : vector<16x16xf32> to vector<16xf32>
    %131 = vector.shape_cast %130 : vector<16xf32> to vector<16x1xf32>
    %132 = tpu.reciprocal %131 {approx = true} : vector<16x1xf32> -> vector<16x1xf32>
    %133 = vector.broadcast %132 : vector<16x1xf32> to vector<16x16xf32>
    %134 = arith.mulf %129, %133 : vector<16x16xf32>
    %135 = arith.truncf %134 : vector<16x16xf32> to vector<16x16xbf16>
    %136 = arith.truncf %118 : vector<16x8xf32> to vector<16x8xbf16>
    %cst_48 = arith.constant dense<0.000000e+00> : vector<16x8xf32>
    %137 = tpu.matmul %135, %136, %cst_48 {dimension_numbers = #tpu.dot_dimension_numbers<[1], [0], [0], [1], [0, 0, 1, 1], [], []>} : vector<16x16xbf16>, vector<16x8xbf16>, vector<16x8xf32> -> vector<16x8xf32>
    %c1_49 = arith.constant 1 : index
    %c24 = arith.constant 24 : index
    %c0_50 = arith.constant 0 : index
    %138 = vector.load %arg3[%c1_49, %c24, %c0_50] : memref<13x64x128xbf16, #tpu.memory_space<vmem>>, vector<1x8x32xbf16>
    %139 = vector.shape_cast %138 : vector<1x8x32xbf16> to vector<8x32xbf16>
    %140 = arith.truncf %137 : vector<16x8xf32> to vector<16x8xbf16>
    %cst_51 = arith.constant dense<0.000000e+00> : vector<16x32xf32>
    %141 = tpu.matmul %140, %139, %cst_51 {dimension_numbers = #tpu.dot_dimension_numbers<[1], [0], [0], [1], [0, 0, 1, 1], [], []>} : vector<16x8xbf16>, vector<8x32xbf16>, vector<16x32xf32> -> vector<16x32xf32>
    %142 = arith.addf %115, %141 : vector<16x32xf32>
    %c3 = arith.constant 3 : index
    %c0_52 = arith.constant 0 : index
    %c0_53 = arith.constant 0 : index
    %143 = vector.load %arg4[%c3, %c0_52, %c0_53] : memref<21x1x128xf32, #tpu.memory_space<vmem>>, vector<1x1x32xf32>
    %144 = vector.shape_cast %143 : vector<1x1x32xf32> to vector<1x32xf32>
    %145 = vector.broadcast %144 : vector<1x32xf32> to vector<16x32xf32>
    %146 = arith.addf %142, %145 : vector<16x32xf32>
    %147 = arith.addf %146, %24 : vector<16x32xf32>
    %c4 = arith.constant 4 : index
    %c0_54 = arith.constant 0 : index
    %c0_55 = arith.constant 0 : index
    %148 = vector.load %arg4[%c4, %c0_54, %c0_55] : memref<21x1x128xf32, #tpu.memory_space<vmem>>, vector<1x1x32xf32>
    %149 = vector.shape_cast %148 : vector<1x1x32xf32> to vector<1x32xf32>
    %c5 = arith.constant 5 : index
    %c0_56 = arith.constant 0 : index
    %c0_57 = arith.constant 0 : index
    %150 = vector.load %arg4[%c5, %c0_56, %c0_57] : memref<21x1x128xf32, #tpu.memory_space<vmem>>, vector<1x1x32xf32>
    %151 = vector.shape_cast %150 : vector<1x1x32xf32> to vector<1x32xf32>
    %cst_58 = arith.constant dense<0.000000e+00> : vector<16xf32>
    %152 = vector.multi_reduction <add>, %147, %cst_58 [1] : vector<16x32xf32> to vector<16xf32>
    %153 = vector.shape_cast %152 : vector<16xf32> to vector<16x1xf32>
    %cst_59 = arith.constant 3.200000e+01 : f32
    %154 = vector.broadcast %cst_59 : f32 to vector<16x1xf32>
    %155 = arith.divf %153, %154 : vector<16x1xf32>
    %156 = vector.broadcast %155 : vector<16x1xf32> to vector<16x32xf32>
    %157 = arith.subf %147, %156 : vector<16x32xf32>
    %158 = arith.mulf %157, %157 : vector<16x32xf32>
    %cst_60 = arith.constant dense<0.000000e+00> : vector<16xf32>
    %159 = vector.multi_reduction <add>, %158, %cst_60 [1] : vector<16x32xf32> to vector<16xf32>
    %160 = vector.shape_cast %159 : vector<16xf32> to vector<16x1xf32>
    %cst_61 = arith.constant 3.200000e+01 : f32
    %161 = vector.broadcast %cst_61 : f32 to vector<16x1xf32>
    %162 = arith.divf %160, %161 : vector<16x1xf32>
    %cst_62 = arith.constant 9.99999996E-13 : f32
    %163 = vector.broadcast %cst_62 : f32 to vector<16x1xf32>
    %164 = arith.addf %162, %163 : vector<16x1xf32>
    %165 = math.rsqrt %164 : vector<16x1xf32>
    %166 = vector.broadcast %165 : vector<16x1xf32> to vector<16x32xf32>
    %167 = arith.mulf %157, %166 : vector<16x32xf32>
    %168 = vector.broadcast %149 : vector<1x32xf32> to vector<16x32xf32>
    %169 = arith.mulf %167, %168 : vector<16x32xf32>
    %170 = vector.broadcast %151 : vector<1x32xf32> to vector<16x32xf32>
    %171 = arith.addf %169, %170 : vector<16x32xf32>
    %c2_63 = arith.constant 2 : index
    %c0_64 = arith.constant 0 : index
    %c0_65 = arith.constant 0 : index
    %172 = vector.load %arg3[%c2_63, %c0_64, %c0_65] : memref<13x64x128xbf16, #tpu.memory_space<vmem>>, vector<1x32x64xbf16>
    %173 = vector.shape_cast %172 : vector<1x32x64xbf16> to vector<32x64xbf16>
    %174 = arith.truncf %171 : vector<16x32xf32> to vector<16x32xbf16>
    %cst_66 = arith.constant dense<0.000000e+00> : vector<16x64xf32>
    %175 = tpu.matmul %174, %173, %cst_66 {dimension_numbers = #tpu.dot_dimension_numbers<[1], [0], [0], [1], [0, 0, 1, 1], [], []>} : vector<16x32xbf16>, vector<32x64xbf16>, vector<16x64xf32> -> vector<16x64xf32>
    %c6 = arith.constant 6 : index
    %c0_67 = arith.constant 0 : index
    %c0_68 = arith.constant 0 : index
    %176 = vector.load %arg4[%c6, %c0_67, %c0_68] : memref<21x1x128xf32, #tpu.memory_space<vmem>>, vector<1x1x64xf32>
    %177 = vector.shape_cast %176 : vector<1x1x64xf32> to vector<1x64xf32>
    %178 = vector.broadcast %177 : vector<1x64xf32> to vector<16x64xf32>
    %179 = arith.addf %175, %178 : vector<16x64xf32>
    %180 = arith.mulf %179, %179 : vector<16x64xf32>
    %181 = arith.mulf %179, %180 : vector<16x64xf32>
    %cst_69 = arith.constant 4.471500e-02 : f32
    %182 = vector.broadcast %cst_69 : f32 to vector<16x64xf32>
    %183 = arith.mulf %182, %181 : vector<16x64xf32>
    %184 = arith.addf %179, %183 : vector<16x64xf32>
    %cst_70 = arith.constant 0.797884583 : f32
    %185 = vector.broadcast %cst_70 : f32 to vector<16x64xf32>
    %186 = arith.mulf %185, %184 : vector<16x64xf32>
    %187 = math.tanh %186 : vector<16x64xf32>
    %cst_71 = arith.constant 1.000000e+00 : f32
    %188 = vector.broadcast %cst_71 : f32 to vector<16x64xf32>
    %189 = arith.addf %188, %187 : vector<16x64xf32>
    %cst_72 = arith.constant 5.000000e-01 : f32
    %190 = vector.broadcast %cst_72 : f32 to vector<16x64xf32>
    %191 = arith.mulf %190, %189 : vector<16x64xf32>
    %192 = arith.mulf %179, %191 : vector<16x64xf32>
    %c3_73 = arith.constant 3 : index
    %c0_74 = arith.constant 0 : index
    %c0_75 = arith.constant 0 : index
    %193 = vector.load %arg3[%c3_73, %c0_74, %c0_75] : memref<13x64x128xbf16, #tpu.memory_space<vmem>>, vector<1x64x32xbf16>
    %194 = vector.shape_cast %193 : vector<1x64x32xbf16> to vector<64x32xbf16>
    %195 = arith.truncf %192 : vector<16x64xf32> to vector<16x64xbf16>
    %cst_76 = arith.constant dense<0.000000e+00> : vector<16x32xf32>
    %196 = tpu.matmul %195, %194, %cst_76 {dimension_numbers = #tpu.dot_dimension_numbers<[1], [0], [0], [1], [0, 0, 1, 1], [], []>} : vector<16x64xbf16>, vector<64x32xbf16>, vector<16x32xf32> -> vector<16x32xf32>
    %c7 = arith.constant 7 : index
    %c0_77 = arith.constant 0 : index
    %c0_78 = arith.constant 0 : index
    %197 = vector.load %arg4[%c7, %c0_77, %c0_78] : memref<21x1x128xf32, #tpu.memory_space<vmem>>, vector<1x1x32xf32>
    %198 = vector.shape_cast %197 : vector<1x1x32xf32> to vector<1x32xf32>
    %199 = vector.broadcast %198 : vector<1x32xf32> to vector<16x32xf32>
    %200 = arith.addf %196, %199 : vector<16x32xf32>
    %201 = arith.addf %200, %171 : vector<16x32xf32>
    %c8_79 = arith.constant 8 : index
    %c0_80 = arith.constant 0 : index
    %c0_81 = arith.constant 0 : index
    %202 = vector.load %arg4[%c8_79, %c0_80, %c0_81] : memref<21x1x128xf32, #tpu.memory_space<vmem>>, vector<1x1x32xf32>
    %203 = vector.shape_cast %202 : vector<1x1x32xf32> to vector<1x32xf32>
    %c9 = arith.constant 9 : index
    %c0_82 = arith.constant 0 : index
    %c0_83 = arith.constant 0 : index
    %204 = vector.load %arg4[%c9, %c0_82, %c0_83] : memref<21x1x128xf32, #tpu.memory_space<vmem>>, vector<1x1x32xf32>
    %205 = vector.shape_cast %204 : vector<1x1x32xf32> to vector<1x32xf32>
    %cst_84 = arith.constant dense<0.000000e+00> : vector<16xf32>
    %206 = vector.multi_reduction <add>, %201, %cst_84 [1] : vector<16x32xf32> to vector<16xf32>
    %207 = vector.shape_cast %206 : vector<16xf32> to vector<16x1xf32>
    %cst_85 = arith.constant 3.200000e+01 : f32
    %208 = vector.broadcast %cst_85 : f32 to vector<16x1xf32>
    %209 = arith.divf %207, %208 : vector<16x1xf32>
    %210 = vector.broadcast %209 : vector<16x1xf32> to vector<16x32xf32>
    %211 = arith.subf %201, %210 : vector<16x32xf32>
    %212 = arith.mulf %211, %211 : vector<16x32xf32>
    %cst_86 = arith.constant dense<0.000000e+00> : vector<16xf32>
    %213 = vector.multi_reduction <add>, %212, %cst_86 [1] : vector<16x32xf32> to vector<16xf32>
    %214 = vector.shape_cast %213 : vector<16xf32> to vector<16x1xf32>
    %cst_87 = arith.constant 3.200000e+01 : f32
    %215 = vector.broadcast %cst_87 : f32 to vector<16x1xf32>
    %216 = arith.divf %214, %215 : vector<16x1xf32>
    %cst_88 = arith.constant 9.99999996E-13 : f32
    %217 = vector.broadcast %cst_88 : f32 to vector<16x1xf32>
    %218 = arith.addf %216, %217 : vector<16x1xf32>
    %219 = math.rsqrt %218 : vector<16x1xf32>
    %220 = vector.broadcast %219 : vector<16x1xf32> to vector<16x32xf32>
    %221 = arith.mulf %211, %220 : vector<16x32xf32>
    %222 = vector.broadcast %203 : vector<1x32xf32> to vector<16x32xf32>
    %223 = arith.mulf %221, %222 : vector<16x32xf32>
    %224 = vector.broadcast %205 : vector<1x32xf32> to vector<16x32xf32>
    %225 = arith.addf %223, %224 : vector<16x32xf32>
    %c4_89 = arith.constant 4 : index
    %c0_90 = arith.constant 0 : index
    %c0_91 = arith.constant 0 : index
    %226 = vector.load %arg3[%c4_89, %c0_90, %c0_91] : memref<13x64x128xbf16, #tpu.memory_space<vmem>>, vector<1x32x128xbf16>
    %227 = vector.shape_cast %226 : vector<1x32x128xbf16> to vector<32x128xbf16>
    %228 = arith.truncf %225 : vector<16x32xf32> to vector<16x32xbf16>
    %cst_92 = arith.constant dense<0.000000e+00> : vector<16x128xf32>
    %229 = tpu.matmul %228, %227, %cst_92 {dimension_numbers = #tpu.dot_dimension_numbers<[1], [0], [0], [1], [0, 0, 1, 1], [], []>} : vector<16x32xbf16>, vector<32x128xbf16>, vector<16x128xf32> -> vector<16x128xf32>
    %c10 = arith.constant 10 : index
    %c0_93 = arith.constant 0 : index
    %c0_94 = arith.constant 0 : index
    %230 = vector.load %arg4[%c10, %c0_93, %c0_94] : memref<21x1x128xf32, #tpu.memory_space<vmem>>, vector<1x1x128xf32>
    %231 = vector.shape_cast %230 : vector<1x1x128xf32> to vector<1x128xf32>
    %232 = vector.broadcast %231 : vector<1x128xf32> to vector<16x128xf32>
    %233 = arith.addf %229, %232 : vector<16x128xf32>
    %cst_95 = arith.constant 0.000000e+00 : f32
    %234 = vector.broadcast %cst_95 : f32 to vector<16x32xf32>
    %235 = vector.extract_strided_slice %233 {offsets = [0, 0], sizes = [16, 8], strides = [1, 1]} : vector<16x128xf32> to vector<16x8xf32>
    %236 = vector.extract_strided_slice %233 {offsets = [0, 32], sizes = [16, 8], strides = [1, 1]} : vector<16x128xf32> to vector<16x8xf32>
    %237 = vector.extract_strided_slice %233 {offsets = [0, 64], sizes = [16, 8], strides = [1, 1]} : vector<16x128xf32> to vector<16x8xf32>
    %238 = arith.truncf %235 : vector<16x8xf32> to vector<16x8xbf16>
    %239 = arith.truncf %236 : vector<16x8xf32> to vector<16x8xbf16>
    "tpu.trace_start"() <{level = 10 : i32, message = "qd,kd->qk"}> : () -> ()
    %cst_96 = arith.constant dense<0.000000e+00> : vector<16x16xf32>
    %240 = tpu.matmul %238, %239, %cst_96 {dimension_numbers = #tpu.dot_dimension_numbers<[1], [1], [0], [0], [0, 0, 1, 0], [], []>} : vector<16x8xbf16>, vector<16x8xbf16>, vector<16x16xf32> -> vector<16x16xf32>
    "tpu.trace_stop"() : () -> ()
    %cst_97 = arith.constant 0.353553385 : f32
    %241 = vector.broadcast %cst_97 : f32 to vector<16x16xf32>
    %242 = arith.mulf %240, %241 : vector<16x16xf32>
    %243 = arith.addf %242, %25 : vector<16x16xf32>
    %cst_98 = arith.constant dense<0xFF800000> : vector<16xf32>
    %244 = vector.multi_reduction <maximumf>, %243, %cst_98 [1] : vector<16x16xf32> to vector<16xf32>
    %245 = vector.shape_cast %244 : vector<16xf32> to vector<16x1xf32>
    %246 = vector.broadcast %245 : vector<16x1xf32> to vector<16x16xf32>
    %247 = arith.subf %243, %246 : vector<16x16xf32>
    %248 = math.exp %247 : vector<16x16xf32>
    %cst_99 = arith.constant dense<0.000000e+00> : vector<16xf32>
    %249 = vector.multi_reduction <add>, %248, %cst_99 [1] : vector<16x16xf32> to vector<16xf32>
    %250 = vector.shape_cast %249 : vector<16xf32> to vector<16x1xf32>
    %251 = tpu.reciprocal %250 {approx = true} : vector<16x1xf32> -> vector<16x1xf32>
    %252 = vector.broadcast %251 : vector<16x1xf32> to vector<16x16xf32>
    %253 = arith.mulf %248, %252 : vector<16x16xf32>
    %254 = arith.truncf %253 : vector<16x16xf32> to vector<16x16xbf16>
    %255 = arith.truncf %237 : vector<16x8xf32> to vector<16x8xbf16>
    %cst_100 = arith.constant dense<0.000000e+00> : vector<16x8xf32>
    %256 = tpu.matmul %254, %255, %cst_100 {dimension_numbers = #tpu.dot_dimension_numbers<[1], [0], [0], [1], [0, 0, 1, 1], [], []>} : vector<16x16xbf16>, vector<16x8xbf16>, vector<16x8xf32> -> vector<16x8xf32>
    %c5_101 = arith.constant 5 : index
    %c0_102 = arith.constant 0 : index
    %c0_103 = arith.constant 0 : index
    %257 = vector.load %arg3[%c5_101, %c0_102, %c0_103] : memref<13x64x128xbf16, #tpu.memory_space<vmem>>, vector<1x8x32xbf16>
    %258 = vector.shape_cast %257 : vector<1x8x32xbf16> to vector<8x32xbf16>
    %259 = arith.truncf %256 : vector<16x8xf32> to vector<16x8xbf16>
    %cst_104 = arith.constant dense<0.000000e+00> : vector<16x32xf32>
    %260 = tpu.matmul %259, %258, %cst_104 {dimension_numbers = #tpu.dot_dimension_numbers<[1], [0], [0], [1], [0, 0, 1, 1], [], []>} : vector<16x8xbf16>, vector<8x32xbf16>, vector<16x32xf32> -> vector<16x32xf32>
    %261 = arith.addf %234, %260 : vector<16x32xf32>
    %262 = vector.extract_strided_slice %233 {offsets = [0, 8], sizes = [16, 8], strides = [1, 1]} : vector<16x128xf32> to vector<16x8xf32>
    %263 = vector.extract_strided_slice %233 {offsets = [0, 40], sizes = [16, 8], strides = [1, 1]} : vector<16x128xf32> to vector<16x8xf32>
    %264 = vector.extract_strided_slice %233 {offsets = [0, 72], sizes = [16, 8], strides = [1, 1]} : vector<16x128xf32> to vector<16x8xf32>
    %265 = arith.truncf %262 : vector<16x8xf32> to vector<16x8xbf16>
    %266 = arith.truncf %263 : vector<16x8xf32> to vector<16x8xbf16>
    "tpu.trace_start"() <{level = 10 : i32, message = "qd,kd->qk"}> : () -> ()
    %cst_105 = arith.constant dense<0.000000e+00> : vector<16x16xf32>
    %267 = tpu.matmul %265, %266, %cst_105 {dimension_numbers = #tpu.dot_dimension_numbers<[1], [1], [0], [0], [0, 0, 1, 0], [], []>} : vector<16x8xbf16>, vector<16x8xbf16>, vector<16x16xf32> -> vector<16x16xf32>
    "tpu.trace_stop"() : () -> ()
    %cst_106 = arith.constant 0.353553385 : f32
    %268 = vector.broadcast %cst_106 : f32 to vector<16x16xf32>
    %269 = arith.mulf %267, %268 : vector<16x16xf32>
    %270 = arith.addf %269, %25 : vector<16x16xf32>
    %cst_107 = arith.constant dense<0xFF800000> : vector<16xf32>
    %271 = vector.multi_reduction <maximumf>, %270, %cst_107 [1] : vector<16x16xf32> to vector<16xf32>
    %272 = vector.shape_cast %271 : vector<16xf32> to vector<16x1xf32>
    %273 = vector.broadcast %272 : vector<16x1xf32> to vector<16x16xf32>
    %274 = arith.subf %270, %273 : vector<16x16xf32>
    %275 = math.exp %274 : vector<16x16xf32>
    %cst_108 = arith.constant dense<0.000000e+00> : vector<16xf32>
    %276 = vector.multi_reduction <add>, %275, %cst_108 [1] : vector<16x16xf32> to vector<16xf32>
    %277 = vector.shape_cast %276 : vector<16xf32> to vector<16x1xf32>
    %278 = tpu.reciprocal %277 {approx = true} : vector<16x1xf32> -> vector<16x1xf32>
    %279 = vector.broadcast %278 : vector<16x1xf32> to vector<16x16xf32>
    %280 = arith.mulf %275, %279 : vector<16x16xf32>
    %281 = arith.truncf %280 : vector<16x16xf32> to vector<16x16xbf16>
    %282 = arith.truncf %264 : vector<16x8xf32> to vector<16x8xbf16>
    %cst_109 = arith.constant dense<0.000000e+00> : vector<16x8xf32>
    %283 = tpu.matmul %281, %282, %cst_109 {dimension_numbers = #tpu.dot_dimension_numbers<[1], [0], [0], [1], [0, 0, 1, 1], [], []>} : vector<16x16xbf16>, vector<16x8xbf16>, vector<16x8xf32> -> vector<16x8xf32>
    %c5_110 = arith.constant 5 : index
    %c8_111 = arith.constant 8 : index
    %c0_112 = arith.constant 0 : index
    %284 = vector.load %arg3[%c5_110, %c8_111, %c0_112] : memref<13x64x128xbf16, #tpu.memory_space<vmem>>, vector<1x8x32xbf16>
    %285 = vector.shape_cast %284 : vector<1x8x32xbf16> to vector<8x32xbf16>
    %286 = arith.truncf %283 : vector<16x8xf32> to vector<16x8xbf16>
    %cst_113 = arith.constant dense<0.000000e+00> : vector<16x32xf32>
    %287 = tpu.matmul %286, %285, %cst_113 {dimension_numbers = #tpu.dot_dimension_numbers<[1], [0], [0], [1], [0, 0, 1, 1], [], []>} : vector<16x8xbf16>, vector<8x32xbf16>, vector<16x32xf32> -> vector<16x32xf32>
    %288 = arith.addf %261, %287 : vector<16x32xf32>
    %289 = vector.extract_strided_slice %233 {offsets = [0, 16], sizes = [16, 8], strides = [1, 1]} : vector<16x128xf32> to vector<16x8xf32>
    %290 = vector.extract_strided_slice %233 {offsets = [0, 48], sizes = [16, 8], strides = [1, 1]} : vector<16x128xf32> to vector<16x8xf32>
    %291 = vector.extract_strided_slice %233 {offsets = [0, 80], sizes = [16, 8], strides = [1, 1]} : vector<16x128xf32> to vector<16x8xf32>
    %292 = arith.truncf %289 : vector<16x8xf32> to vector<16x8xbf16>
    %293 = arith.truncf %290 : vector<16x8xf32> to vector<16x8xbf16>
    "tpu.trace_start"() <{level = 10 : i32, message = "qd,kd->qk"}> : () -> ()
    %cst_114 = arith.constant dense<0.000000e+00> : vector<16x16xf32>
    %294 = tpu.matmul %292, %293, %cst_114 {dimension_numbers = #tpu.dot_dimension_numbers<[1], [1], [0], [0], [0, 0, 1, 0], [], []>} : vector<16x8xbf16>, vector<16x8xbf16>, vector<16x16xf32> -> vector<16x16xf32>
    "tpu.trace_stop"() : () -> ()
    %cst_115 = arith.constant 0.353553385 : f32
    %295 = vector.broadcast %cst_115 : f32 to vector<16x16xf32>
    %296 = arith.mulf %294, %295 : vector<16x16xf32>
    %297 = arith.addf %296, %25 : vector<16x16xf32>
    %cst_116 = arith.constant dense<0xFF800000> : vector<16xf32>
    %298 = vector.multi_reduction <maximumf>, %297, %cst_116 [1] : vector<16x16xf32> to vector<16xf32>
    %299 = vector.shape_cast %298 : vector<16xf32> to vector<16x1xf32>
    %300 = vector.broadcast %299 : vector<16x1xf32> to vector<16x16xf32>
    %301 = arith.subf %297, %300 : vector<16x16xf32>
    %302 = math.exp %301 : vector<16x16xf32>
    %cst_117 = arith.constant dense<0.000000e+00> : vector<16xf32>
    %303 = vector.multi_reduction <add>, %302, %cst_117 [1] : vector<16x16xf32> to vector<16xf32>
    %304 = vector.shape_cast %303 : vector<16xf32> to vector<16x1xf32>
    %305 = tpu.reciprocal %304 {approx = true} : vector<16x1xf32> -> vector<16x1xf32>
    %306 = vector.broadcast %305 : vector<16x1xf32> to vector<16x16xf32>
    %307 = arith.mulf %302, %306 : vector<16x16xf32>
    %308 = arith.truncf %307 : vector<16x16xf32> to vector<16x16xbf16>
    %309 = arith.truncf %291 : vector<16x8xf32> to vector<16x8xbf16>
    %cst_118 = arith.constant dense<0.000000e+00> : vector<16x8xf32>
    %310 = tpu.matmul %308, %309, %cst_118 {dimension_numbers = #tpu.dot_dimension_numbers<[1], [0], [0], [1], [0, 0, 1, 1], [], []>} : vector<16x16xbf16>, vector<16x8xbf16>, vector<16x8xf32> -> vector<16x8xf32>
    %c5_119 = arith.constant 5 : index
    %c16_120 = arith.constant 16 : index
    %c0_121 = arith.constant 0 : index
    %311 = vector.load %arg3[%c5_119, %c16_120, %c0_121] : memref<13x64x128xbf16, #tpu.memory_space<vmem>>, vector<1x8x32xbf16>
    %312 = vector.shape_cast %311 : vector<1x8x32xbf16> to vector<8x32xbf16>
    %313 = arith.truncf %310 : vector<16x8xf32> to vector<16x8xbf16>
    %cst_122 = arith.constant dense<0.000000e+00> : vector<16x32xf32>
    %314 = tpu.matmul %313, %312, %cst_122 {dimension_numbers = #tpu.dot_dimension_numbers<[1], [0], [0], [1], [0, 0, 1, 1], [], []>} : vector<16x8xbf16>, vector<8x32xbf16>, vector<16x32xf32> -> vector<16x32xf32>
    %315 = arith.addf %288, %314 : vector<16x32xf32>
    %316 = vector.extract_strided_slice %233 {offsets = [0, 24], sizes = [16, 8], strides = [1, 1]} : vector<16x128xf32> to vector<16x8xf32>
    %317 = vector.extract_strided_slice %233 {offsets = [0, 56], sizes = [16, 8], strides = [1, 1]} : vector<16x128xf32> to vector<16x8xf32>
    %318 = vector.extract_strided_slice %233 {offsets = [0, 88], sizes = [16, 8], strides = [1, 1]} : vector<16x128xf32> to vector<16x8xf32>
    %319 = arith.truncf %316 : vector<16x8xf32> to vector<16x8xbf16>
    %320 = arith.truncf %317 : vector<16x8xf32> to vector<16x8xbf16>
    "tpu.trace_start"() <{level = 10 : i32, message = "qd,kd->qk"}> : () -> ()
    %cst_123 = arith.constant dense<0.000000e+00> : vector<16x16xf32>
    %321 = tpu.matmul %319, %320, %cst_123 {dimension_numbers = #tpu.dot_dimension_numbers<[1], [1], [0], [0], [0, 0, 1, 0], [], []>} : vector<16x8xbf16>, vector<16x8xbf16>, vector<16x16xf32> -> vector<16x16xf32>
    "tpu.trace_stop"() : () -> ()
    %cst_124 = arith.constant 0.353553385 : f32
    %322 = vector.broadcast %cst_124 : f32 to vector<16x16xf32>
    %323 = arith.mulf %321, %322 : vector<16x16xf32>
    %324 = arith.addf %323, %25 : vector<16x16xf32>
    %cst_125 = arith.constant dense<0xFF800000> : vector<16xf32>
    %325 = vector.multi_reduction <maximumf>, %324, %cst_125 [1] : vector<16x16xf32> to vector<16xf32>
    %326 = vector.shape_cast %325 : vector<16xf32> to vector<16x1xf32>
    %327 = vector.broadcast %326 : vector<16x1xf32> to vector<16x16xf32>
    %328 = arith.subf %324, %327 : vector<16x16xf32>
    %329 = math.exp %328 : vector<16x16xf32>
    %cst_126 = arith.constant dense<0.000000e+00> : vector<16xf32>
    %330 = vector.multi_reduction <add>, %329, %cst_126 [1] : vector<16x16xf32> to vector<16xf32>
    %331 = vector.shape_cast %330 : vector<16xf32> to vector<16x1xf32>
    %332 = tpu.reciprocal %331 {approx = true} : vector<16x1xf32> -> vector<16x1xf32>
    %333 = vector.broadcast %332 : vector<16x1xf32> to vector<16x16xf32>
    %334 = arith.mulf %329, %333 : vector<16x16xf32>
    %335 = arith.truncf %334 : vector<16x16xf32> to vector<16x16xbf16>
    %336 = arith.truncf %318 : vector<16x8xf32> to vector<16x8xbf16>
    %cst_127 = arith.constant dense<0.000000e+00> : vector<16x8xf32>
    %337 = tpu.matmul %335, %336, %cst_127 {dimension_numbers = #tpu.dot_dimension_numbers<[1], [0], [0], [1], [0, 0, 1, 1], [], []>} : vector<16x16xbf16>, vector<16x8xbf16>, vector<16x8xf32> -> vector<16x8xf32>
    %c5_128 = arith.constant 5 : index
    %c24_129 = arith.constant 24 : index
    %c0_130 = arith.constant 0 : index
    %338 = vector.load %arg3[%c5_128, %c24_129, %c0_130] : memref<13x64x128xbf16, #tpu.memory_space<vmem>>, vector<1x8x32xbf16>
    %339 = vector.shape_cast %338 : vector<1x8x32xbf16> to vector<8x32xbf16>
    %340 = arith.truncf %337 : vector<16x8xf32> to vector<16x8xbf16>
    %cst_131 = arith.constant dense<0.000000e+00> : vector<16x32xf32>
    %341 = tpu.matmul %340, %339, %cst_131 {dimension_numbers = #tpu.dot_dimension_numbers<[1], [0], [0], [1], [0, 0, 1, 1], [], []>} : vector<16x8xbf16>, vector<8x32xbf16>, vector<16x32xf32> -> vector<16x32xf32>
    %342 = arith.addf %315, %341 : vector<16x32xf32>
    %c11 = arith.constant 11 : index
    %c0_132 = arith.constant 0 : index
    %c0_133 = arith.constant 0 : index
    %343 = vector.load %arg4[%c11, %c0_132, %c0_133] : memref<21x1x128xf32, #tpu.memory_space<vmem>>, vector<1x1x32xf32>
    %344 = vector.shape_cast %343 : vector<1x1x32xf32> to vector<1x32xf32>
    %345 = vector.broadcast %344 : vector<1x32xf32> to vector<16x32xf32>
    %346 = arith.addf %342, %345 : vector<16x32xf32>
    %347 = arith.addf %346, %225 : vector<16x32xf32>
    %c12 = arith.constant 12 : index
    %c0_134 = arith.constant 0 : index
    %c0_135 = arith.constant 0 : index
    %348 = vector.load %arg4[%c12, %c0_134, %c0_135] : memref<21x1x128xf32, #tpu.memory_space<vmem>>, vector<1x1x32xf32>
    %349 = vector.shape_cast %348 : vector<1x1x32xf32> to vector<1x32xf32>
    %c13 = arith.constant 13 : index
    %c0_136 = arith.constant 0 : index
    %c0_137 = arith.constant 0 : index
    %350 = vector.load %arg4[%c13, %c0_136, %c0_137] : memref<21x1x128xf32, #tpu.memory_space<vmem>>, vector<1x1x32xf32>
    %351 = vector.shape_cast %350 : vector<1x1x32xf32> to vector<1x32xf32>
    %cst_138 = arith.constant dense<0.000000e+00> : vector<16xf32>
    %352 = vector.multi_reduction <add>, %347, %cst_138 [1] : vector<16x32xf32> to vector<16xf32>
    %353 = vector.shape_cast %352 : vector<16xf32> to vector<16x1xf32>
    %cst_139 = arith.constant 3.200000e+01 : f32
    %354 = vector.broadcast %cst_139 : f32 to vector<16x1xf32>
    %355 = arith.divf %353, %354 : vector<16x1xf32>
    %356 = vector.broadcast %355 : vector<16x1xf32> to vector<16x32xf32>
    %357 = arith.subf %347, %356 : vector<16x32xf32>
    %358 = arith.mulf %357, %357 : vector<16x32xf32>
    %cst_140 = arith.constant dense<0.000000e+00> : vector<16xf32>
    %359 = vector.multi_reduction <add>, %358, %cst_140 [1] : vector<16x32xf32> to vector<16xf32>
    %360 = vector.shape_cast %359 : vector<16xf32> to vector<16x1xf32>
    %cst_141 = arith.constant 3.200000e+01 : f32
    %361 = vector.broadcast %cst_141 : f32 to vector<16x1xf32>
    %362 = arith.divf %360, %361 : vector<16x1xf32>
    %cst_142 = arith.constant 9.99999996E-13 : f32
    %363 = vector.broadcast %cst_142 : f32 to vector<16x1xf32>
    %364 = arith.addf %362, %363 : vector<16x1xf32>
    %365 = math.rsqrt %364 : vector<16x1xf32>
    %366 = vector.broadcast %365 : vector<16x1xf32> to vector<16x32xf32>
    %367 = arith.mulf %357, %366 : vector<16x32xf32>
    %368 = vector.broadcast %349 : vector<1x32xf32> to vector<16x32xf32>
    %369 = arith.mulf %367, %368 : vector<16x32xf32>
    %370 = vector.broadcast %351 : vector<1x32xf32> to vector<16x32xf32>
    %371 = arith.addf %369, %370 : vector<16x32xf32>
    %c6_143 = arith.constant 6 : index
    %c0_144 = arith.constant 0 : index
    %c0_145 = arith.constant 0 : index
    %372 = vector.load %arg3[%c6_143, %c0_144, %c0_145] : memref<13x64x128xbf16, #tpu.memory_space<vmem>>, vector<1x32x64xbf16>
    %373 = vector.shape_cast %372 : vector<1x32x64xbf16> to vector<32x64xbf16>
    %374 = arith.truncf %371 : vector<16x32xf32> to vector<16x32xbf16>
    %cst_146 = arith.constant dense<0.000000e+00> : vector<16x64xf32>
    %375 = tpu.matmul %374, %373, %cst_146 {dimension_numbers = #tpu.dot_dimension_numbers<[1], [0], [0], [1], [0, 0, 1, 1], [], []>} : vector<16x32xbf16>, vector<32x64xbf16>, vector<16x64xf32> -> vector<16x64xf32>
    %c14 = arith.constant 14 : index
    %c0_147 = arith.constant 0 : index
    %c0_148 = arith.constant 0 : index
    %376 = vector.load %arg4[%c14, %c0_147, %c0_148] : memref<21x1x128xf32, #tpu.memory_space<vmem>>, vector<1x1x64xf32>
    %377 = vector.shape_cast %376 : vector<1x1x64xf32> to vector<1x64xf32>
    %378 = vector.broadcast %377 : vector<1x64xf32> to vector<16x64xf32>
    %379 = arith.addf %375, %378 : vector<16x64xf32>
    %380 = arith.mulf %379, %379 : vector<16x64xf32>
    %381 = arith.mulf %379, %380 : vector<16x64xf32>
    %cst_149 = arith.constant 4.471500e-02 : f32
    %382 = vector.broadcast %cst_149 : f32 to vector<16x64xf32>
    %383 = arith.mulf %382, %381 : vector<16x64xf32>
    %384 = arith.addf %379, %383 : vector<16x64xf32>
    %cst_150 = arith.constant 0.797884583 : f32
    %385 = vector.broadcast %cst_150 : f32 to vector<16x64xf32>
    %386 = arith.mulf %385, %384 : vector<16x64xf32>
    %387 = math.tanh %386 : vector<16x64xf32>
    %cst_151 = arith.constant 1.000000e+00 : f32
    %388 = vector.broadcast %cst_151 : f32 to vector<16x64xf32>
    %389 = arith.addf %388, %387 : vector<16x64xf32>
    %cst_152 = arith.constant 5.000000e-01 : f32
    %390 = vector.broadcast %cst_152 : f32 to vector<16x64xf32>
    %391 = arith.mulf %390, %389 : vector<16x64xf32>
    %392 = arith.mulf %379, %391 : vector<16x64xf32>
    %c7_153 = arith.constant 7 : index
    %c0_154 = arith.constant 0 : index
    %c0_155 = arith.constant 0 : index
    %393 = vector.load %arg3[%c7_153, %c0_154, %c0_155] : memref<13x64x128xbf16, #tpu.memory_space<vmem>>, vector<1x64x32xbf16>
    %394 = vector.shape_cast %393 : vector<1x64x32xbf16> to vector<64x32xbf16>
    %395 = arith.truncf %392 : vector<16x64xf32> to vector<16x64xbf16>
    %cst_156 = arith.constant dense<0.000000e+00> : vector<16x32xf32>
    %396 = tpu.matmul %395, %394, %cst_156 {dimension_numbers = #tpu.dot_dimension_numbers<[1], [0], [0], [1], [0, 0, 1, 1], [], []>} : vector<16x64xbf16>, vector<64x32xbf16>, vector<16x32xf32> -> vector<16x32xf32>
    %c15 = arith.constant 15 : index
    %c0_157 = arith.constant 0 : index
    %c0_158 = arith.constant 0 : index
    %397 = vector.load %arg4[%c15, %c0_157, %c0_158] : memref<21x1x128xf32, #tpu.memory_space<vmem>>, vector<1x1x32xf32>
    %398 = vector.shape_cast %397 : vector<1x1x32xf32> to vector<1x32xf32>
    %399 = vector.broadcast %398 : vector<1x32xf32> to vector<16x32xf32>
    %400 = arith.addf %396, %399 : vector<16x32xf32>
    %401 = arith.addf %400, %371 : vector<16x32xf32>
    %c16_159 = arith.constant 16 : index
    %c0_160 = arith.constant 0 : index
    %c0_161 = arith.constant 0 : index
    %402 = vector.load %arg4[%c16_159, %c0_160, %c0_161] : memref<21x1x128xf32, #tpu.memory_space<vmem>>, vector<1x1x32xf32>
    %403 = vector.shape_cast %402 : vector<1x1x32xf32> to vector<1x32xf32>
    %c17 = arith.constant 17 : index
    %c0_162 = arith.constant 0 : index
    %c0_163 = arith.constant 0 : index
    %404 = vector.load %arg4[%c17, %c0_162, %c0_163] : memref<21x1x128xf32, #tpu.memory_space<vmem>>, vector<1x1x32xf32>
    %405 = vector.shape_cast %404 : vector<1x1x32xf32> to vector<1x32xf32>
    %cst_164 = arith.constant dense<0.000000e+00> : vector<16xf32>
    %406 = vector.multi_reduction <add>, %401, %cst_164 [1] : vector<16x32xf32> to vector<16xf32>
    %407 = vector.shape_cast %406 : vector<16xf32> to vector<16x1xf32>
    %cst_165 = arith.constant 3.200000e+01 : f32
    %408 = vector.broadcast %cst_165 : f32 to vector<16x1xf32>
    %409 = arith.divf %407, %408 : vector<16x1xf32>
    %410 = vector.broadcast %409 : vector<16x1xf32> to vector<16x32xf32>
    %411 = arith.subf %401, %410 : vector<16x32xf32>
    %412 = arith.mulf %411, %411 : vector<16x32xf32>
    %cst_166 = arith.constant dense<0.000000e+00> : vector<16xf32>
    %413 = vector.multi_reduction <add>, %412, %cst_166 [1] : vector<16x32xf32> to vector<16xf32>
    %414 = vector.shape_cast %413 : vector<16xf32> to vector<16x1xf32>
    %cst_167 = arith.constant 3.200000e+01 : f32
    %415 = vector.broadcast %cst_167 : f32 to vector<16x1xf32>
    %416 = arith.divf %414, %415 : vector<16x1xf32>
    %cst_168 = arith.constant 9.99999996E-13 : f32
    %417 = vector.broadcast %cst_168 : f32 to vector<16x1xf32>
    %418 = arith.addf %416, %417 : vector<16x1xf32>
    %419 = math.rsqrt %418 : vector<16x1xf32>
    %420 = vector.broadcast %419 : vector<16x1xf32> to vector<16x32xf32>
    %421 = arith.mulf %411, %420 : vector<16x32xf32>
    %422 = vector.broadcast %403 : vector<1x32xf32> to vector<16x32xf32>
    %423 = arith.mulf %421, %422 : vector<16x32xf32>
    %424 = vector.broadcast %405 : vector<1x32xf32> to vector<16x32xf32>
    %425 = arith.addf %423, %424 : vector<16x32xf32>
    %c8_169 = arith.constant 8 : index
    %c0_170 = arith.constant 0 : index
    %c0_171 = arith.constant 0 : index
    %426 = vector.load %arg3[%c8_169, %c0_170, %c0_171] : memref<13x64x128xbf16, #tpu.memory_space<vmem>>, vector<1x32x128xbf16>
    %427 = vector.shape_cast %426 : vector<1x32x128xbf16> to vector<32x128xbf16>
    %c9_172 = arith.constant 9 : index
    %c0_173 = arith.constant 0 : index
    %c0_174 = arith.constant 0 : index
    %428 = vector.load %arg3[%c9_172, %c0_173, %c0_174] : memref<13x64x128xbf16, #tpu.memory_space<vmem>>, vector<1x32x128xbf16>
    %429 = vector.shape_cast %428 : vector<1x32x128xbf16> to vector<32x128xbf16>
    %430 = arith.truncf %425 : vector<16x32xf32> to vector<16x32xbf16>
    %cst_175 = arith.constant dense<0.000000e+00> : vector<16x128xf32>
    %431 = tpu.matmul %430, %427, %cst_175 {dimension_numbers = #tpu.dot_dimension_numbers<[1], [0], [0], [1], [0, 0, 1, 1], [], []>} : vector<16x32xbf16>, vector<32x128xbf16>, vector<16x128xf32> -> vector<16x128xf32>
    %c18 = arith.constant 18 : index
    %c0_176 = arith.constant 0 : index
    %c0_177 = arith.constant 0 : index
    %432 = vector.load %arg4[%c18, %c0_176, %c0_177] : memref<21x1x128xf32, #tpu.memory_space<vmem>>, vector<1x1x128xf32>
    %433 = vector.shape_cast %432 : vector<1x1x128xf32> to vector<1x128xf32>
    %434 = vector.broadcast %433 : vector<1x128xf32> to vector<16x128xf32>
    %435 = arith.addf %431, %434 : vector<16x128xf32>
    %cst_178 = arith.constant 0.000000e+00 : f32
    %436 = vector.broadcast %cst_178 : f32 to vector<2x32xf32>
    %cst_179 = arith.constant 0.000000e+00 : f32
    %437 = vector.broadcast %cst_179 : f32 to vector<2x32xf32>
    %438 = vector.extract_strided_slice %435 {offsets = [0, 0], sizes = [2, 128], strides = [1, 1]} : vector<16x128xf32> to vector<2x128xf32>
    %439 = arith.truncf %436 : vector<2x32xf32> to vector<2x32xbf16>
    %cst_180 = arith.constant dense<0.000000e+00> : vector<2x128xf32>
    %440 = tpu.matmul %439, %429, %cst_180 {dimension_numbers = #tpu.dot_dimension_numbers<[1], [0], [0], [1], [0, 0, 1, 1], [], []>} : vector<2x32xbf16>, vector<32x128xbf16>, vector<2x128xf32> -> vector<2x128xf32>
    %441 = arith.addf %438, %440 : vector<2x128xf32>
    %442 = arith.negf %441 : vector<2x128xf32>
    %443 = math.exp %442 : vector<2x128xf32>
    %cst_181 = arith.constant 1.000000e+00 : f32
    %444 = vector.broadcast %cst_181 : f32 to vector<2x128xf32>
    %445 = arith.addf %444, %443 : vector<2x128xf32>
    %446 = arith.divf %444, %445 : vector<2x128xf32>
    %447 = vector.extract_strided_slice %446 {offsets = [0, 0], sizes = [2, 32], strides = [1, 1]} : vector<2x128xf32> to vector<2x32xf32>
    %448 = vector.extract_strided_slice %446 {offsets = [0, 32], sizes = [2, 32], strides = [1, 1]} : vector<2x128xf32> to vector<2x32xf32>
    %449 = vector.extract_strided_slice %446 {offsets = [0, 96], sizes = [2, 32], strides = [1, 1]} : vector<2x128xf32> to vector<2x32xf32>
    %450 = vector.extract_strided_slice %441 {offsets = [0, 64], sizes = [2, 32], strides = [1, 1]} : vector<2x128xf32> to vector<2x32xf32>
    %451 = math.tanh %450 : vector<2x32xf32>
    %452 = arith.mulf %448, %437 : vector<2x32xf32>
    %453 = arith.mulf %447, %451 : vector<2x32xf32>
    %454 = arith.addf %452, %453 : vector<2x32xf32>
    %455 = math.tanh %454 : vector<2x32xf32>
    %456 = arith.mulf %449, %455 : vector<2x32xf32>
    %c0_182 = arith.constant 0 : index
    %c0_183 = arith.constant 0 : index
    %457 = vector.load %arg6[%c0_182, %c0_183] : memref<16x32xf32, #tpu.memory_space<vmem>>, vector<2x32xf32>
    tpu.vector_store %arg6[%c0_182, %c0_183], %456 {strides = array<i32>} : memref<16x32xf32, #tpu.memory_space<vmem>>, vector<2x32xf32>,
    %458 = vector.extract_strided_slice %435 {offsets = [2, 0], sizes = [2, 128], strides = [1, 1]} : vector<16x128xf32> to vector<2x128xf32>
    %459 = arith.truncf %456 : vector<2x32xf32> to vector<2x32xbf16>
    %cst_184 = arith.constant dense<0.000000e+00> : vector<2x128xf32>
    %460 = tpu.matmul %459, %429, %cst_184 {dimension_numbers = #tpu.dot_dimension_numbers<[1], [0], [0], [1], [0, 0, 1, 1], [], []>} : vector<2x32xbf16>, vector<32x128xbf16>, vector<2x128xf32> -> vector<2x128xf32>
    %461 = arith.addf %458, %460 : vector<2x128xf32>
    %462 = arith.negf %461 : vector<2x128xf32>
    %463 = math.exp %462 : vector<2x128xf32>
    %cst_185 = arith.constant 1.000000e+00 : f32
    %464 = vector.broadcast %cst_185 : f32 to vector<2x128xf32>
    %465 = arith.addf %464, %463 : vector<2x128xf32>
    %466 = arith.divf %464, %465 : vector<2x128xf32>
    %467 = vector.extract_strided_slice %466 {offsets = [0, 0], sizes = [2, 32], strides = [1, 1]} : vector<2x128xf32> to vector<2x32xf32>
    %468 = vector.extract_strided_slice %466 {offsets = [0, 32], sizes = [2, 32], strides = [1, 1]} : vector<2x128xf32> to vector<2x32xf32>
    %469 = vector.extract_strided_slice %466 {offsets = [0, 96], sizes = [2, 32], strides = [1, 1]} : vector<2x128xf32> to vector<2x32xf32>
    %470 = vector.extract_strided_slice %461 {offsets = [0, 64], sizes = [2, 32], strides = [1, 1]} : vector<2x128xf32> to vector<2x32xf32>
    %471 = math.tanh %470 : vector<2x32xf32>
    %472 = arith.mulf %468, %454 : vector<2x32xf32>
    %473 = arith.mulf %467, %471 : vector<2x32xf32>
    %474 = arith.addf %472, %473 : vector<2x32xf32>
    %475 = math.tanh %474 : vector<2x32xf32>
    %476 = arith.mulf %469, %475 : vector<2x32xf32>
    %c2_186 = arith.constant 2 : index
    %c0_187 = arith.constant 0 : index
    %477 = vector.load %arg6[%c2_186, %c0_187] : memref<16x32xf32, #tpu.memory_space<vmem>>, vector<2x32xf32>
    tpu.vector_store %arg6[%c2_186, %c0_187], %476 {strides = array<i32>} : memref<16x32xf32, #tpu.memory_space<vmem>>, vector<2x32xf32>,
    %478 = vector.extract_strided_slice %435 {offsets = [4, 0], sizes = [2, 128], strides = [1, 1]} : vector<16x128xf32> to vector<2x128xf32>
    %479 = arith.truncf %476 : vector<2x32xf32> to vector<2x32xbf16>
    %cst_188 = arith.constant dense<0.000000e+00> : vector<2x128xf32>
    %480 = tpu.matmul %479, %429, %cst_188 {dimension_numbers = #tpu.dot_dimension_numbers<[1], [0], [0], [1], [0, 0, 1, 1], [], []>} : vector<2x32xbf16>, vector<32x128xbf16>, vector<2x128xf32> -> vector<2x128xf32>
    %481 = arith.addf %478, %480 : vector<2x128xf32>
    %482 = arith.negf %481 : vector<2x128xf32>
    %483 = math.exp %482 : vector<2x128xf32>
    %cst_189 = arith.constant 1.000000e+00 : f32
    %484 = vector.broadcast %cst_189 : f32 to vector<2x128xf32>
    %485 = arith.addf %484, %483 : vector<2x128xf32>
    %486 = arith.divf %484, %485 : vector<2x128xf32>
    %487 = vector.extract_strided_slice %486 {offsets = [0, 0], sizes = [2, 32], strides = [1, 1]} : vector<2x128xf32> to vector<2x32xf32>
    %488 = vector.extract_strided_slice %486 {offsets = [0, 32], sizes = [2, 32], strides = [1, 1]} : vector<2x128xf32> to vector<2x32xf32>
    %489 = vector.extract_strided_slice %486 {offsets = [0, 96], sizes = [2, 32], strides = [1, 1]} : vector<2x128xf32> to vector<2x32xf32>
    %490 = vector.extract_strided_slice %481 {offsets = [0, 64], sizes = [2, 32], strides = [1, 1]} : vector<2x128xf32> to vector<2x32xf32>
    %491 = math.tanh %490 : vector<2x32xf32>
    %492 = arith.mulf %488, %474 : vector<2x32xf32>
    %493 = arith.mulf %487, %491 : vector<2x32xf32>
    %494 = arith.addf %492, %493 : vector<2x32xf32>
    %495 = math.tanh %494 : vector<2x32xf32>
    %496 = arith.mulf %489, %495 : vector<2x32xf32>
    %c4_190 = arith.constant 4 : index
    %c0_191 = arith.constant 0 : index
    %497 = vector.load %arg6[%c4_190, %c0_191] : memref<16x32xf32, #tpu.memory_space<vmem>>, vector<2x32xf32>
    tpu.vector_store %arg6[%c4_190, %c0_191], %496 {strides = array<i32>} : memref<16x32xf32, #tpu.memory_space<vmem>>, vector<2x32xf32>,
    %498 = vector.extract_strided_slice %435 {offsets = [6, 0], sizes = [2, 128], strides = [1, 1]} : vector<16x128xf32> to vector<2x128xf32>
    %499 = arith.truncf %496 : vector<2x32xf32> to vector<2x32xbf16>
    %cst_192 = arith.constant dense<0.000000e+00> : vector<2x128xf32>
    %500 = tpu.matmul %499, %429, %cst_192 {dimension_numbers = #tpu.dot_dimension_numbers<[1], [0], [0], [1], [0, 0, 1, 1], [], []>} : vector<2x32xbf16>, vector<32x128xbf16>, vector<2x128xf32> -> vector<2x128xf32>
    %501 = arith.addf %498, %500 : vector<2x128xf32>
    %502 = arith.negf %501 : vector<2x128xf32>
    %503 = math.exp %502 : vector<2x128xf32>
    %cst_193 = arith.constant 1.000000e+00 : f32
    %504 = vector.broadcast %cst_193 : f32 to vector<2x128xf32>
    %505 = arith.addf %504, %503 : vector<2x128xf32>
    %506 = arith.divf %504, %505 : vector<2x128xf32>
    %507 = vector.extract_strided_slice %506 {offsets = [0, 0], sizes = [2, 32], strides = [1, 1]} : vector<2x128xf32> to vector<2x32xf32>
    %508 = vector.extract_strided_slice %506 {offsets = [0, 32], sizes = [2, 32], strides = [1, 1]} : vector<2x128xf32> to vector<2x32xf32>
    %509 = vector.extract_strided_slice %506 {offsets = [0, 96], sizes = [2, 32], strides = [1, 1]} : vector<2x128xf32> to vector<2x32xf32>
    %510 = vector.extract_strided_slice %501 {offsets = [0, 64], sizes = [2, 32], strides = [1, 1]} : vector<2x128xf32> to vector<2x32xf32>
    %511 = math.tanh %510 : vector<2x32xf32>
    %512 = arith.mulf %508, %494 : vector<2x32xf32>
    %513 = arith.mulf %507, %511 : vector<2x32xf32>
    %514 = arith.addf %512, %513 : vector<2x32xf32>
    %515 = math.tanh %514 : vector<2x32xf32>
    %516 = arith.mulf %509, %515 : vector<2x32xf32>
    %c6_194 = arith.constant 6 : index
    %c0_195 = arith.constant 0 : index
    %517 = vector.load %arg6[%c6_194, %c0_195] : memref<16x32xf32, #tpu.memory_space<vmem>>, vector<2x32xf32>
    tpu.vector_store %arg6[%c6_194, %c0_195], %516 {strides = array<i32>} : memref<16x32xf32, #tpu.memory_space<vmem>>, vector<2x32xf32>,
    %518 = vector.extract_strided_slice %435 {offsets = [8, 0], sizes = [2, 128], strides = [1, 1]} : vector<16x128xf32> to vector<2x128xf32>
    %519 = arith.truncf %516 : vector<2x32xf32> to vector<2x32xbf16>
    %cst_196 = arith.constant dense<0.000000e+00> : vector<2x128xf32>
    %520 = tpu.matmul %519, %429, %cst_196 {dimension_numbers = #tpu.dot_dimension_numbers<[1], [0], [0], [1], [0, 0, 1, 1], [], []>} : vector<2x32xbf16>, vector<32x128xbf16>, vector<2x128xf32> -> vector<2x128xf32>
    %521 = arith.addf %518, %520 : vector<2x128xf32>
    %522 = arith.negf %521 : vector<2x128xf32>
    %523 = math.exp %522 : vector<2x128xf32>
    %cst_197 = arith.constant 1.000000e+00 : f32
    %524 = vector.broadcast %cst_197 : f32 to vector<2x128xf32>
    %525 = arith.addf %524, %523 : vector<2x128xf32>
    %526 = arith.divf %524, %525 : vector<2x128xf32>
    %527 = vector.extract_strided_slice %526 {offsets = [0, 0], sizes = [2, 32], strides = [1, 1]} : vector<2x128xf32> to vector<2x32xf32>
    %528 = vector.extract_strided_slice %526 {offsets = [0, 32], sizes = [2, 32], strides = [1, 1]} : vector<2x128xf32> to vector<2x32xf32>
    %529 = vector.extract_strided_slice %526 {offsets = [0, 96], sizes = [2, 32], strides = [1, 1]} : vector<2x128xf32> to vector<2x32xf32>
    %530 = vector.extract_strided_slice %521 {offsets = [0, 64], sizes = [2, 32], strides = [1, 1]} : vector<2x128xf32> to vector<2x32xf32>
    %531 = math.tanh %530 : vector<2x32xf32>
    %532 = arith.mulf %528, %514 : vector<2x32xf32>
    %533 = arith.mulf %527, %531 : vector<2x32xf32>
    %534 = arith.addf %532, %533 : vector<2x32xf32>
    %535 = math.tanh %534 : vector<2x32xf32>
    %536 = arith.mulf %529, %535 : vector<2x32xf32>
    %c8_198 = arith.constant 8 : index
    %c0_199 = arith.constant 0 : index
    %537 = vector.load %arg6[%c8_198, %c0_199] : memref<16x32xf32, #tpu.memory_space<vmem>>, vector<2x32xf32>
    tpu.vector_store %arg6[%c8_198, %c0_199], %536 {strides = array<i32>} : memref<16x32xf32, #tpu.memory_space<vmem>>, vector<2x32xf32>,
    %538 = vector.extract_strided_slice %435 {offsets = [10, 0], sizes = [2, 128], strides = [1, 1]} : vector<16x128xf32> to vector<2x128xf32>
    %539 = arith.truncf %536 : vector<2x32xf32> to vector<2x32xbf16>
    %cst_200 = arith.constant dense<0.000000e+00> : vector<2x128xf32>
    %540 = tpu.matmul %539, %429, %cst_200 {dimension_numbers = #tpu.dot_dimension_numbers<[1], [0], [0], [1], [0, 0, 1, 1], [], []>} : vector<2x32xbf16>, vector<32x128xbf16>, vector<2x128xf32> -> vector<2x128xf32>
    %541 = arith.addf %538, %540 : vector<2x128xf32>
    %542 = arith.negf %541 : vector<2x128xf32>
    %543 = math.exp %542 : vector<2x128xf32>
    %cst_201 = arith.constant 1.000000e+00 : f32
    %544 = vector.broadcast %cst_201 : f32 to vector<2x128xf32>
    %545 = arith.addf %544, %543 : vector<2x128xf32>
    %546 = arith.divf %544, %545 : vector<2x128xf32>
    %547 = vector.extract_strided_slice %546 {offsets = [0, 0], sizes = [2, 32], strides = [1, 1]} : vector<2x128xf32> to vector<2x32xf32>
    %548 = vector.extract_strided_slice %546 {offsets = [0, 32], sizes = [2, 32], strides = [1, 1]} : vector<2x128xf32> to vector<2x32xf32>
    %549 = vector.extract_strided_slice %546 {offsets = [0, 96], sizes = [2, 32], strides = [1, 1]} : vector<2x128xf32> to vector<2x32xf32>
    %550 = vector.extract_strided_slice %541 {offsets = [0, 64], sizes = [2, 32], strides = [1, 1]} : vector<2x128xf32> to vector<2x32xf32>
    %551 = math.tanh %550 : vector<2x32xf32>
    %552 = arith.mulf %548, %534 : vector<2x32xf32>
    %553 = arith.mulf %547, %551 : vector<2x32xf32>
    %554 = arith.addf %552, %553 : vector<2x32xf32>
    %555 = math.tanh %554 : vector<2x32xf32>
    %556 = arith.mulf %549, %555 : vector<2x32xf32>
    %c10_202 = arith.constant 10 : index
    %c0_203 = arith.constant 0 : index
    %557 = vector.load %arg6[%c10_202, %c0_203] : memref<16x32xf32, #tpu.memory_space<vmem>>, vector<2x32xf32>
    tpu.vector_store %arg6[%c10_202, %c0_203], %556 {strides = array<i32>} : memref<16x32xf32, #tpu.memory_space<vmem>>, vector<2x32xf32>,
    %558 = vector.extract_strided_slice %435 {offsets = [12, 0], sizes = [2, 128], strides = [1, 1]} : vector<16x128xf32> to vector<2x128xf32>
    %559 = arith.truncf %556 : vector<2x32xf32> to vector<2x32xbf16>
    %cst_204 = arith.constant dense<0.000000e+00> : vector<2x128xf32>
    %560 = tpu.matmul %559, %429, %cst_204 {dimension_numbers = #tpu.dot_dimension_numbers<[1], [0], [0], [1], [0, 0, 1, 1], [], []>} : vector<2x32xbf16>, vector<32x128xbf16>, vector<2x128xf32> -> vector<2x128xf32>
    %561 = arith.addf %558, %560 : vector<2x128xf32>
    %562 = arith.negf %561 : vector<2x128xf32>
    %563 = math.exp %562 : vector<2x128xf32>
    %cst_205 = arith.constant 1.000000e+00 : f32
    %564 = vector.broadcast %cst_205 : f32 to vector<2x128xf32>
    %565 = arith.addf %564, %563 : vector<2x128xf32>
    %566 = arith.divf %564, %565 : vector<2x128xf32>
    %567 = vector.extract_strided_slice %566 {offsets = [0, 0], sizes = [2, 32], strides = [1, 1]} : vector<2x128xf32> to vector<2x32xf32>
    %568 = vector.extract_strided_slice %566 {offsets = [0, 32], sizes = [2, 32], strides = [1, 1]} : vector<2x128xf32> to vector<2x32xf32>
    %569 = vector.extract_strided_slice %566 {offsets = [0, 96], sizes = [2, 32], strides = [1, 1]} : vector<2x128xf32> to vector<2x32xf32>
    %570 = vector.extract_strided_slice %561 {offsets = [0, 64], sizes = [2, 32], strides = [1, 1]} : vector<2x128xf32> to vector<2x32xf32>
    %571 = math.tanh %570 : vector<2x32xf32>
    %572 = arith.mulf %568, %554 : vector<2x32xf32>
    %573 = arith.mulf %567, %571 : vector<2x32xf32>
    %574 = arith.addf %572, %573 : vector<2x32xf32>
    %575 = math.tanh %574 : vector<2x32xf32>
    %576 = arith.mulf %569, %575 : vector<2x32xf32>
    %c12_206 = arith.constant 12 : index
    %c0_207 = arith.constant 0 : index
    %577 = vector.load %arg6[%c12_206, %c0_207] : memref<16x32xf32, #tpu.memory_space<vmem>>, vector<2x32xf32>
    tpu.vector_store %arg6[%c12_206, %c0_207], %576 {strides = array<i32>} : memref<16x32xf32, #tpu.memory_space<vmem>>, vector<2x32xf32>,
    %578 = vector.extract_strided_slice %435 {offsets = [14, 0], sizes = [2, 128], strides = [1, 1]} : vector<16x128xf32> to vector<2x128xf32>
    %579 = arith.truncf %576 : vector<2x32xf32> to vector<2x32xbf16>
    %cst_208 = arith.constant dense<0.000000e+00> : vector<2x128xf32>
    %580 = tpu.matmul %579, %429, %cst_208 {dimension_numbers = #tpu.dot_dimension_numbers<[1], [0], [0], [1], [0, 0, 1, 1], [], []>} : vector<2x32xbf16>, vector<32x128xbf16>, vector<2x128xf32> -> vector<2x128xf32>
    %581 = arith.addf %578, %580 : vector<2x128xf32>
    %582 = arith.negf %581 : vector<2x128xf32>
    %583 = math.exp %582 : vector<2x128xf32>
    %cst_209 = arith.constant 1.000000e+00 : f32
    %584 = vector.broadcast %cst_209 : f32 to vector<2x128xf32>
    %585 = arith.addf %584, %583 : vector<2x128xf32>
    %586 = arith.divf %584, %585 : vector<2x128xf32>
    %587 = vector.extract_strided_slice %586 {offsets = [0, 0], sizes = [2, 32], strides = [1, 1]} : vector<2x128xf32> to vector<2x32xf32>
    %588 = vector.extract_strided_slice %586 {offsets = [0, 32], sizes = [2, 32], strides = [1, 1]} : vector<2x128xf32> to vector<2x32xf32>
    %589 = vector.extract_strided_slice %586 {offsets = [0, 96], sizes = [2, 32], strides = [1, 1]} : vector<2x128xf32> to vector<2x32xf32>
    %590 = vector.extract_strided_slice %581 {offsets = [0, 64], sizes = [2, 32], strides = [1, 1]} : vector<2x128xf32> to vector<2x32xf32>
    %591 = math.tanh %590 : vector<2x32xf32>
    %592 = arith.mulf %588, %574 : vector<2x32xf32>
    %593 = arith.mulf %587, %591 : vector<2x32xf32>
    %594 = arith.addf %592, %593 : vector<2x32xf32>
    %595 = math.tanh %594 : vector<2x32xf32>
    %596 = arith.mulf %589, %595 : vector<2x32xf32>
    %c14_210 = arith.constant 14 : index
    %c0_211 = arith.constant 0 : index
    %597 = vector.load %arg6[%c14_210, %c0_211] : memref<16x32xf32, #tpu.memory_space<vmem>>, vector<2x32xf32>
    tpu.vector_store %arg6[%c14_210, %c0_211], %596 {strides = array<i32>} : memref<16x32xf32, #tpu.memory_space<vmem>>, vector<2x32xf32>,
    %c0_212 = arith.constant 0 : index
    %c0_213 = arith.constant 0 : index
    %598 = vector.load %arg6[%c0_212, %c0_213] : memref<16x32xf32, #tpu.memory_space<vmem>>, vector<16x32xf32>
    %c10_214 = arith.constant 10 : index
    %c0_215 = arith.constant 0 : index
    %c0_216 = arith.constant 0 : index
    %599 = vector.load %arg3[%c10_214, %c0_215, %c0_216] : memref<13x64x128xbf16, #tpu.memory_space<vmem>>, vector<1x32x128xbf16>
    %600 = vector.shape_cast %599 : vector<1x32x128xbf16> to vector<32x128xbf16>
    %c11_217 = arith.constant 11 : index
    %c0_218 = arith.constant 0 : index
    %c0_219 = arith.constant 0 : index
    %601 = vector.load %arg3[%c11_217, %c0_218, %c0_219] : memref<13x64x128xbf16, #tpu.memory_space<vmem>>, vector<1x32x128xbf16>
    %602 = vector.shape_cast %601 : vector<1x32x128xbf16> to vector<32x128xbf16>
    %603 = arith.truncf %598 : vector<16x32xf32> to vector<16x32xbf16>
    %cst_220 = arith.constant dense<0.000000e+00> : vector<16x128xf32>
    %604 = tpu.matmul %603, %600, %cst_220 {dimension_numbers = #tpu.dot_dimension_numbers<[1], [0], [0], [1], [0, 0, 1, 1], [], []>} : vector<16x32xbf16>, vector<32x128xbf16>, vector<16x128xf32> -> vector<16x128xf32>
    %c19 = arith.constant 19 : index
    %c0_221 = arith.constant 0 : index
    %c0_222 = arith.constant 0 : index
    %605 = vector.load %arg4[%c19, %c0_221, %c0_222] : memref<21x1x128xf32, #tpu.memory_space<vmem>>, vector<1x1x128xf32>
    %606 = vector.shape_cast %605 : vector<1x1x128xf32> to vector<1x128xf32>
    %607 = vector.broadcast %606 : vector<1x128xf32> to vector<16x128xf32>
    %608 = arith.addf %604, %607 : vector<16x128xf32>
    %cst_223 = arith.constant 0.000000e+00 : f32
    %609 = vector.broadcast %cst_223 : f32 to vector<2x32xf32>
    %cst_224 = arith.constant 0.000000e+00 : f32
    %610 = vector.broadcast %cst_224 : f32 to vector<2x32xf32>
    %611 = vector.extract_strided_slice %608 {offsets = [0, 0], sizes = [2, 128], strides = [1, 1]} : vector<16x128xf32> to vector<2x128xf32>
    %612 = arith.truncf %609 : vector<2x32xf32> to vector<2x32xbf16>
    %cst_225 = arith.constant dense<0.000000e+00> : vector<2x128xf32>
    %613 = tpu.matmul %612, %602, %cst_225 {dimension_numbers = #tpu.dot_dimension_numbers<[1], [0], [0], [1], [0, 0, 1, 1], [], []>} : vector<2x32xbf16>, vector<32x128xbf16>, vector<2x128xf32> -> vector<2x128xf32>
    %614 = arith.addf %611, %613 : vector<2x128xf32>
    %615 = arith.negf %614 : vector<2x128xf32>
    %616 = math.exp %615 : vector<2x128xf32>
    %cst_226 = arith.constant 1.000000e+00 : f32
    %617 = vector.broadcast %cst_226 : f32 to vector<2x128xf32>
    %618 = arith.addf %617, %616 : vector<2x128xf32>
    %619 = arith.divf %617, %618 : vector<2x128xf32>
    %620 = vector.extract_strided_slice %619 {offsets = [0, 0], sizes = [2, 32], strides = [1, 1]} : vector<2x128xf32> to vector<2x32xf32>
    %621 = vector.extract_strided_slice %619 {offsets = [0, 32], sizes = [2, 32], strides = [1, 1]} : vector<2x128xf32> to vector<2x32xf32>
    %622 = vector.extract_strided_slice %619 {offsets = [0, 96], sizes = [2, 32], strides = [1, 1]} : vector<2x128xf32> to vector<2x32xf32>
    %623 = vector.extract_strided_slice %614 {offsets = [0, 64], sizes = [2, 32], strides = [1, 1]} : vector<2x128xf32> to vector<2x32xf32>
    %624 = math.tanh %623 : vector<2x32xf32>
    %625 = arith.mulf %621, %610 : vector<2x32xf32>
    %626 = arith.mulf %620, %624 : vector<2x32xf32>
    %627 = arith.addf %625, %626 : vector<2x32xf32>
    %628 = math.tanh %627 : vector<2x32xf32>
    %629 = arith.mulf %622, %628 : vector<2x32xf32>
    %c0_227 = arith.constant 0 : index
    %c0_228 = arith.constant 0 : index
    %630 = vector.load %arg7[%c0_227, %c0_228] : memref<16x32xf32, #tpu.memory_space<vmem>>, vector<2x32xf32>
    tpu.vector_store %arg7[%c0_227, %c0_228], %629 {strides = array<i32>} : memref<16x32xf32, #tpu.memory_space<vmem>>, vector<2x32xf32>,
    %631 = vector.extract_strided_slice %608 {offsets = [2, 0], sizes = [2, 128], strides = [1, 1]} : vector<16x128xf32> to vector<2x128xf32>
    %632 = arith.truncf %629 : vector<2x32xf32> to vector<2x32xbf16>
    %cst_229 = arith.constant dense<0.000000e+00> : vector<2x128xf32>
    %633 = tpu.matmul %632, %602, %cst_229 {dimension_numbers = #tpu.dot_dimension_numbers<[1], [0], [0], [1], [0, 0, 1, 1], [], []>} : vector<2x32xbf16>, vector<32x128xbf16>, vector<2x128xf32> -> vector<2x128xf32>
    %634 = arith.addf %631, %633 : vector<2x128xf32>
    %635 = arith.negf %634 : vector<2x128xf32>
    %636 = math.exp %635 : vector<2x128xf32>
    %cst_230 = arith.constant 1.000000e+00 : f32
    %637 = vector.broadcast %cst_230 : f32 to vector<2x128xf32>
    %638 = arith.addf %637, %636 : vector<2x128xf32>
    %639 = arith.divf %637, %638 : vector<2x128xf32>
    %640 = vector.extract_strided_slice %639 {offsets = [0, 0], sizes = [2, 32], strides = [1, 1]} : vector<2x128xf32> to vector<2x32xf32>
    %641 = vector.extract_strided_slice %639 {offsets = [0, 32], sizes = [2, 32], strides = [1, 1]} : vector<2x128xf32> to vector<2x32xf32>
    %642 = vector.extract_strided_slice %639 {offsets = [0, 96], sizes = [2, 32], strides = [1, 1]} : vector<2x128xf32> to vector<2x32xf32>
    %643 = vector.extract_strided_slice %634 {offsets = [0, 64], sizes = [2, 32], strides = [1, 1]} : vector<2x128xf32> to vector<2x32xf32>
    %644 = math.tanh %643 : vector<2x32xf32>
    %645 = arith.mulf %641, %627 : vector<2x32xf32>
    %646 = arith.mulf %640, %644 : vector<2x32xf32>
    %647 = arith.addf %645, %646 : vector<2x32xf32>
    %648 = math.tanh %647 : vector<2x32xf32>
    %649 = arith.mulf %642, %648 : vector<2x32xf32>
    %c2_231 = arith.constant 2 : index
    %c0_232 = arith.constant 0 : index
    %650 = vector.load %arg7[%c2_231, %c0_232] : memref<16x32xf32, #tpu.memory_space<vmem>>, vector<2x32xf32>
    tpu.vector_store %arg7[%c2_231, %c0_232], %649 {strides = array<i32>} : memref<16x32xf32, #tpu.memory_space<vmem>>, vector<2x32xf32>,
    %651 = vector.extract_strided_slice %608 {offsets = [4, 0], sizes = [2, 128], strides = [1, 1]} : vector<16x128xf32> to vector<2x128xf32>
    %652 = arith.truncf %649 : vector<2x32xf32> to vector<2x32xbf16>
    %cst_233 = arith.constant dense<0.000000e+00> : vector<2x128xf32>
    %653 = tpu.matmul %652, %602, %cst_233 {dimension_numbers = #tpu.dot_dimension_numbers<[1], [0], [0], [1], [0, 0, 1, 1], [], []>} : vector<2x32xbf16>, vector<32x128xbf16>, vector<2x128xf32> -> vector<2x128xf32>
    %654 = arith.addf %651, %653 : vector<2x128xf32>
    %655 = arith.negf %654 : vector<2x128xf32>
    %656 = math.exp %655 : vector<2x128xf32>
    %cst_234 = arith.constant 1.000000e+00 : f32
    %657 = vector.broadcast %cst_234 : f32 to vector<2x128xf32>
    %658 = arith.addf %657, %656 : vector<2x128xf32>
    %659 = arith.divf %657, %658 : vector<2x128xf32>
    %660 = vector.extract_strided_slice %659 {offsets = [0, 0], sizes = [2, 32], strides = [1, 1]} : vector<2x128xf32> to vector<2x32xf32>
    %661 = vector.extract_strided_slice %659 {offsets = [0, 32], sizes = [2, 32], strides = [1, 1]} : vector<2x128xf32> to vector<2x32xf32>
    %662 = vector.extract_strided_slice %659 {offsets = [0, 96], sizes = [2, 32], strides = [1, 1]} : vector<2x128xf32> to vector<2x32xf32>
    %663 = vector.extract_strided_slice %654 {offsets = [0, 64], sizes = [2, 32], strides = [1, 1]} : vector<2x128xf32> to vector<2x32xf32>
    %664 = math.tanh %663 : vector<2x32xf32>
    %665 = arith.mulf %661, %647 : vector<2x32xf32>
    %666 = arith.mulf %660, %664 : vector<2x32xf32>
    %667 = arith.addf %665, %666 : vector<2x32xf32>
    %668 = math.tanh %667 : vector<2x32xf32>
    %669 = arith.mulf %662, %668 : vector<2x32xf32>
    %c4_235 = arith.constant 4 : index
    %c0_236 = arith.constant 0 : index
    %670 = vector.load %arg7[%c4_235, %c0_236] : memref<16x32xf32, #tpu.memory_space<vmem>>, vector<2x32xf32>
    tpu.vector_store %arg7[%c4_235, %c0_236], %669 {strides = array<i32>} : memref<16x32xf32, #tpu.memory_space<vmem>>, vector<2x32xf32>,
    %671 = vector.extract_strided_slice %608 {offsets = [6, 0], sizes = [2, 128], strides = [1, 1]} : vector<16x128xf32> to vector<2x128xf32>
    %672 = arith.truncf %669 : vector<2x32xf32> to vector<2x32xbf16>
    %cst_237 = arith.constant dense<0.000000e+00> : vector<2x128xf32>
    %673 = tpu.matmul %672, %602, %cst_237 {dimension_numbers = #tpu.dot_dimension_numbers<[1], [0], [0], [1], [0, 0, 1, 1], [], []>} : vector<2x32xbf16>, vector<32x128xbf16>, vector<2x128xf32> -> vector<2x128xf32>
    %674 = arith.addf %671, %673 : vector<2x128xf32>
    %675 = arith.negf %674 : vector<2x128xf32>
    %676 = math.exp %675 : vector<2x128xf32>
    %cst_238 = arith.constant 1.000000e+00 : f32
    %677 = vector.broadcast %cst_238 : f32 to vector<2x128xf32>
    %678 = arith.addf %677, %676 : vector<2x128xf32>
    %679 = arith.divf %677, %678 : vector<2x128xf32>
    %680 = vector.extract_strided_slice %679 {offsets = [0, 0], sizes = [2, 32], strides = [1, 1]} : vector<2x128xf32> to vector<2x32xf32>
    %681 = vector.extract_strided_slice %679 {offsets = [0, 32], sizes = [2, 32], strides = [1, 1]} : vector<2x128xf32> to vector<2x32xf32>
    %682 = vector.extract_strided_slice %679 {offsets = [0, 96], sizes = [2, 32], strides = [1, 1]} : vector<2x128xf32> to vector<2x32xf32>
    %683 = vector.extract_strided_slice %674 {offsets = [0, 64], sizes = [2, 32], strides = [1, 1]} : vector<2x128xf32> to vector<2x32xf32>
    %684 = math.tanh %683 : vector<2x32xf32>
    %685 = arith.mulf %681, %667 : vector<2x32xf32>
    %686 = arith.mulf %680, %684 : vector<2x32xf32>
    %687 = arith.addf %685, %686 : vector<2x32xf32>
    %688 = math.tanh %687 : vector<2x32xf32>
    %689 = arith.mulf %682, %688 : vector<2x32xf32>
    %c6_239 = arith.constant 6 : index
    %c0_240 = arith.constant 0 : index
    %690 = vector.load %arg7[%c6_239, %c0_240] : memref<16x32xf32, #tpu.memory_space<vmem>>, vector<2x32xf32>
    tpu.vector_store %arg7[%c6_239, %c0_240], %689 {strides = array<i32>} : memref<16x32xf32, #tpu.memory_space<vmem>>, vector<2x32xf32>,
    %691 = vector.extract_strided_slice %608 {offsets = [8, 0], sizes = [2, 128], strides = [1, 1]} : vector<16x128xf32> to vector<2x128xf32>
    %692 = arith.truncf %689 : vector<2x32xf32> to vector<2x32xbf16>
    %cst_241 = arith.constant dense<0.000000e+00> : vector<2x128xf32>
    %693 = tpu.matmul %692, %602, %cst_241 {dimension_numbers = #tpu.dot_dimension_numbers<[1], [0], [0], [1], [0, 0, 1, 1], [], []>} : vector<2x32xbf16>, vector<32x128xbf16>, vector<2x128xf32> -> vector<2x128xf32>
    %694 = arith.addf %691, %693 : vector<2x128xf32>
    %695 = arith.negf %694 : vector<2x128xf32>
    %696 = math.exp %695 : vector<2x128xf32>
    %cst_242 = arith.constant 1.000000e+00 : f32
    %697 = vector.broadcast %cst_242 : f32 to vector<2x128xf32>
    %698 = arith.addf %697, %696 : vector<2x128xf32>
    %699 = arith.divf %697, %698 : vector<2x128xf32>
    %700 = vector.extract_strided_slice %699 {offsets = [0, 0], sizes = [2, 32], strides = [1, 1]} : vector<2x128xf32> to vector<2x32xf32>
    %701 = vector.extract_strided_slice %699 {offsets = [0, 32], sizes = [2, 32], strides = [1, 1]} : vector<2x128xf32> to vector<2x32xf32>
    %702 = vector.extract_strided_slice %699 {offsets = [0, 96], sizes = [2, 32], strides = [1, 1]} : vector<2x128xf32> to vector<2x32xf32>
    %703 = vector.extract_strided_slice %694 {offsets = [0, 64], sizes = [2, 32], strides = [1, 1]} : vector<2x128xf32> to vector<2x32xf32>
    %704 = math.tanh %703 : vector<2x32xf32>
    %705 = arith.mulf %701, %687 : vector<2x32xf32>
    %706 = arith.mulf %700, %704 : vector<2x32xf32>
    %707 = arith.addf %705, %706 : vector<2x32xf32>
    %708 = math.tanh %707 : vector<2x32xf32>
    %709 = arith.mulf %702, %708 : vector<2x32xf32>
    %c8_243 = arith.constant 8 : index
    %c0_244 = arith.constant 0 : index
    %710 = vector.load %arg7[%c8_243, %c0_244] : memref<16x32xf32, #tpu.memory_space<vmem>>, vector<2x32xf32>
    tpu.vector_store %arg7[%c8_243, %c0_244], %709 {strides = array<i32>} : memref<16x32xf32, #tpu.memory_space<vmem>>, vector<2x32xf32>,
    %711 = vector.extract_strided_slice %608 {offsets = [10, 0], sizes = [2, 128], strides = [1, 1]} : vector<16x128xf32> to vector<2x128xf32>
    %712 = arith.truncf %709 : vector<2x32xf32> to vector<2x32xbf16>
    %cst_245 = arith.constant dense<0.000000e+00> : vector<2x128xf32>
    %713 = tpu.matmul %712, %602, %cst_245 {dimension_numbers = #tpu.dot_dimension_numbers<[1], [0], [0], [1], [0, 0, 1, 1], [], []>} : vector<2x32xbf16>, vector<32x128xbf16>, vector<2x128xf32> -> vector<2x128xf32>
    %714 = arith.addf %711, %713 : vector<2x128xf32>
    %715 = arith.negf %714 : vector<2x128xf32>
    %716 = math.exp %715 : vector<2x128xf32>
    %cst_246 = arith.constant 1.000000e+00 : f32
    %717 = vector.broadcast %cst_246 : f32 to vector<2x128xf32>
    %718 = arith.addf %717, %716 : vector<2x128xf32>
    %719 = arith.divf %717, %718 : vector<2x128xf32>
    %720 = vector.extract_strided_slice %719 {offsets = [0, 0], sizes = [2, 32], strides = [1, 1]} : vector<2x128xf32> to vector<2x32xf32>
    %721 = vector.extract_strided_slice %719 {offsets = [0, 32], sizes = [2, 32], strides = [1, 1]} : vector<2x128xf32> to vector<2x32xf32>
    %722 = vector.extract_strided_slice %719 {offsets = [0, 96], sizes = [2, 32], strides = [1, 1]} : vector<2x128xf32> to vector<2x32xf32>
    %723 = vector.extract_strided_slice %714 {offsets = [0, 64], sizes = [2, 32], strides = [1, 1]} : vector<2x128xf32> to vector<2x32xf32>
    %724 = math.tanh %723 : vector<2x32xf32>
    %725 = arith.mulf %721, %707 : vector<2x32xf32>
    %726 = arith.mulf %720, %724 : vector<2x32xf32>
    %727 = arith.addf %725, %726 : vector<2x32xf32>
    %728 = math.tanh %727 : vector<2x32xf32>
    %729 = arith.mulf %722, %728 : vector<2x32xf32>
    %c10_247 = arith.constant 10 : index
    %c0_248 = arith.constant 0 : index
    %730 = vector.load %arg7[%c10_247, %c0_248] : memref<16x32xf32, #tpu.memory_space<vmem>>, vector<2x32xf32>
    tpu.vector_store %arg7[%c10_247, %c0_248], %729 {strides = array<i32>} : memref<16x32xf32, #tpu.memory_space<vmem>>, vector<2x32xf32>,
    %731 = vector.extract_strided_slice %608 {offsets = [12, 0], sizes = [2, 128], strides = [1, 1]} : vector<16x128xf32> to vector<2x128xf32>
    %732 = arith.truncf %729 : vector<2x32xf32> to vector<2x32xbf16>
    %cst_249 = arith.constant dense<0.000000e+00> : vector<2x128xf32>
    %733 = tpu.matmul %732, %602, %cst_249 {dimension_numbers = #tpu.dot_dimension_numbers<[1], [0], [0], [1], [0, 0, 1, 1], [], []>} : vector<2x32xbf16>, vector<32x128xbf16>, vector<2x128xf32> -> vector<2x128xf32>
    %734 = arith.addf %731, %733 : vector<2x128xf32>
    %735 = arith.negf %734 : vector<2x128xf32>
    %736 = math.exp %735 : vector<2x128xf32>
    %cst_250 = arith.constant 1.000000e+00 : f32
    %737 = vector.broadcast %cst_250 : f32 to vector<2x128xf32>
    %738 = arith.addf %737, %736 : vector<2x128xf32>
    %739 = arith.divf %737, %738 : vector<2x128xf32>
    %740 = vector.extract_strided_slice %739 {offsets = [0, 0], sizes = [2, 32], strides = [1, 1]} : vector<2x128xf32> to vector<2x32xf32>
    %741 = vector.extract_strided_slice %739 {offsets = [0, 32], sizes = [2, 32], strides = [1, 1]} : vector<2x128xf32> to vector<2x32xf32>
    %742 = vector.extract_strided_slice %739 {offsets = [0, 96], sizes = [2, 32], strides = [1, 1]} : vector<2x128xf32> to vector<2x32xf32>
    %743 = vector.extract_strided_slice %734 {offsets = [0, 64], sizes = [2, 32], strides = [1, 1]} : vector<2x128xf32> to vector<2x32xf32>
    %744 = math.tanh %743 : vector<2x32xf32>
    %745 = arith.mulf %741, %727 : vector<2x32xf32>
    %746 = arith.mulf %740, %744 : vector<2x32xf32>
    %747 = arith.addf %745, %746 : vector<2x32xf32>
    %748 = math.tanh %747 : vector<2x32xf32>
    %749 = arith.mulf %742, %748 : vector<2x32xf32>
    %c12_251 = arith.constant 12 : index
    %c0_252 = arith.constant 0 : index
    %750 = vector.load %arg7[%c12_251, %c0_252] : memref<16x32xf32, #tpu.memory_space<vmem>>, vector<2x32xf32>
    tpu.vector_store %arg7[%c12_251, %c0_252], %749 {strides = array<i32>} : memref<16x32xf32, #tpu.memory_space<vmem>>, vector<2x32xf32>,
    %751 = vector.extract_strided_slice %608 {offsets = [14, 0], sizes = [2, 128], strides = [1, 1]} : vector<16x128xf32> to vector<2x128xf32>
    %752 = arith.truncf %749 : vector<2x32xf32> to vector<2x32xbf16>
    %cst_253 = arith.constant dense<0.000000e+00> : vector<2x128xf32>
    %753 = tpu.matmul %752, %602, %cst_253 {dimension_numbers = #tpu.dot_dimension_numbers<[1], [0], [0], [1], [0, 0, 1, 1], [], []>} : vector<2x32xbf16>, vector<32x128xbf16>, vector<2x128xf32> -> vector<2x128xf32>
    %754 = arith.addf %751, %753 : vector<2x128xf32>
    %755 = arith.negf %754 : vector<2x128xf32>
    %756 = math.exp %755 : vector<2x128xf32>
    %cst_254 = arith.constant 1.000000e+00 : f32
    %757 = vector.broadcast %cst_254 : f32 to vector<2x128xf32>
    %758 = arith.addf %757, %756 : vector<2x128xf32>
    %759 = arith.divf %757, %758 : vector<2x128xf32>
    %760 = vector.extract_strided_slice %759 {offsets = [0, 0], sizes = [2, 32], strides = [1, 1]} : vector<2x128xf32> to vector<2x32xf32>
    %761 = vector.extract_strided_slice %759 {offsets = [0, 32], sizes = [2, 32], strides = [1, 1]} : vector<2x128xf32> to vector<2x32xf32>
    %762 = vector.extract_strided_slice %759 {offsets = [0, 96], sizes = [2, 32], strides = [1, 1]} : vector<2x128xf32> to vector<2x32xf32>
    %763 = vector.extract_strided_slice %754 {offsets = [0, 64], sizes = [2, 32], strides = [1, 1]} : vector<2x128xf32> to vector<2x32xf32>
    %764 = math.tanh %763 : vector<2x32xf32>
    %765 = arith.mulf %761, %747 : vector<2x32xf32>
    %766 = arith.mulf %760, %764 : vector<2x32xf32>
    %767 = arith.addf %765, %766 : vector<2x32xf32>
    %768 = math.tanh %767 : vector<2x32xf32>
    %769 = arith.mulf %762, %768 : vector<2x32xf32>
    %c14_255 = arith.constant 14 : index
    %c0_256 = arith.constant 0 : index
    %770 = vector.load %arg7[%c14_255, %c0_256] : memref<16x32xf32, #tpu.memory_space<vmem>>, vector<2x32xf32>
    tpu.vector_store %arg7[%c14_255, %c0_256], %769 {strides = array<i32>} : memref<16x32xf32, #tpu.memory_space<vmem>>, vector<2x32xf32>,
    %c0_257 = arith.constant 0 : index
    %c0_258 = arith.constant 0 : index
    %771 = vector.load %arg7[%c0_257, %c0_258] : memref<16x32xf32, #tpu.memory_space<vmem>>, vector<16x32xf32>
    %c12_259 = arith.constant 12 : index
    %c0_260 = arith.constant 0 : index
    %c0_261 = arith.constant 0 : index
    %772 = vector.load %arg3[%c12_259, %c0_260, %c0_261] : memref<13x64x128xbf16, #tpu.memory_space<vmem>>, vector<1x32x128xbf16>
    %773 = vector.shape_cast %772 : vector<1x32x128xbf16> to vector<32x128xbf16>
    %774 = arith.truncf %771 : vector<16x32xf32> to vector<16x32xbf16>
    %cst_262 = arith.constant dense<0.000000e+00> : vector<16x128xf32>
    %775 = tpu.matmul %774, %773, %cst_262 {dimension_numbers = #tpu.dot_dimension_numbers<[1], [0], [0], [1], [0, 0, 1, 1], [], []>} : vector<16x32xbf16>, vector<32x128xbf16>, vector<16x128xf32> -> vector<16x128xf32>
    %c20 = arith.constant 20 : index
    %c0_263 = arith.constant 0 : index
    %c0_264 = arith.constant 0 : index
    %776 = vector.load %arg4[%c20, %c0_263, %c0_264] : memref<21x1x128xf32, #tpu.memory_space<vmem>>, vector<1x1x128xf32>
    %777 = vector.shape_cast %776 : vector<1x1x128xf32> to vector<1x128xf32>
    %778 = vector.broadcast %777 : vector<1x128xf32> to vector<16x128xf32>
    %779 = arith.addf %775, %778 : vector<16x128xf32>
    %c0_265 = arith.constant 0 : index
    %c0_266 = arith.constant 0 : index
    %780 = vector.load %arg5[%c0_265, %c0_266] : memref<16x128xf32, #tpu.memory_space<vmem>>, vector<16x128xf32>
    tpu.vector_store %arg5[%c0_265, %c0_266], %779 {strides = array<i32>} : memref<16x128xf32, #tpu.memory_space<vmem>>, vector<16x128xf32>,
    return
  }
  func.func @transform_0(%arg0: i32) -> (i32, i32) {
    %c0_i32 = arith.constant 0 : i32
    %c0_i32_0 = arith.constant 0 : i32
    %c0_i32_1 = arith.constant 0 : i32
    return %c0_i32, %c0_i32_0 : i32, i32
  }
  func.func @transform_1(%arg0: i32) -> (i32, i32) {
    %c0_i32 = arith.constant 0 : i32
    %c0_i32_0 = arith.constant 0 : i32
    %c0_i32_1 = arith.constant 0 : i32
    return %c0_i32, %c0_i32_0 : i32, i32
  }
  func.func @transform_2(%arg0: i32) -> (i32, i32, i32) {
    %c0_i32 = arith.constant 0 : i32
    %c0_i32_0 = arith.constant 0 : i32
    %c0_i32_1 = arith.constant 0 : i32
    %c0_i32_2 = arith.constant 0 : i32
    return %c0_i32, %c0_i32_0, %c0_i32_1 : i32, i32, i32
  }
  func.func @transform_3(%arg0: i32) -> (i32, i32, i32) {
    %c0_i32 = arith.constant 0 : i32
    %c0_i32_0 = arith.constant 0 : i32
    %c0_i32_1 = arith.constant 0 : i32
    %c0_i32_2 = arith.constant 0 : i32
    return %c0_i32, %c0_i32_0, %c0_i32_1 : i32, i32, i32
  }
  func.func @transform_4(%arg0: i32) -> (i32, i32) {
    %c0_i32 = arith.constant 0 : i32
    %c0_i32_0 = arith.constant 0 : i32
    %c0_i32_1 = arith.constant 0 : i32
    return %c0_i32, %c0_i32_0 : i32, i32
  }
}

</mosaic_0001>

<llo_original>
// kernel: squeeze.3
$region0: #{squeeze.3}
  %s0 = inlined_call_operand.vmem [shape: f32[16], index: 0, kind: input, shape index: {}]
  %s1 = inlined_call_operand.vmem [shape: f32[8,2], index: 1, kind: output, shape index: {}]
  $region1: #{squeeze.3} parent=0
    #allocation0 [shape = 'u8[4096]{0}', space=vmem, size = 0x1000, scoped, tag = 'scoped mem for input reshape']
    %s3 = sshllo.u32 0, 1
    %v4 = vld [vmem:[%s0] sm:%s3]
    %5 = vst [vmem:[#allocation0] sm:%s3] %v4
    %v6 = vld [vmem:[#allocation0] sm:$0x1]
    %vm7 = vcmask 15360
    %8 = vst.msk [vmem:[%s1] sm:$0x1] %vm7, %v6
    %v9 = vld [vmem:[#allocation0] sm:$0x1]
    %10 = vrot.lane.b32.xlu0 %v9, 126
    %v11 = vpop.permute.xlu0 %10
    %vm12 = vcmask 15360
    %s13 = scalar_lea.vmem %s1, 1
    %14 = vst.msk [vmem:[%s13] sm:$0x1] %vm12, %v11
    %v15 = vld [vmem:[#allocation0] sm:$0x1]
    %16 = vrot.lane.b32.xlu0 %v15, 124
    %v17 = vpop.permute.xlu0 %16
    %vm18 = vcmask 15360
    %s19 = scalar_lea.vmem %s1, 2
    %20 = vst.msk [vmem:[%s19] sm:$0x1] %vm18, %v17
    %v21 = vld [vmem:[#allocation0] sm:$0x1]
    %22 = vrot.lane.b32.xlu0 %v21, 122
    %v23 = vpop.permute.xlu0 %22
    %vm24 = vcmask 15360
    %s25 = scalar_lea.vmem %s1, 3
    %26 = vst.msk [vmem:[%s25] sm:$0x1] %vm24, %v23
    %v27 = vld [vmem:[#allocation0] sm:$0x1]
    %28 = vrot.lane.b32.xlu0 %v27, 120
    %v29 = vpop.permute.xlu0 %28
    %vm30 = vcmask 15360
    %s31 = scalar_lea.vmem %s1, 4
    %32 = vst.msk [vmem:[%s31] sm:$0x1] %vm30, %v29
    %v33 = vld [vmem:[#allocation0] sm:$0x1]
    %34 = vrot.lane.b32.xlu0 %v33, 118
    %v35 = vpop.permute.xlu0 %34
    %vm36 = vcmask 15360
    %s37 = scalar_lea.vmem %s1, 5
    %38 = vst.msk [vmem:[%s37] sm:$0x1] %vm36, %v35
    %v39 = vld [vmem:[#allocation0] sm:$0x1]
    %40 = vrot.lane.b32.xlu0 %v39, 116
    %v41 = vpop.permute.xlu0 %40
    %vm42 = vcmask 15360
    %s43 = scalar_lea.vmem %s1, 6
    %44 = vst.msk [vmem:[%s43] sm:$0x1] %vm42, %v41
    %v45 = vld [vmem:[#allocation0] sm:$0x1]
    %46 = vrot.lane.b32.xlu0 %v45, 114
    %v47 = vpop.permute.xlu0 %46
    %vm48 = vcmask 15360
    %s49 = scalar_lea.vmem %s1, 7
    %50 = vst.msk [vmem:[%s49] sm:$0x1] %vm48, %v47

// kernel: bert_sum_lstm_forward.1
$region0: #{bert_sum_lstm_forward.1}
  #allocation0 [shape = 'u32[]', space=smem, size = 0x4, offset = 0x4, fixed_abs, tag = 'smem constant byte address 0x4 - core index']
  #allocation1 [shape = 'u32[144,128]{1,0:T(1,128)}', space=vmem, size = 0x12000, scoped, tag = 'internal scratch']
  #allocation2 [shape = 'f32[16,32]{1,0:T(8,128)}', space=vmem, size = 0x2000, scoped, tag = 'scratch operand']
  #allocation3 [shape = 'f32[16,32]{1,0:T(8,128)}', space=vmem, size = 0x2000, scoped, tag = 'scratch operand']
  %s0 = inlined_call_operand.vmem [shape: f32[16,32], index: 0, kind: input, shape index: {}]
  %s1 = inlined_call_operand.vmem [shape: f32[16,16], index: 1, kind: input, shape index: {}]
  %s2 = inlined_call_operand.vmem [shape: bf16[13,64,128], index: 2, kind: input, shape index: {}]
  %s3 = inlined_call_operand.vmem [shape: f32[21,1,128], index: 3, kind: input, shape index: {}]
  %s4 = inlined_call_operand.vmem [shape: f32[16,128], index: 4, kind: output, shape index: {}]
  %s5 = sld [smem:[#allocation0]]
  $region26: #{bert_sum_lstm_forward.1} parent=0
    _
  %s7 = ssub.s32 1, %s5
  %s8 = scalar_select 0, %s7, %s5
  // Predicated region
  $region2: #{bert_sum_lstm_forward.1} parent=0 // pred_check
    _
  $region3: #{bert_sum_lstm_forward.1} parent=0 // pred_check_branch
    %10 = sbr.rel (0) target = $region5
  $region4: #{bert_sum_lstm_forward.1} parent=0 // pred_region
    _
  $region5: #{bert_sum_lstm_forward.1} parent=0 // pred_fallthru
    _
  // Predicated region
  $region6: #{bert_sum_lstm_forward.1} parent=0 // pred_check
    _
  $region7: #{bert_sum_lstm_forward.1} parent=0 // pred_check_branch
    %12 = sbr.rel (0) target = $region9
  $region8: #{bert_sum_lstm_forward.1} parent=0 // pred_region
    _
  $region9: #{bert_sum_lstm_forward.1} parent=0 // pred_fallthru
    _
  // Predicated region
  $region10: #{bert_sum_lstm_forward.1} parent=0 // pred_check
    _
  $region11: #{bert_sum_lstm_forward.1} parent=0 // pred_check_branch
    %14 = sbr.rel (0) target = $region13
  $region12: #{bert_sum_lstm_forward.1} parent=0 // pred_region
    _
  $region13: #{bert_sum_lstm_forward.1} parent=0 // pred_fallthru
    _
  // Predicated region
  $region14: #{bert_sum_lstm_forward.1} parent=0 // pred_check
    _
  $region15: #{bert_sum_lstm_forward.1} parent=0 // pred_check_branch
    %16 = sbr.rel (0) target = $region17
  $region16: #{bert_sum_lstm_forward.1} parent=0 // pred_region
    _
  $region17: #{bert_sum_lstm_forward.1} parent=0 // pred_fallthru
    _
  %v18 = vld [vmem:[%s0] sm:$0xff]
  %v19 = vld [vmem:[%s0 + $0x8] sm:$0xff]
  %v20 = vld [vmem:[%s3] sm:$0x1]
  %s21 = scalar_lea.vmem %s3, 1
  %v22 = vld [vmem:[%s21] sm:$0x1]
  %vm23 = vcmask 261120
  %v24 = vsel %vm23, %v18, 0.0
  %25 = vadd.xlane.f32.xlu0 %v24
  %v26 = vpop.xlane.xlu0 %25
  %v27 = vsel %vm23, %v19, 0.0
  %28 = vadd.xlane.f32.xlu0 %v27
  %v29 = vpop.xlane.xlu0 %28
  %v30 = vrcp.pop 32.0
  %v31 = vmul.f32 %v26, %v30
  %v32 = vmul.f32 %v29, %v30
  %v33 = vsub.f32 %v18, %v31
  %v34 = vsub.f32 %v19, %v32
  %v35 = vmul.f32 %v33, %v33
  %v36 = vmul.f32 %v34, %v34
  %v37 = vsel %vm23, %v35, 0.0
  %38 = vadd.xlane.f32.xlu0 %v37
  %v39 = vpop.xlane.xlu0 %38
  %v40 = vsel %vm23, %v36, 0.0
  %41 = vadd.xlane.f32.xlu0 %v40
  %v42 = vpop.xlane.xlu0 %41
  %v43 = vmul.f32 %v39, %v30
  %v44 = vmul.f32 %v42, %v30
  %v45 = vadd.f32 %v43, 1e-12
  %v46 = vadd.f32 %v44, 1e-12
  %v47 = vrsqrt.pop %v45
  %v48 = vrsqrt.pop %v46
  %v49 = vmul.f32 %v33, %v47
  %v50 = vmul.f32 %v34, %v48
  %v52 = vlaneseq
  %v53 = vshrl.u32 %v52, 7
  %v54 = vsub.s32 0, %v53
  %v55 = vrot.slane %v20, %v54
  %v57 = vmul.f32 %v49, %v55
  %v58 = vmul.f32 %v50, %v55
  %v60 = vlaneseq
  %v61 = vshrl.u32 %v60, 7
  %v62 = vsub.s32 0, %v61
  %v63 = vrot.slane %v22, %v62
  %v65 = vadd.f32 %v57, %v63
  %v66 = vadd.f32 %v58, %v63
  %v67 = vld [vmem:[%s1] sm:$0xff]
  %v68 = vld [vmem:[%s1 + $0x8] sm:$0xff]
  %v69 = vld [vmem:[%s2] sm:$0xf]
  %v70 = vld [vmem:[%s2 + $0x4] sm:$0xf]
  %v71 = vld [vmem:[%s2 + $0x8] sm:$0xf]
  %v72 = vld [vmem:[%s2 + $0xc] sm:$0xf]
  %v73 = vpack.c.bf16 %v66, %v65
  %s74 = scalar_lea.vmem %s3, 2
  %v75 = vld [vmem:[%s74] sm:$0x1]
  %v77 = vlaneseq
  %v78 = vshrl.u32 %v77, 7
  %v79 = vsub.s32 0, %v78
  %v80 = vrot.slane %v75, %v79
  %v86 = vunpack.c.l.b16 %v69
  %v87 = vunpack.c.l.b16 %v70
  %v88 = vunpack.c.l.b16 %v71
  %v89 = vunpack.c.l.b16 %v72
  %v90 = vpack.c.b16 %v87, %v86
  %v91 = vpack.c.b16 %v89, %v88
  %v95 = vsel %vm23, %v73, 0
  %97 = vmatprep.subr.bf16.mxu0 0
  %98 = vmatpush1.bf16.msra.mxu0 %v90
  %99 = vmatprep.subr.bf16.mxu0 0
  %100 = vmatpush1.bf16.msra.mxu0 %v91
  %101 = vmatprep.subr.bf16.mxu0 0
  %102 = vmatpush1.bf16.msra.mxu0 0
  %103 = vmatprep.subr.bf16.mxu0 0
  %104 = vmatpush1.bf16.msra.mxu0 0
  %105 = vmatprep.subr.bf16.mxu0 0
  %106 = vmatpush1.bf16.msra.mxu0 0
  %107 = vmatprep.subr.bf16.mxu0 0
  %108 = vmatpush1.bf16.msra.mxu0 0
  %109 = vmatprep.subr.bf16.mxu0 0
  %110 = vmatpush1.bf16.msra.mxu0 0
  %111 = vmatprep.subr.bf16.mxu0 0
  %112 = vmatpush1.bf16.msra.mxu0 0
  %113 = vmatprep.subr.bf16.mxu0 0
  %114 = vmatpush1.bf16.msra.mxu0 0
  %115 = vmatprep.subr.bf16.mxu0 0
  %116 = vmatpush1.bf16.msra.mxu0 0
  %117 = vmatprep.subr.bf16.mxu0 0
  %118 = vmatpush1.bf16.msra.mxu0 0
  %119 = vmatprep.subr.bf16.mxu0 0
  %120 = vmatpush1.bf16.msra.mxu0 0
  %121 = vmatprep.subr.bf16.mxu0 0
  %122 = vmatpush1.bf16.msra.mxu0 0
  %123 = vmatprep.subr.bf16.mxu0 0
  %124 = vmatpush1.bf16.msra.mxu0 0
  %125 = vmatprep.subr.bf16.mxu0 0
  %126 = vmatpush1.bf16.msra.mxu0 0
  %127 = vmatprep.subr.bf16.mxu0 0
  %128 = vmatpush1.bf16.msra.mxu0 0
  %129 = vmatprep.mubr.bf16.mxu0 0
  %130 = vmatmul.mubr.bf16.gmra.mrb[0].mxu0 %v95
  %v131 = vpop.f32.mrb[0].mxu0
  %v132 = vadd.f32 %v80, %v131
  %v133 = vpop.f32.mrb[0].mxu0
  %v134 = vpop.f32.mrb[0].mxu0
  %v135 = vadd.f32 %v80, %v134
  %v136 = vpop.f32.mrb[0].mxu0
  %137 = vdwg.mxu0
  %v138 = vpack.c.bf16 %v135, %v132
  %140 = vrot.lane.b32.xlu0 %v138, 96
  %v141 = vpop.permute.xlu0 %140
  %vm142 = vcmask 64512
  %v144 = vsel %vm142, %v138, 0
  %v147 = vsel %vm142, %v141, 0
  %149 = vmatprep.subr.bf16.mxu0 0
  %150 = vmatpush1.bf16.xpose.msra.mxu0 %v147
  %151 = vmatprep.subr.bf16.mxu0 0
  %152 = vmatpush1.bf16.xpose.msra.mxu0 0
  %153 = vmatprep.subr.bf16.mxu0 0
  %154 = vmatpush1.bf16.xpose.msra.mxu0 0
  %155 = vmatprep.subr.bf16.mxu0 0
  %156 = vmatpush1.bf16.xpose.msra.mxu0 0
  %157 = vmatprep.subr.bf16.mxu0 0
  %158 = vmatpush1.bf16.xpose.msra.mxu0 0
  %159 = vmatprep.subr.bf16.mxu0 0
  %160 = vmatpush1.bf16.xpose.msra.mxu0 0
  %161 = vmatprep.subr.bf16.mxu0 0
  %162 = vmatpush1.bf16.xpose.msra.mxu0 0
  %163 = vmatprep.subr.bf16.mxu0 0
  %164 = vmatpush1.bf16.xpose.msra.mxu0 0
  %165 = vmatprep.subr.bf16.mxu0 0
  %166 = vmatpush1.bf16.xpose.msra.mxu0 0
  %167 = vmatprep.subr.bf16.mxu0 0
  %168 = vmatpush1.bf16.xpose.msra.mxu0 0
  %169 = vmatprep.subr.bf16.mxu0 0
  %170 = vmatpush1.bf16.xpose.msra.mxu0 0
  %171 = vmatprep.subr.bf16.mxu0 0
  %172 = vmatpush1.bf16.xpose.msra.mxu0 0
  %173 = vmatprep.subr.bf16.mxu0 0
  %174 = vmatpush1.bf16.xpose.msra.mxu0 0
  %175 = vmatprep.subr.bf16.mxu0 0
  %176 = vmatpush1.bf16.xpose.msra.mxu0 0
  %177 = vmatprep.subr.bf16.mxu0 0
  %178 = vmatpush1.bf16.xpose.msra.mxu0 0
  %179 = vmatprep.subr.bf16.mxu0 0
  %180 = vmatpush1.bf16.xpose.msra.mxu0 0
  %181 = vmatprep.mubr.bf16.mxu0 0
  %182 = vmatmul.mubr.bf16.gmra.mrb[0].mxu0 %v144
  %v183 = vpop.f32.mrb[0].mxu0
  %v184 = vadd.f32 0.0, %v183
  %v185 = vpop.f32.mrb[0].mxu0
  %v186 = vpop.f32.mrb[0].mxu0
  %v187 = vadd.f32 0.0, %v186
  %v188 = vpop.f32.mrb[0].mxu0
  %189 = vdwg.mxu0
  %v190 = vmul.f32 %v184, 0.35355338
  %v191 = vmul.f32 %v187, 0.35355338
  %v192 = vadd.f32 %v190, %v67
  %v193 = vadd.f32 %v191, %v68
  %vm194 = vcmask 130048
  %v195 = vsel %vm194, %v192, -inf
  %196 = vmax.xlane.f32.xlu0 %v195
  %v197 = vpop.xlane.xlu0 %196
  %v198 = vsel %vm194, %v193, -inf
  %199 = vmax.xlane.f32.xlu0 %v198
  %v200 = vpop.xlane.xlu0 %199
  %v201 = vsub.f32 %v192, %v197
  %v202 = vsub.f32 %v193, %v200
  %v203 = vmul.f32 %v201, 1.442695
  %v204 = vpow.pop %v203
  %v205 = vmul.f32 %v202, 1.442695
  %v206 = vpow.pop %v205
  %v207 = vsel %vm194, %v204, 0.0
  %208 = vadd.xlane.f32.xlu0 %v207
  %v209 = vpop.xlane.xlu0 %208
  %v210 = vsel %vm194, %v206, 0.0
  %211 = vadd.xlane.f32.xlu0 %v210
  %v212 = vpop.xlane.xlu0 %211
  %v213 = vrcp.pop %v209
  %v214 = vrcp.pop %v212
  %v215 = vmul.f32 %v204, %v213
  %v216 = vmul.f32 %v206, %v214
  %v217 = vpack.c.bf16 %v216, %v215
  %218 = vrot.lane.b32.xlu0 %v138, 64
  %v219 = vpop.permute.xlu0 %218
  %v222 = vsel %vm194, %v217, 0
  %224 = vmatprep.subr.bf16.mxu0 0
  %225 = vmatpush1.bf16.msra.mxu0 %v219
  %226 = vmatprep.subr.bf16.mxu0 0
  %227 = vmatpush1.bf16.msra.mxu0 0
  %228 = vmatprep.subr.bf16.mxu0 0
  %229 = vmatpush1.bf16.msra.mxu0 0
  %230 = vmatprep.subr.bf16.mxu0 0
  %231 = vmatpush1.bf16.msra.mxu0 0
  %232 = vmatprep.subr.bf16.mxu0 0
  %233 = vmatpush1.bf16.msra.mxu0 0
  %234 = vmatprep.subr.bf16.mxu0 0
  %235 = vmatpush1.bf16.msra.mxu0 0
  %236 = vmatprep.subr.bf16.mxu0 0
  %237 = vmatpush1.bf16.msra.mxu0 0
  %238 = vmatprep.subr.bf16.mxu0 0
  %239 = vmatpush1.bf16.msra.mxu0 0
  %240 = vmatprep.subr.bf16.mxu0 0
  %241 = vmatpush1.bf16.msra.mxu0 0
  %242 = vmatprep.subr.bf16.mxu0 0
  %243 = vmatpush1.bf16.msra.mxu0 0
  %244 = vmatprep.subr.bf16.mxu0 0
  %245 = vmatpush1.bf16.msra.mxu0 0
  %246 = vmatprep.subr.bf16.mxu0 0
  %247 = vmatpush1.bf16.msra.mxu0 0
  %248 = vmatprep.subr.bf16.mxu0 0
  %249 = vmatpush1.bf16.msra.mxu0 0
  %250 = vmatprep.subr.bf16.mxu0 0
  %251 = vmatpush1.bf16.msra.mxu0 0
  %252 = vmatprep.subr.bf16.mxu0 0
  %253 = vmatpush1.bf16.msra.mxu0 0
  %254 = vmatprep.subr.bf16.mxu0 0
  %255 = vmatpush1.bf16.msra.mxu0 0
  %256 = vmatprep.mubr.bf16.mxu0 0
  %257 = vmatmul.mubr.bf16.gmra.mrb[0].mxu0 %v222
  %v258 = vpop.f32.mrb[0].mxu0
  %v259 = vadd.f32 0.0, %v258
  %v260 = vpop.f32.mrb[0].mxu0
  %v261 = vpop.f32.mrb[0].mxu0
  %v262 = vadd.f32 0.0, %v261
  %v263 = vpop.f32.mrb[0].mxu0
  %264 = vdwg.mxu0
  %s265 = scalar_lea.vmem %s2, 32
  %v266 = vld [vmem:[%s265] sm:$0xf]
  %v267 = vpack.c.bf16 %v262, %v259
  %268 = vrot.lane.b32.xlu0 %v138, 120
  %v269 = vpop.permute.xlu0 %268
  %270 = vrot.lane.b32.xlu0 %v138, 88
  %v271 = vpop.permute.xlu0 %270
  %v273 = vsel %vm142, %v269, 0
  %v276 = vsel %vm142, %v271, 0
  %278 = vmatprep.subr.bf16.mxu0 0
  %279 = vmatpush1.bf16.xpose.msra.mxu0 %v276
  %280 = vmatprep.subr.bf16.mxu0 0
  %281 = vmatpush1.bf16.xpose.msra.mxu0 0
  %282 = vmatprep.subr.bf16.mxu0 0
  %283 = vmatpush1.bf16.xpose.msra.mxu0 0
  %284 = vmatprep.subr.bf16.mxu0 0
  %285 = vmatpush1.bf16.xpose.msra.mxu0 0
  %286 = vmatprep.subr.bf16.mxu0 0
  %287 = vmatpush1.bf16.xpose.msra.mxu0 0
  %288 = vmatprep.subr.bf16.mxu0 0
  %289 = vmatpush1.bf16.xpose.msra.mxu0 0
  %290 = vmatprep.subr.bf16.mxu0 0
  %291 = vmatpush1.bf16.xpose.msra.mxu0 0
  %292 = vmatprep.subr.bf16.mxu0 0
  %293 = vmatpush1.bf16.xpose.msra.mxu0 0
  %294 = vmatprep.subr.bf16.mxu0 0
  %295 = vmatpush1.bf16.xpose.msra.mxu0 0
  %296 = vmatprep.subr.bf16.mxu0 0
  %297 = vmatpush1.bf16.xpose.msra.mxu0 0
  %298 = vmatprep.subr.bf16.mxu0 0
  %299 = vmatpush1.bf16.xpose.msra.mxu0 0
  %300 = vmatprep.subr.bf16.mxu0 0
  %301 = vmatpush1.bf16.xpose.msra.mxu0 0
  %302 = vmatprep.subr.bf16.mxu0 0
  %303 = vmatpush1.bf16.xpose.msra.mxu0 0
  %304 = vmatprep.subr.bf16.mxu0 0
  %305 = vmatpush1.bf16.xpose.msra.mxu0 0
  %306 = vmatprep.subr.bf16.mxu0 0
  %307 = vmatpush1.bf16.xpose.msra.mxu0 0
  %308 = vmatprep.subr.bf16.mxu0 0
  %309 = vmatpush1.bf16.xpose.msra.mxu0 0
  %310 = vmatprep.mubr.bf16.mxu0 0
  %311 = vmatmul.mubr.bf16.gmra.mrb[0].mxu0 %v273
  %v312 = vpop.f32.mrb[0].mxu0
  %v313 = vadd.f32 0.0, %v312
  %v314 = vpop.f32.mrb[0].mxu0
  %v315 = vpop.f32.mrb[0].mxu0
  %v316 = vadd.f32 0.0, %v315
  %v317 = vpop.f32.mrb[0].mxu0
  %318 = vdwg.mxu0
  %v319 = vmul.f32 %v313, 0.35355338
  %v320 = vmul.f32 %v316, 0.35355338
  %v321 = vadd.f32 %v319, %v67
  %v322 = vadd.f32 %v320, %v68
  %v323 = vsel %vm194, %v321, -inf
  %324 = vmax.xlane.f32.xlu0 %v323
  %v325 = vpop.xlane.xlu0 %324
  %v326 = vsel %vm194, %v322, -inf
  %327 = vmax.xlane.f32.xlu0 %v326
  %v328 = vpop.xlane.xlu0 %327
  %v329 = vsub.f32 %v321, %v325
  %v330 = vsub.f32 %v322, %v328
  %v331 = vmul.f32 %v329, 1.442695
  %v332 = vpow.pop %v331
  %v333 = vmul.f32 %v330, 1.442695
  %v334 = vpow.pop %v333
  %v335 = vsel %vm194, %v332, 0.0
  %336 = vadd.xlane.f32.xlu0 %v335
  %v337 = vpop.xlane.xlu0 %336
  %v338 = vsel %vm194, %v334, 0.0
  %339 = vadd.xlane.f32.xlu0 %v338
  %v340 = vpop.xlane.xlu0 %339
  %v341 = vrcp.pop %v337
  %v342 = vrcp.pop %v340
  %v343 = vmul.f32 %v332, %v341
  %v344 = vmul.f32 %v334, %v342
  %v345 = vpack.c.bf16 %v344, %v343
  %346 = vrot.lane.b32.xlu0 %v138, 56
  %v347 = vpop.permute.xlu0 %346
  %v350 = vsel %vm194, %v345, 0
  %352 = vmatprep.subr.bf16.mxu0 0
  %353 = vmatpush1.bf16.msra.mxu0 %v347
  %354 = vmatprep.subr.bf16.mxu0 0
  %355 = vmatpush1.bf16.msra.mxu0 0
  %356 = vmatprep.subr.bf16.mxu0 0
  %357 = vmatpush1.bf16.msra.mxu0 0
  %358 = vmatprep.subr.bf16.mxu0 0
  %359 = vmatpush1.bf16.msra.mxu0 0
  %360 = vmatprep.subr.bf16.mxu0 0
  %361 = vmatpush1.bf16.msra.mxu0 0
  %362 = vmatprep.subr.bf16.mxu0 0
  %363 = vmatpush1.bf16.msra.mxu0 0
  %364 = vmatprep.subr.bf16.mxu0 0
  %365 = vmatpush1.bf16.msra.mxu0 0
  %366 = vmatprep.subr.bf16.mxu0 0
  %367 = vmatpush1.bf16.msra.mxu0 0
  %368 = vmatprep.subr.bf16.mxu0 0
  %369 = vmatpush1.bf16.msra.mxu0 0
  %370 = vmatprep.subr.bf16.mxu0 0
  %371 = vmatpush1.bf16.msra.mxu0 0
  %372 = vmatprep.subr.bf16.mxu0 0
  %373 = vmatpush1.bf16.msra.mxu0 0
  %374 = vmatprep.subr.bf16.mxu0 0
  %375 = vmatpush1.bf16.msra.mxu0 0
  %376 = vmatprep.subr.bf16.mxu0 0
  %377 = vmatpush1.bf16.msra.mxu0 0
  %378 = vmatprep.subr.bf16.mxu0 0
  %379 = vmatpush1.bf16.msra.mxu0 0
  %380 = vmatprep.subr.bf16.mxu0 0
  %381 = vmatpush1.bf16.msra.mxu0 0
  %382 = vmatprep.subr.bf16.mxu0 0
  %383 = vmatpush1.bf16.msra.mxu0 0
  %384 = vmatprep.mubr.bf16.mxu0 0
  %385 = vmatmul.mubr.bf16.gmra.mrb[0].mxu0 %v350
  %v386 = vpop.f32.mrb[0].mxu0
  %v387 = vadd.f32 0.0, %v386
  %v388 = vpop.f32.mrb[0].mxu0
  %v389 = vpop.f32.mrb[0].mxu0
  %v390 = vadd.f32 0.0, %v389
  %v391 = vpop.f32.mrb[0].mxu0
  %392 = vdwg.mxu0
  %v393 = vld [vmem:[%s265 + $0x4] sm:$0xf]
  %v394 = vpack.c.bf16 %v390, %v387
  %v396 = vsel %vm142, %v394, 0
  %vm398 = vcmask 1043456
  %v400 = vsel %vm398, %v393, 0
  %402 = vmatprep.subr.bf16.mxu0 0
  %403 = vmatpush1.bf16.msra.mxu0 %v400
  %404 = vmatprep.subr.bf16.mxu0 0
  %405 = vmatpush1.bf16.msra.mxu0 0
  %406 = vmatprep.subr.bf16.mxu0 0
  %407 = vmatpush1.bf16.msra.mxu0 0
  %408 = vmatprep.subr.bf16.mxu0 0
  %409 = vmatpush1.bf16.msra.mxu0 0
  %410 = vmatprep.subr.bf16.mxu0 0
  %411 = vmatpush1.bf16.msra.mxu0 0
  %412 = vmatprep.subr.bf16.mxu0 0
  %413 = vmatpush1.bf16.msra.mxu0 0
  %414 = vmatprep.subr.bf16.mxu0 0
  %415 = vmatpush1.bf16.msra.mxu0 0
  %416 = vmatprep.subr.bf16.mxu0 0
  %417 = vmatpush1.bf16.msra.mxu0 0
  %418 = vmatprep.subr.bf16.mxu0 0
  %419 = vmatpush1.bf16.msra.mxu0 0
  %420 = vmatprep.subr.bf16.mxu0 0
  %421 = vmatpush1.bf16.msra.mxu0 0
  %422 = vmatprep.subr.bf16.mxu0 0
  %423 = vmatpush1.bf16.msra.mxu0 0
  %424 = vmatprep.subr.bf16.mxu0 0
  %425 = vmatpush1.bf16.msra.mxu0 0
  %426 = vmatprep.subr.bf16.mxu0 0
  %427 = vmatpush1.bf16.msra.mxu0 0
  %428 = vmatprep.subr.bf16.mxu0 0
  %429 = vmatpush1.bf16.msra.mxu0 0
  %430 = vmatprep.subr.bf16.mxu0 0
  %431 = vmatpush1.bf16.msra.mxu0 0
  %432 = vmatprep.subr.bf16.mxu0 0
  %433 = vmatpush1.bf16.msra.mxu0 0
  %434 = vmatprep.mubr.bf16.mxu0 0
  %435 = vmatmul.mubr.bf16.gmra.mrb[0].mxu0 %v396
  %v436 = vpop.f32.mrb[0].mxu0
  %v437 = vadd.f32 0.0, %v436
  %v438 = vpop.f32.mrb[0].mxu0
  %v439 = vpop.f32.mrb[0].mxu0
  %v440 = vadd.f32 0.0, %v439
  %v441 = vpop.f32.mrb[0].mxu0
  %442 = vdwg.mxu0
  %v444 = vsel %vm142, %v267, 0
  %v447 = vsel %vm398, %v266, 0
  %449 = vmatprep.subr.bf16.mxu0 0
  %450 = vmatpush1.bf16.msra.mxu0 %v447
  %451 = vmatprep.subr.bf16.mxu0 0
  %452 = vmatpush1.bf16.msra.mxu0 0
  %453 = vmatprep.subr.bf16.mxu0 0
  %454 = vmatpush1.bf16.msra.mxu0 0
  %455 = vmatprep.subr.bf16.mxu0 0
  %456 = vmatpush1.bf16.msra.mxu0 0
  %457 = vmatprep.subr.bf16.mxu0 0
  %458 = vmatpush1.bf16.msra.mxu0 0
  %459 = vmatprep.subr.bf16.mxu0 0
  %460 = vmatpush1.bf16.msra.mxu0 0
  %461 = vmatprep.subr.bf16.mxu0 0
  %462 = vmatpush1.bf16.msra.mxu0 0
  %463 = vmatprep.subr.bf16.mxu0 0
  %464 = vmatpush1.bf16.msra.mxu0 0
  %465 = vmatprep.subr.bf16.mxu0 0
  %466 = vmatpush1.bf16.msra.mxu0 0
  %467 = vmatprep.subr.bf16.mxu0 0
  %468 = vmatpush1.bf16.msra.mxu0 0
  %469 = vmatprep.subr.bf16.mxu0 0
  %470 = vmatpush1.bf16.msra.mxu0 0
  %471 = vmatprep.subr.bf16.mxu0 0
  %472 = vmatpush1.bf16.msra.mxu0 0
  %473 = vmatprep.subr.bf16.mxu0 0
  %474 = vmatpush1.bf16.msra.mxu0 0
  %475 = vmatprep.subr.bf16.mxu0 0
  %476 = vmatpush1.bf16.msra.mxu0 0
  %477 = vmatprep.subr.bf16.mxu0 0
  %478 = vmatpush1.bf16.msra.mxu0 0
  %479 = vmatprep.subr.bf16.mxu0 0
  %480 = vmatpush1.bf16.msra.mxu0 0
  %481 = vmatprep.mubr.bf16.mxu0 0
  %482 = vmatmul.mubr.bf16.gmra.mrb[0].mxu0 %v444
  %v483 = vpop.f32.mrb[0].mxu0
  %v484 = vadd.f32 %v437, %v483
  %v485 = vpop.f32.mrb[0].mxu0
  %v486 = vpop.f32.mrb[0].mxu0
  %v487 = vadd.f32 %v440, %v486
  %v488 = vpop.f32.mrb[0].mxu0
  %489 = vdwg.mxu0
  %490 = vrot.lane.b32.xlu0 %v138, 112
  %v491 = vpop.permute.xlu0 %490
  %492 = vrot.lane.b32.xlu0 %v138, 80
  %v493 = vpop.permute.xlu0 %492
  %v495 = vsel %vm142, %v491, 0
  %v498 = vsel %vm142, %v493, 0
  %500 = vmatprep.subr.bf16.mxu0 0
  %501 = vmatpush1.bf16.xpose.msra.mxu0 %v498
  %502 = vmatprep.subr.bf16.mxu0 0
  %503 = vmatpush1.bf16.xpose.msra.mxu0 0
  %504 = vmatprep.subr.bf16.mxu0 0
  %505 = vmatpush1.bf16.xpose.msra.mxu0 0
  %506 = vmatprep.subr.bf16.mxu0 0
  %507 = vmatpush1.bf16.xpose.msra.mxu0 0
  %508 = vmatprep.subr.bf16.mxu0 0
  %509 = vmatpush1.bf16.xpose.msra.mxu0 0
  %510 = vmatprep.subr.bf16.mxu0 0
  %511 = vmatpush1.bf16.xpose.msra.mxu0 0
  %512 = vmatprep.subr.bf16.mxu0 0
  %513 = vmatpush1.bf16.xpose.msra.mxu0 0
  %514 = vmatprep.subr.bf16.mxu0 0
  %515 = vmatpush1.bf16.xpose.msra.mxu0 0
  %516 = vmatprep.subr.bf16.mxu0 0
  %517 = vmatpush1.bf16.xpose.msra.mxu0 0
  %518 = vmatprep.subr.bf16.mxu0 0
  %519 = vmatpush1.bf16.xpose.msra.mxu0 0
  %520 = vmatprep.subr.bf16.mxu0 0
  %521 = vmatpush1.bf16.xpose.msra.mxu0 0
  %522 = vmatprep.subr.bf16.mxu0 0
  %523 = vmatpush1.bf16.xpose.msra.mxu0 0
  %524 = vmatprep.subr.bf16.mxu0 0
  %525 = vmatpush1.bf16.xpose.msra.mxu0 0
  %526 = vmatprep.subr.bf16.mxu0 0
  %527 = vmatpush1.bf16.xpose.msra.mxu0 0
  %528 = vmatprep.subr.bf16.mxu0 0
  %529 = vmatpush1.bf16.xpose.msra.mxu0 0
  %530 = vmatprep.subr.bf16.mxu0 0
  %531 = vmatpush1.bf16.xpose.msra.mxu0 0
  %532 = vmatprep.mubr.bf16.mxu0 0
  %533 = vmatmul.mubr.bf16.gmra.mrb[0].mxu0 %v495
  %v534 = vpop.f32.mrb[0].mxu0
  %v535 = vadd.f32 0.0, %v534
  %v536 = vpop.f32.mrb[0].mxu0
  %v537 = vpop.f32.mrb[0].mxu0
  %v538 = vadd.f32 0.0, %v537
  %v539 = vpop.f32.mrb[0].mxu0
  %540 = vdwg.mxu0
  %v541 = vmul.f32 %v535, 0.35355338
  %v542 = vmul.f32 %v538, 0.35355338
  %v543 = vadd.f32 %v541, %v67
  %v544 = vadd.f32 %v542, %v68
  %v545 = vsel %vm194, %v543, -inf
  %546 = vmax.xlane.f32.xlu0 %v545
  %v547 = vpop.xlane.xlu0 %546
  %v548 = vsel %vm194, %v544, -inf
  %549 = vmax.xlane.f32.xlu0 %v548
  %v550 = vpop.xlane.xlu0 %549
  %v551 = vsub.f32 %v543, %v547
  %v552 = vsub.f32 %v544, %v550
  %v553 = vmul.f32 %v551, 1.442695
  %v554 = vpow.pop %v553
  %v555 = vmul.f32 %v552, 1.442695
  %v556 = vpow.pop %v555
  %v557 = vsel %vm194, %v554, 0.0
  %558 = vadd.xlane.f32.xlu0 %v557
  %v559 = vpop.xlane.xlu0 %558
  %v560 = vsel %vm194, %v556, 0.0
  %561 = vadd.xlane.f32.xlu0 %v560
  %v562 = vpop.xlane.xlu0 %561
  %v563 = vrcp.pop %v559
  %v564 = vrcp.pop %v562
  %v565 = vmul.f32 %v554, %v563
  %v566 = vmul.f32 %v556, %v564
  %v567 = vpack.c.bf16 %v566, %v565
  %568 = vrot.lane.b32.xlu0 %v138, 48
  %v569 = vpop.permute.xlu0 %568
  %v572 = vsel %vm194, %v567, 0
  %574 = vmatprep.subr.bf16.mxu0 0
  %575 = vmatpush1.bf16.msra.mxu0 %v569
  %576 = vmatprep.subr.bf16.mxu0 0
  %577 = vmatpush1.bf16.msra.mxu0 0
  %578 = vmatprep.subr.bf16.mxu0 0
  %579 = vmatpush1.bf16.msra.mxu0 0
  %580 = vmatprep.subr.bf16.mxu0 0
  %581 = vmatpush1.bf16.msra.mxu0 0
  %582 = vmatprep.subr.bf16.mxu0 0
  %583 = vmatpush1.bf16.msra.mxu0 0
  %584 = vmatprep.subr.bf16.mxu0 0
  %585 = vmatpush1.bf16.msra.mxu0 0
  %586 = vmatprep.subr.bf16.mxu0 0
  %587 = vmatpush1.bf16.msra.mxu0 0
  %588 = vmatprep.subr.bf16.mxu0 0
  %589 = vmatpush1.bf16.msra.mxu0 0
  %590 = vmatprep.subr.bf16.mxu0 0
  %591 = vmatpush1.bf16.msra.mxu0 0
  %592 = vmatprep.subr.bf16.mxu0 0
  %593 = vmatpush1.bf16.msra.mxu0 0
  %594 = vmatprep.subr.bf16.mxu0 0
  %595 = vmatpush1.bf16.msra.mxu0 0
  %596 = vmatprep.subr.bf16.mxu0 0
  %597 = vmatpush1.bf16.msra.mxu0 0
  %598 = vmatprep.subr.bf16.mxu0 0
  %599 = vmatpush1.bf16.msra.mxu0 0
  %600 = vmatprep.subr.bf16.mxu0 0
  %601 = vmatpush1.bf16.msra.mxu0 0
  %602 = vmatprep.subr.bf16.mxu0 0
  %603 = vmatpush1.bf16.msra.mxu0 0
  %604 = vmatprep.subr.bf16.mxu0 0
  %605 = vmatpush1.bf16.msra.mxu0 0
  %606 = vmatprep.mubr.bf16.mxu0 0
  %607 = vmatmul.mubr.bf16.gmra.mrb[0].mxu0 %v572
  %v608 = vpop.f32.mrb[0].mxu0
  %v609 = vadd.f32 0.0, %v608
  %v610 = vpop.f32.mrb[0].mxu0
  %v611 = vpop.f32.mrb[0].mxu0
  %v612 = vadd.f32 0.0, %v611
  %v613 = vpop.f32.mrb[0].mxu0
  %614 = vdwg.mxu0
  %v615 = vld [vmem:[%s265 + $0x8] sm:$0xf]
  %v616 = vpack.c.bf16 %v612, %v609
  %v618 = vsel %vm142, %v616, 0
  %v621 = vsel %vm398, %v615, 0
  %623 = vmatprep.subr.bf16.mxu0 0
  %624 = vmatpush1.bf16.msra.mxu0 %v621
  %625 = vmatprep.subr.bf16.mxu0 0
  %626 = vmatpush1.bf16.msra.mxu0 0
  %627 = vmatprep.subr.bf16.mxu0 0
  %628 = vmatpush1.bf16.msra.mxu0 0
  %629 = vmatprep.subr.bf16.mxu0 0
  %630 = vmatpush1.bf16.msra.mxu0 0
  %631 = vmatprep.subr.bf16.mxu0 0
  %632 = vmatpush1.bf16.msra.mxu0 0
  %633 = vmatprep.subr.bf16.mxu0 0
  %634 = vmatpush1.bf16.msra.mxu0 0
  %635 = vmatprep.subr.bf16.mxu0 0
  %636 = vmatpush1.bf16.msra.mxu0 0
  %637 = vmatprep.subr.bf16.mxu0 0
  %638 = vmatpush1.bf16.msra.mxu0 0
  %639 = vmatprep.subr.bf16.mxu0 0
  %640 = vmatpush1.bf16.msra.mxu0 0
  %641 = vmatprep.subr.bf16.mxu0 0
  %642 = vmatpush1.bf16.msra.mxu0 0
  %643 = vmatprep.subr.bf16.mxu0 0
  %644 = vmatpush1.bf16.msra.mxu0 0
  %645 = vmatprep.subr.bf16.mxu0 0
  %646 = vmatpush1.bf16.msra.mxu0 0
  %647 = vmatprep.subr.bf16.mxu0 0
  %648 = vmatpush1.bf16.msra.mxu0 0
  %649 = vmatprep.subr.bf16.mxu0 0
  %650 = vmatpush1.bf16.msra.mxu0 0
  %651 = vmatprep.subr.bf16.mxu0 0
  %652 = vmatpush1.bf16.msra.mxu0 0
  %653 = vmatprep.subr.bf16.mxu0 0
  %654 = vmatpush1.bf16.msra.mxu0 0
  %655 = vmatprep.mubr.bf16.mxu0 0
  %656 = vmatmul.mubr.bf16.gmra.mrb[0].mxu0 %v618
  %v657 = vpop.f32.mrb[0].mxu0
  %v658 = vadd.f32 0.0, %v657
  %v659 = vpop.f32.mrb[0].mxu0
  %v660 = vpop.f32.mrb[0].mxu0
  %v661 = vadd.f32 0.0, %v660
  %v662 = vpop.f32.mrb[0].mxu0
  %663 = vdwg.mxu0
  %v664 = vadd.f32 %v484, %v658
  %v665 = vadd.f32 %v487, %v661
  %666 = vrot.lane.b32.xlu0 %v138, 104
  %v667 = vpop.permute.xlu0 %666
  %668 = vrot.lane.b32.xlu0 %v138, 72
  %v669 = vpop.permute.xlu0 %668
  %v671 = vsel %vm142, %v667, 0
  %v674 = vsel %vm142, %v669, 0
  %676 = vmatprep.subr.bf16.mxu0 0
  %677 = vmatpush1.bf16.xpose.msra.mxu0 %v674
  %678 = vmatprep.subr.bf16.mxu0 0
  %679 = vmatpush1.bf16.xpose.msra.mxu0 0
  %680 = vmatprep.subr.bf16.mxu0 0
  %681 = vmatpush1.bf16.xpose.msra.mxu0 0
  %682 = vmatprep.subr.bf16.mxu0 0
  %683 = vmatpush1.bf16.xpose.msra.mxu0 0
  %684 = vmatprep.subr.bf16.mxu0 0
  %685 = vmatpush1.bf16.xpose.msra.mxu0 0
  %686 = vmatprep.subr.bf16.mxu0 0
  %687 = vmatpush1.bf16.xpose.msra.mxu0 0
  %688 = vmatprep.subr.bf16.mxu0 0
  %689 = vmatpush1.bf16.xpose.msra.mxu0 0
  %690 = vmatprep.subr.bf16.mxu0 0
  %691 = vmatpush1.bf16.xpose.msra.mxu0 0
  %692 = vmatprep.subr.bf16.mxu0 0
  %693 = vmatpush1.bf16.xpose.msra.mxu0 0
  %694 = vmatprep.subr.bf16.mxu0 0
  %695 = vmatpush1.bf16.xpose.msra.mxu0 0
  %696 = vmatprep.subr.bf16.mxu0 0
  %697 = vmatpush1.bf16.xpose.msra.mxu0 0
  %698 = vmatprep.subr.bf16.mxu0 0
  %699 = vmatpush1.bf16.xpose.msra.mxu0 0
  %700 = vmatprep.subr.bf16.mxu0 0
  %701 = vmatpush1.bf16.xpose.msra.mxu0 0
  %702 = vmatprep.subr.bf16.mxu0 0
  %703 = vmatpush1.bf16.xpose.msra.mxu0 0
  %704 = vmatprep.subr.bf16.mxu0 0
  %705 = vmatpush1.bf16.xpose.msra.mxu0 0
  %706 = vmatprep.subr.bf16.mxu0 0
  %707 = vmatpush1.bf16.xpose.msra.mxu0 0
  %708 = vmatprep.mubr.bf16.mxu0 0
  %709 = vmatmul.mubr.bf16.gmra.mrb[0].mxu0 %v671
  %v710 = vpop.f32.mrb[0].mxu0
  %v711 = vadd.f32 0.0, %v710
  %v712 = vpop.f32.mrb[0].mxu0
  %v713 = vpop.f32.mrb[0].mxu0
  %v714 = vadd.f32 0.0, %v713
  %v715 = vpop.f32.mrb[0].mxu0
  %716 = vdwg.mxu0
  %v717 = vmul.f32 %v711, 0.35355338
  %v718 = vmul.f32 %v714, 0.35355338
  %v719 = vadd.f32 %v717, %v67
  %v720 = vadd.f32 %v718, %v68
  %v721 = vsel %vm194, %v719, -inf
  %722 = vmax.xlane.f32.xlu0 %v721
  %v723 = vpop.xlane.xlu0 %722
  %v724 = vsel %vm194, %v720, -inf
  %725 = vmax.xlane.f32.xlu0 %v724
  %v726 = vpop.xlane.xlu0 %725
  %v727 = vsub.f32 %v719, %v723
  %v728 = vsub.f32 %v720, %v726
  %v729 = vmul.f32 %v727, 1.442695
  %v730 = vpow.pop %v729
  %v731 = vmul.f32 %v728, 1.442695
  %v732 = vpow.pop %v731
  %v733 = vsel %vm194, %v730, 0.0
  %734 = vadd.xlane.f32.xlu0 %v733
  %v735 = vpop.xlane.xlu0 %734
  %v736 = vsel %vm194, %v732, 0.0
  %737 = vadd.xlane.f32.xlu0 %v736
  %v738 = vpop.xlane.xlu0 %737
  %v739 = vrcp.pop %v735
  %v740 = vrcp.pop %v738
  %v741 = vmul.f32 %v730, %v739
  %v742 = vmul.f32 %v732, %v740
  %v743 = vpack.c.bf16 %v742, %v741
  %744 = vrot.lane.b32.xlu0 %v138, 40
  %v745 = vpop.permute.xlu0 %744
  %v748 = vsel %vm194, %v743, 0
  %750 = vmatprep.subr.bf16.mxu0 0
  %751 = vmatpush1.bf16.msra.mxu0 %v745
  %752 = vmatprep.subr.bf16.mxu0 0
  %753 = vmatpush1.bf16.msra.mxu0 0
  %754 = vmatprep.subr.bf16.mxu0 0
  %755 = vmatpush1.bf16.msra.mxu0 0
  %756 = vmatprep.subr.bf16.mxu0 0
  %757 = vmatpush1.bf16.msra.mxu0 0
  %758 = vmatprep.subr.bf16.mxu0 0
  %759 = vmatpush1.bf16.msra.mxu0 0
  %760 = vmatprep.subr.bf16.mxu0 0
  %761 = vmatpush1.bf16.msra.mxu0 0
  %762 = vmatprep.subr.bf16.mxu0 0
  %763 = vmatpush1.bf16.msra.mxu0 0
  %764 = vmatprep.subr.bf16.mxu0 0
  %765 = vmatpush1.bf16.msra.mxu0 0
  %766 = vmatprep.subr.bf16.mxu0 0
  %767 = vmatpush1.bf16.msra.mxu0 0
  %768 = vmatprep.subr.bf16.mxu0 0
  %769 = vmatpush1.bf16.msra.mxu0 0
  %770 = vmatprep.subr.bf16.mxu0 0
  %771 = vmatpush1.bf16.msra.mxu0 0
  %772 = vmatprep.subr.bf16.mxu0 0
  %773 = vmatpush1.bf16.msra.mxu0 0
  %774 = vmatprep.subr.bf16.mxu0 0
  %775 = vmatpush1.bf16.msra.mxu0 0
  %776 = vmatprep.subr.bf16.mxu0 0
  %777 = vmatpush1.bf16.msra.mxu0 0
  %778 = vmatprep.subr.bf16.mxu0 0
  %779 = vmatpush1.bf16.msra.mxu0 0
  %780 = vmatprep.subr.bf16.mxu0 0
  %781 = vmatpush1.bf16.msra.mxu0 0
  %782 = vmatprep.mubr.bf16.mxu0 0
  %783 = vmatmul.mubr.bf16.gmra.mrb[0].mxu0 %v748
  %v784 = vpop.f32.mrb[0].mxu0
  %v785 = vadd.f32 0.0, %v784
  %v786 = vpop.f32.mrb[0].mxu0
  %v787 = vpop.f32.mrb[0].mxu0
  %v788 = vadd.f32 0.0, %v787
  %v789 = vpop.f32.mrb[0].mxu0
  %790 = vdwg.mxu0
  %v791 = vld [vmem:[%s265 + $0xc] sm:$0xf]
  %v792 = vpack.c.bf16 %v788, %v785
  %v794 = vsel %vm142, %v792, 0
  %v797 = vsel %vm398, %v791, 0
  %799 = vmatprep.subr.bf16.mxu0 0
  %800 = vmatpush1.bf16.msra.mxu0 %v797
  %801 = vmatprep.subr.bf16.mxu0 0
  %802 = vmatpush1.bf16.msra.mxu0 0
  %803 = vmatprep.subr.bf16.mxu0 0
  %804 = vmatpush1.bf16.msra.mxu0 0
  %805 = vmatprep.subr.bf16.mxu0 0
  %806 = vmatpush1.bf16.msra.mxu0 0
  %807 = vmatprep.subr.bf16.mxu0 0
  %808 = vmatpush1.bf16.msra.mxu0 0
  %809 = vmatprep.subr.bf16.mxu0 0
  %810 = vmatpush1.bf16.msra.mxu0 0
  %811 = vmatprep.subr.bf16.mxu0 0
  %812 = vmatpush1.bf16.msra.mxu0 0
  %813 = vmatprep.subr.bf16.mxu0 0
  %814 = vmatpush1.bf16.msra.mxu0 0
  %815 = vmatprep.subr.bf16.mxu0 0
  %816 = vmatpush1.bf16.msra.mxu0 0
  %817 = vmatprep.subr.bf16.mxu0 0
  %818 = vmatpush1.bf16.msra.mxu0 0
  %819 = vmatprep.subr.bf16.mxu0 0
  %820 = vmatpush1.bf16.msra.mxu0 0
  %821 = vmatprep.subr.bf16.mxu0 0
  %822 = vmatpush1.bf16.msra.mxu0 0
  %823 = vmatprep.subr.bf16.mxu0 0
  %824 = vmatpush1.bf16.msra.mxu0 0
  %825 = vmatprep.subr.bf16.mxu0 0
  %826 = vmatpush1.bf16.msra.mxu0 0
  %827 = vmatprep.subr.bf16.mxu0 0
  %828 = vmatpush1.bf16.msra.mxu0 0
  %829 = vmatprep.subr.bf16.mxu0 0
  %830 = vmatpush1.bf16.msra.mxu0 0
  %831 = vmatprep.mubr.bf16.mxu0 0
  %832 = vmatmul.mubr.bf16.gmra.mrb[0].mxu0 %v794
  %v833 = vpop.f32.mrb[0].mxu0
  %v834 = vadd.f32 0.0, %v833
  %v835 = vpop.f32.mrb[0].mxu0
  %v836 = vpop.f32.mrb[0].mxu0
  %v837 = vadd.f32 0.0, %v836
  %v838 = vpop.f32.mrb[0].mxu0
  %839 = vdwg.mxu0
  %v840 = vadd.f32 %v664, %v834
  %v841 = vadd.f32 %v665, %v837
  %s842 = scalar_lea.vmem %s3, 3
  %v843 = vld [vmem:[%s842] sm:$0x1]
  %v845 = vlaneseq
  %v846 = vshrl.u32 %v845, 7
  %v847 = vsub.s32 0, %v846
  %v848 = vrot.slane %v843, %v847
  %v850 = vadd.f32 %v840, %v848
  %v851 = vadd.f32 %v841, %v848
  %v852 = vadd.f32 %v850, %v65
  %v853 = vadd.f32 %v851, %v66
  %s854 = scalar_lea.vmem %s3, 4
  %v855 = vld [vmem:[%s854] sm:$0x1]
  %s856 = scalar_lea.vmem %s3, 5
  %v857 = vld [vmem:[%s856] sm:$0x1]
  %v858 = vsel %vm23, %v852, 0.0
  %859 = vadd.xlane.f32.xlu0 %v858
  %v860 = vpop.xlane.xlu0 %859
  %v861 = vsel %vm23, %v853, 0.0
  %862 = vadd.xlane.f32.xlu0 %v861
  %v863 = vpop.xlane.xlu0 %862
  %v864 = vmul.f32 %v860, %v30
  %v865 = vmul.f32 %v863, %v30
  %v866 = vsub.f32 %v852, %v864
  %v867 = vsub.f32 %v853, %v865
  %v868 = vmul.f32 %v866, %v866
  %v869 = vmul.f32 %v867, %v867
  %v870 = vsel %vm23, %v868, 0.0
  %871 = vadd.xlane.f32.xlu0 %v870
  %v872 = vpop.xlane.xlu0 %871
  %v873 = vsel %vm23, %v869, 0.0
  %874 = vadd.xlane.f32.xlu0 %v873
  %v875 = vpop.xlane.xlu0 %874
  %v876 = vmul.f32 %v872, %v30
  %v877 = vmul.f32 %v875, %v30
  %v878 = vadd.f32 %v876, 1e-12
  %v879 = vadd.f32 %v877, 1e-12
  %v880 = vrsqrt.pop %v878
  %v881 = vrsqrt.pop %v879
  %v882 = vmul.f32 %v866, %v880
  %v883 = vmul.f32 %v867, %v881
  %v885 = vlaneseq
  %v886 = vshrl.u32 %v885, 7
  %v887 = vsub.s32 0, %v886
  %v888 = vrot.slane %v855, %v887
  %v890 = vmul.f32 %v882, %v888
  %v891 = vmul.f32 %v883, %v888
  %v893 = vlaneseq
  %v894 = vshrl.u32 %v893, 7
  %v895 = vsub.s32 0, %v894
  %v896 = vrot.slane %v857, %v895
  %v898 = vadd.f32 %v890, %v896
  %v899 = vadd.f32 %v891, %v896
  %s900 = scalar_lea.vmem %s2, 64
  %v901 = vld [vmem:[%s900] sm:$0xf]
  %v902 = vld [vmem:[%s900 + $0x4] sm:$0xf]
  %v903 = vld [vmem:[%s900 + $0x8] sm:$0xf]
  %v904 = vld [vmem:[%s900 + $0xc] sm:$0xf]
  %v905 = vpack.c.bf16 %v899, %v898
  %s906 = scalar_lea.vmem %s3, 6
  %v907 = vld [vmem:[%s906] sm:$0x1]
  %v909 = vlaneseq
  %v910 = vshrl.u32 %v909, 7
  %v911 = vsub.s32 0, %v910
  %v912 = vrot.slane %v907, %v911
  %v918 = vunpack.c.l.b16 %v901
  %v919 = vunpack.c.l.b16 %v902
  %v920 = vunpack.c.l.b16 %v903
  %v921 = vunpack.c.l.b16 %v904
  %v922 = vpack.c.b16 %v919, %v918
  %v923 = vpack.c.b16 %v921, %v920
  %v927 = vsel %vm23, %v905, 0
  %929 = vmatprep.subr.bf16.mxu0 0
  %930 = vmatpush1.bf16.msra.mxu0 %v922
  %931 = vmatprep.subr.bf16.mxu0 0
  %932 = vmatpush1.bf16.msra.mxu0 %v923
  %933 = vmatprep.subr.bf16.mxu0 0
  %934 = vmatpush1.bf16.msra.mxu0 0
  %935 = vmatprep.subr.bf16.mxu0 0
  %936 = vmatpush1.bf16.msra.mxu0 0
  %937 = vmatprep.subr.bf16.mxu0 0
  %938 = vmatpush1.bf16.msra.mxu0 0
  %939 = vmatprep.subr.bf16.mxu0 0
  %940 = vmatpush1.bf16.msra.mxu0 0
  %941 = vmatprep.subr.bf16.mxu0 0
  %942 = vmatpush1.bf16.msra.mxu0 0
  %943 = vmatprep.subr.bf16.mxu0 0
  %944 = vmatpush1.bf16.msra.mxu0 0
  %945 = vmatprep.subr.bf16.mxu0 0
  %946 = vmatpush1.bf16.msra.mxu0 0
  %947 = vmatprep.subr.bf16.mxu0 0
  %948 = vmatpush1.bf16.msra.mxu0 0
  %949 = vmatprep.subr.bf16.mxu0 0
  %950 = vmatpush1.bf16.msra.mxu0 0
  %951 = vmatprep.subr.bf16.mxu0 0
  %952 = vmatpush1.bf16.msra.mxu0 0
  %953 = vmatprep.subr.bf16.mxu0 0
  %954 = vmatpush1.bf16.msra.mxu0 0
  %955 = vmatprep.subr.bf16.mxu0 0
  %956 = vmatpush1.bf16.msra.mxu0 0
  %957 = vmatprep.subr.bf16.mxu0 0
  %958 = vmatpush1.bf16.msra.mxu0 0
  %959 = vmatprep.subr.bf16.mxu0 0
  %960 = vmatpush1.bf16.msra.mxu0 0
  %961 = vmatprep.mubr.bf16.mxu0 0
  %962 = vmatmul.mubr.bf16.gmra.mrb[0].mxu0 %v927
  %v963 = vpop.f32.mrb[0].mxu0
  %v964 = vadd.f32 %v912, %v963
  %v965 = vpop.f32.mrb[0].mxu0
  %v966 = vpop.f32.mrb[0].mxu0
  %v967 = vadd.f32 %v912, %v966
  %v968 = vpop.f32.mrb[0].mxu0
  %969 = vdwg.mxu0
  %v970 = vmul.f32 %v964, %v964
  %v971 = vmul.f32 %v967, %v967
  %v972 = vmul.f32 %v964, %v970
  %v973 = vmul.f32 %v967, %v971
  %v974 = vmul.f32 %v972, 0.044715
  %v975 = vmul.f32 %v973, 0.044715
  %v976 = vadd.f32 %v964, %v974
  %v977 = vadd.f32 %v967, %v975
  %v978 = vmul.f32 %v976, 0.7978846
  %v979 = vmul.f32 %v977, 0.7978846
  %v980 = vtanh.pop %v978
  %v981 = vtanh.pop %v979
  %v982 = vadd.f32 %v980, 1.0
  %v983 = vadd.f32 %v981, 1.0
  %v984 = vmul.f32 %v982, 0.5
  %v985 = vmul.f32 %v983, 0.5
  %v986 = vmul.f32 %v964, %v984
  %v987 = vmul.f32 %v967, %v985
  %s988 = scalar_lea.vmem %s2, 96
  %v989 = vld [vmem:[%s988] sm:$0xf]
  %v990 = vld [vmem:[%s988 + $0x4] sm:$0xf]
  %v991 = vld [vmem:[%s988 + $0x8] sm:$0xf]
  %v992 = vld [vmem:[%s988 + $0xc] sm:$0xf]
  %v993 = vld [vmem:[%s988 + $0x10] sm:$0xf]
  %v994 = vld [vmem:[%s988 + $0x14] sm:$0xf]
  %v995 = vld [vmem:[%s988 + $0x18] sm:$0xf]
  %v996 = vld [vmem:[%s988 + $0x1c] sm:$0xf]
  %v997 = vpack.c.bf16 %v987, %v986
  %s998 = scalar_lea.vmem %s3, 7
  %v999 = vld [vmem:[%s998] sm:$0x1]
  %v1001 = vlaneseq
  %v1002 = vshrl.u32 %v1001, 7
  %v1003 = vsub.s32 0, %v1002
  %v1004 = vrot.slane %v999, %v1003
  %v1014 = vunpack.c.l.b16 %v989
  %v1015 = vunpack.c.l.b16 %v990
  %v1016 = vunpack.c.l.b16 %v991
  %v1017 = vunpack.c.l.b16 %v992
  %v1018 = vunpack.c.l.b16 %v993
  %v1019 = vunpack.c.l.b16 %v994
  %v1020 = vunpack.c.l.b16 %v995
  %v1021 = vunpack.c.l.b16 %v996
  %v1022 = vpack.c.b16 %v1015, %v1014
  %v1023 = vpack.c.b16 %v1017, %v1016
  %v1024 = vpack.c.b16 %v1019, %v1018
  %v1025 = vpack.c.b16 %v1021, %v1020
  %vm1030 = vcmask 523264
  %v1032 = vsel %vm1030, %v997, 0
  %1034 = vmatprep.subr.bf16.mxu0 0
  %1035 = vmatpush1.bf16.msra.mxu0 %v1022
  %1036 = vmatprep.subr.bf16.mxu0 0
  %1037 = vmatpush1.bf16.msra.mxu0 %v1023
  %1038 = vmatprep.subr.bf16.mxu0 0
  %1039 = vmatpush1.bf16.msra.mxu0 %v1024
  %1040 = vmatprep.subr.bf16.mxu0 0
  %1041 = vmatpush1.bf16.msra.mxu0 %v1025
  %1042 = vmatprep.subr.bf16.mxu0 0
  %1043 = vmatpush1.bf16.msra.mxu0 0
  %1044 = vmatprep.subr.bf16.mxu0 0
  %1045 = vmatpush1.bf16.msra.mxu0 0
  %1046 = vmatprep.subr.bf16.mxu0 0
  %1047 = vmatpush1.bf16.msra.mxu0 0
  %1048 = vmatprep.subr.bf16.mxu0 0
  %1049 = vmatpush1.bf16.msra.mxu0 0
  %1050 = vmatprep.subr.bf16.mxu0 0
  %1051 = vmatpush1.bf16.msra.mxu0 0
  %1052 = vmatprep.subr.bf16.mxu0 0
  %1053 = vmatpush1.bf16.msra.mxu0 0
  %1054 = vmatprep.subr.bf16.mxu0 0
  %1055 = vmatpush1.bf16.msra.mxu0 0
  %1056 = vmatprep.subr.bf16.mxu0 0
  %1057 = vmatpush1.bf16.msra.mxu0 0
  %1058 = vmatprep.subr.bf16.mxu0 0
  %1059 = vmatpush1.bf16.msra.mxu0 0
  %1060 = vmatprep.subr.bf16.mxu0 0
  %1061 = vmatpush1.bf16.msra.mxu0 0
  %1062 = vmatprep.subr.bf16.mxu0 0
  %1063 = vmatpush1.bf16.msra.mxu0 0
  %1064 = vmatprep.subr.bf16.mxu0 0
  %1065 = vmatpush1.bf16.msra.mxu0 0
  %1066 = vmatprep.mubr.bf16.mxu0 0
  %1067 = vmatmul.mubr.bf16.gmra.mrb[0].mxu0 %v1032
  %v1068 = vpop.f32.mrb[0].mxu0
  %v1069 = vadd.f32 %v1004, %v1068
  %v1070 = vpop.f32.mrb[0].mxu0
  %v1071 = vpop.f32.mrb[0].mxu0
  %v1072 = vadd.f32 %v1004, %v1071
  %v1073 = vpop.f32.mrb[0].mxu0
  %1074 = vdwg.mxu0
  %v1075 = vadd.f32 %v1069, %v898
  %v1076 = vadd.f32 %v1072, %v899
  %s1077 = scalar_lea.vmem %s3, 8
  %v1078 = vld [vmem:[%s1077] sm:$0x1]
  %s1079 = scalar_lea.vmem %s3, 9
  %v1080 = vld [vmem:[%s1079] sm:$0x1]
  %v1081 = vsel %vm23, %v1075, 0.0
  %1082 = vadd.xlane.f32.xlu0 %v1081
  %v1083 = vpop.xlane.xlu0 %1082
  %v1084 = vsel %vm23, %v1076, 0.0
  %1085 = vadd.xlane.f32.xlu0 %v1084
  %v1086 = vpop.xlane.xlu0 %1085
  %v1087 = vmul.f32 %v1083, %v30
  %v1088 = vmul.f32 %v1086, %v30
  %v1089 = vsub.f32 %v1075, %v1087
  %v1090 = vsub.f32 %v1076, %v1088
  %v1091 = vmul.f32 %v1089, %v1089
  %v1092 = vmul.f32 %v1090, %v1090
  %v1093 = vsel %vm23, %v1091, 0.0
  %1094 = vadd.xlane.f32.xlu0 %v1093
  %v1095 = vpop.xlane.xlu0 %1094
  %v1096 = vsel %vm23, %v1092, 0.0
  %1097 = vadd.xlane.f32.xlu0 %v1096
  %v1098 = vpop.xlane.xlu0 %1097
  %v1099 = vmul.f32 %v1095, %v30
  %v1100 = vmul.f32 %v1098, %v30
  %v1101 = vadd.f32 %v1099, 1e-12
  %v1102 = vadd.f32 %v1100, 1e-12
  %v1103 = vrsqrt.pop %v1101
  %v1104 = vrsqrt.pop %v1102
  %v1105 = vmul.f32 %v1089, %v1103
  %v1106 = vmul.f32 %v1090, %v1104
  %v1108 = vlaneseq
  %v1109 = vshrl.u32 %v1108, 7
  %v1110 = vsub.s32 0, %v1109
  %v1111 = vrot.slane %v1078, %v1110
  %v1113 = vmul.f32 %v1105, %v1111
  %v1114 = vmul.f32 %v1106, %v1111
  %v1116 = vlaneseq
  %v1117 = vshrl.u32 %v1116, 7
  %v1118 = vsub.s32 0, %v1117
  %v1119 = vrot.slane %v1080, %v1118
  %v1121 = vadd.f32 %v1113, %v1119
  %v1122 = vadd.f32 %v1114, %v1119
  %s1123 = scalar_lea.vmem %s2, 128
  %v1124 = vld [vmem:[%s1123] sm:$0xf]
  %v1125 = vld [vmem:[%s1123 + $0x4] sm:$0xf]
  %v1126 = vld [vmem:[%s1123 + $0x8] sm:$0xf]
  %v1127 = vld [vmem:[%s1123 + $0xc] sm:$0xf]
  %v1128 = vpack.c.bf16 %v1122, %v1121
  %s1129 = scalar_lea.vmem %s3, 10
  %v1130 = vld [vmem:[%s1129] sm:$0x1]
  %v1132 = vlaneseq
  %v1133 = vshrl.u32 %v1132, 7
  %v1134 = vsub.s32 0, %v1133
  %v1135 = vrot.slane %v1130, %v1134
  %v1141 = vunpack.c.l.b16 %v1124
  %v1142 = vunpack.c.l.b16 %v1125
  %v1143 = vunpack.c.l.b16 %v1126
  %v1144 = vunpack.c.l.b16 %v1127
  %v1145 = vpack.c.b16 %v1142, %v1141
  %v1146 = vpack.c.b16 %v1144, %v1143
  %v1150 = vsel %vm23, %v1128, 0
  %1152 = vmatprep.subr.bf16.mxu0 0
  %1153 = vmatpush1.bf16.msra.mxu0 %v1145
  %1154 = vmatprep.subr.bf16.mxu0 0
  %1155 = vmatpush1.bf16.msra.mxu0 %v1146
  %1156 = vmatprep.subr.bf16.mxu0 0
  %1157 = vmatpush1.bf16.msra.mxu0 0
  %1158 = vmatprep.subr.bf16.mxu0 0
  %1159 = vmatpush1.bf16.msra.mxu0 0
  %1160 = vmatprep.subr.bf16.mxu0 0
  %1161 = vmatpush1.bf16.msra.mxu0 0
  %1162 = vmatprep.subr.bf16.mxu0 0
  %1163 = vmatpush1.bf16.msra.mxu0 0
  %1164 = vmatprep.subr.bf16.mxu0 0
  %1165 = vmatpush1.bf16.msra.mxu0 0
  %1166 = vmatprep.subr.bf16.mxu0 0
  %1167 = vmatpush1.bf16.msra.mxu0 0
  %1168 = vmatprep.subr.bf16.mxu0 0
  %1169 = vmatpush1.bf16.msra.mxu0 0
  %1170 = vmatprep.subr.bf16.mxu0 0
  %1171 = vmatpush1.bf16.msra.mxu0 0
  %1172 = vmatprep.subr.bf16.mxu0 0
  %1173 = vmatpush1.bf16.msra.mxu0 0
  %1174 = vmatprep.subr.bf16.mxu0 0
  %1175 = vmatpush1.bf16.msra.mxu0 0
  %1176 = vmatprep.subr.bf16.mxu0 0
  %1177 = vmatpush1.bf16.msra.mxu0 0
  %1178 = vmatprep.subr.bf16.mxu0 0
  %1179 = vmatpush1.bf16.msra.mxu0 0
  %1180 = vmatprep.subr.bf16.mxu0 0
  %1181 = vmatpush1.bf16.msra.mxu0 0
  %1182 = vmatprep.subr.bf16.mxu0 0
  %1183 = vmatpush1.bf16.msra.mxu0 0
  %1184 = vmatprep.mubr.bf16.mxu0 0
  %1185 = vmatmul.mubr.bf16.gmra.mrb[0].mxu0 %v1150
  %v1186 = vpop.f32.mrb[0].mxu0
  %v1187 = vadd.f32 %v1135, %v1186
  %v1188 = vpop.f32.mrb[0].mxu0
  %v1189 = vpop.f32.mrb[0].mxu0
  %v1190 = vadd.f32 %v1135, %v1189
  %v1191 = vpop.f32.mrb[0].mxu0
  %1192 = vdwg.mxu0
  %v1193 = vpack.c.bf16 %v1190, %v1187
  %1195 = vrot.lane.b32.xlu0 %v1193, 96
  %v1196 = vpop.permute.xlu0 %1195
  %v1198 = vsel %vm142, %v1193, 0
  %v1201 = vsel %vm142, %v1196, 0
  %1203 = vmatprep.subr.bf16.mxu0 0
  %1204 = vmatpush1.bf16.xpose.msra.mxu0 %v1201
  %1205 = vmatprep.subr.bf16.mxu0 0
  %1206 = vmatpush1.bf16.xpose.msra.mxu0 0
  %1207 = vmatprep.subr.bf16.mxu0 0
  %1208 = vmatpush1.bf16.xpose.msra.mxu0 0
  %1209 = vmatprep.subr.bf16.mxu0 0
  %1210 = vmatpush1.bf16.xpose.msra.mxu0 0
  %1211 = vmatprep.subr.bf16.mxu0 0
  %1212 = vmatpush1.bf16.xpose.msra.mxu0 0
  %1213 = vmatprep.subr.bf16.mxu0 0
  %1214 = vmatpush1.bf16.xpose.msra.mxu0 0
  %1215 = vmatprep.subr.bf16.mxu0 0
  %1216 = vmatpush1.bf16.xpose.msra.mxu0 0
  %1217 = vmatprep.subr.bf16.mxu0 0
  %1218 = vmatpush1.bf16.xpose.msra.mxu0 0
  %1219 = vmatprep.subr.bf16.mxu0 0
  %1220 = vmatpush1.bf16.xpose.msra.mxu0 0
  %1221 = vmatprep.subr.bf16.mxu0 0
  %1222 = vmatpush1.bf16.xpose.msra.mxu0 0
  %1223 = vmatprep.subr.bf16.mxu0 0
  %1224 = vmatpush1.bf16.xpose.msra.mxu0 0
  %1225 = vmatprep.subr.bf16.mxu0 0
  %1226 = vmatpush1.bf16.xpose.msra.mxu0 0
  %1227 = vmatprep.subr.bf16.mxu0 0
  %1228 = vmatpush1.bf16.xpose.msra.mxu0 0
  %1229 = vmatprep.subr.bf16.mxu0 0
  %1230 = vmatpush1.bf16.xpose.msra.mxu0 0
  %1231 = vmatprep.subr.bf16.mxu0 0
  %1232 = vmatpush1.bf16.xpose.msra.mxu0 0
  %1233 = vmatprep.subr.bf16.mxu0 0
  %1234 = vmatpush1.bf16.xpose.msra.mxu0 0
  %1235 = vmatprep.mubr.bf16.mxu0 0
  %1236 = vmatmul.mubr.bf16.gmra.mrb[0].mxu0 %v1198
  %v1237 = vpop.f32.mrb[0].mxu0
  %v1238 = vadd.f32 0.0, %v1237
  %v1239 = vpop.f32.mrb[0].mxu0
  %v1240 = vpop.f32.mrb[0].mxu0
  %v1241 = vadd.f32 0.0, %v1240
  %v1242 = vpop.f32.mrb[0].mxu0
  %1243 = vdwg.mxu0
  %v1244 = vmul.f32 %v1238, 0.35355338
  %v1245 = vmul.f32 %v1241, 0.35355338
  %v1246 = vadd.f32 %v1244, %v67
  %v1247 = vadd.f32 %v1245, %v68
  %v1248 = vsel %vm194, %v1246, -inf
  %1249 = vmax.xlane.f32.xlu0 %v1248
  %v1250 = vpop.xlane.xlu0 %1249
  %v1251 = vsel %vm194, %v1247, -inf
  %1252 = vmax.xlane.f32.xlu0 %v1251
  %v1253 = vpop.xlane.xlu0 %1252
  %v1254 = vsub.f32 %v1246, %v1250
  %v1255 = vsub.f32 %v1247, %v1253
  %v1256 = vmul.f32 %v1254, 1.442695
  %v1257 = vpow.pop %v1256
  %v1258 = vmul.f32 %v1255, 1.442695
  %v1259 = vpow.pop %v1258
  %v1260 = vsel %vm194, %v1257, 0.0
  %1261 = vadd.xlane.f32.xlu0 %v1260
  %v1262 = vpop.xlane.xlu0 %1261
  %v1263 = vsel %vm194, %v1259, 0.0
  %1264 = vadd.xlane.f32.xlu0 %v1263
  %v1265 = vpop.xlane.xlu0 %1264
  %v1266 = vrcp.pop %v1262
  %v1267 = vrcp.pop %v1265
  %v1268 = vmul.f32 %v1257, %v1266
  %v1269 = vmul.f32 %v1259, %v1267
  %v1270 = vpack.c.bf16 %v1269, %v1268
  %1271 = vrot.lane.b32.xlu0 %v1193, 64
  %v1272 = vpop.permute.xlu0 %1271
  %v1275 = vsel %vm194, %v1270, 0
  %1277 = vmatprep.subr.bf16.mxu0 0
  %1278 = vmatpush1.bf16.msra.mxu0 %v1272
  %1279 = vmatprep.subr.bf16.mxu0 0
  %1280 = vmatpush1.bf16.msra.mxu0 0
  %1281 = vmatprep.subr.bf16.mxu0 0
  %1282 = vmatpush1.bf16.msra.mxu0 0
  %1283 = vmatprep.subr.bf16.mxu0 0
  %1284 = vmatpush1.bf16.msra.mxu0 0
  %1285 = vmatprep.subr.bf16.mxu0 0
  %1286 = vmatpush1.bf16.msra.mxu0 0
  %1287 = vmatprep.subr.bf16.mxu0 0
  %1288 = vmatpush1.bf16.msra.mxu0 0
  %1289 = vmatprep.subr.bf16.mxu0 0
  %1290 = vmatpush1.bf16.msra.mxu0 0
  %1291 = vmatprep.subr.bf16.mxu0 0
  %1292 = vmatpush1.bf16.msra.mxu0 0
  %1293 = vmatprep.subr.bf16.mxu0 0
  %1294 = vmatpush1.bf16.msra.mxu0 0
  %1295 = vmatprep.subr.bf16.mxu0 0
  %1296 = vmatpush1.bf16.msra.mxu0 0
  %1297 = vmatprep.subr.bf16.mxu0 0
  %1298 = vmatpush1.bf16.msra.mxu0 0
  %1299 = vmatprep.subr.bf16.mxu0 0
  %1300 = vmatpush1.bf16.msra.mxu0 0
  %1301 = vmatprep.subr.bf16.mxu0 0
  %1302 = vmatpush1.bf16.msra.mxu0 0
  %1303 = vmatprep.subr.bf16.mxu0 0
  %1304 = vmatpush1.bf16.msra.mxu0 0
  %1305 = vmatprep.subr.bf16.mxu0 0
  %1306 = vmatpush1.bf16.msra.mxu0 0
  %1307 = vmatprep.subr.bf16.mxu0 0
  %1308 = vmatpush1.bf16.msra.mxu0 0
  %1309 = vmatprep.mubr.bf16.mxu0 0
  %1310 = vmatmul.mubr.bf16.gmra.mrb[0].mxu0 %v1275
  %v1311 = vpop.f32.mrb[0].mxu0
  %v1312 = vadd.f32 0.0, %v1311
  %v1313 = vpop.f32.mrb[0].mxu0
  %v1314 = vpop.f32.mrb[0].mxu0
  %v1315 = vadd.f32 0.0, %v1314
  %v1316 = vpop.f32.mrb[0].mxu0
  %1317 = vdwg.mxu0
  %s1318 = scalar_lea.vmem %s2, 160
  %v1319 = vld [vmem:[%s1318] sm:$0xf]
  %v1320 = vpack.c.bf16 %v1315, %v1312
  %1321 = vrot.lane.b32.xlu0 %v1193, 120
  %v1322 = vpop.permute.xlu0 %1321
  %1323 = vrot.lane.b32.xlu0 %v1193, 88
  %v1324 = vpop.permute.xlu0 %1323
  %v1326 = vsel %vm142, %v1322, 0
  %v1329 = vsel %vm142, %v1324, 0
  %1331 = vmatprep.subr.bf16.mxu0 0
  %1332 = vmatpush1.bf16.xpose.msra.mxu0 %v1329
  %1333 = vmatprep.subr.bf16.mxu0 0
  %1334 = vmatpush1.bf16.xpose.msra.mxu0 0
  %1335 = vmatprep.subr.bf16.mxu0 0
  %1336 = vmatpush1.bf16.xpose.msra.mxu0 0
  %1337 = vmatprep.subr.bf16.mxu0 0
  %1338 = vmatpush1.bf16.xpose.msra.mxu0 0
  %1339 = vmatprep.subr.bf16.mxu0 0
  %1340 = vmatpush1.bf16.xpose.msra.mxu0 0
  %1341 = vmatprep.subr.bf16.mxu0 0
  %1342 = vmatpush1.bf16.xpose.msra.mxu0 0
  %1343 = vmatprep.subr.bf16.mxu0 0
  %1344 = vmatpush1.bf16.xpose.msra.mxu0 0
  %1345 = vmatprep.subr.bf16.mxu0 0
  %1346 = vmatpush1.bf16.xpose.msra.mxu0 0
  %1347 = vmatprep.subr.bf16.mxu0 0
  %1348 = vmatpush1.bf16.xpose.msra.mxu0 0
  %1349 = vmatprep.subr.bf16.mxu0 0
  %1350 = vmatpush1.bf16.xpose.msra.mxu0 0
  %1351 = vmatprep.subr.bf16.mxu0 0
  %1352 = vmatpush1.bf16.xpose.msra.mxu0 0
  %1353 = vmatprep.subr.bf16.mxu0 0
  %1354 = vmatpush1.bf16.xpose.msra.mxu0 0
  %1355 = vmatprep.subr.bf16.mxu0 0
  %1356 = vmatpush1.bf16.xpose.msra.mxu0 0
  %1357 = vmatprep.subr.bf16.mxu0 0
  %1358 = vmatpush1.bf16.xpose.msra.mxu0 0
  %1359 = vmatprep.subr.bf16.mxu0 0
  %1360 = vmatpush1.bf16.xpose.msra.mxu0 0
  %1361 = vmatprep.subr.bf16.mxu0 0
  %1362 = vmatpush1.bf16.xpose.msra.mxu0 0
  %1363 = vmatprep.mubr.bf16.mxu0 0
  %1364 = vmatmul.mubr.bf16.gmra.mrb[0].mxu0 %v1326
  %v1365 = vpop.f32.mrb[0].mxu0
  %v1366 = vadd.f32 0.0, %v1365
  %v1367 = vpop.f32.mrb[0].mxu0
  %v1368 = vpop.f32.mrb[0].mxu0
  %v1369 = vadd.f32 0.0, %v1368
  %v1370 = vpop.f32.mrb[0].mxu0
  %1371 = vdwg.mxu0
  %v1372 = vmul.f32 %v1366, 0.35355338
  %v1373 = vmul.f32 %v1369, 0.35355338
  %v1374 = vadd.f32 %v1372, %v67
  %v1375 = vadd.f32 %v1373, %v68
  %v1376 = vsel %vm194, %v1374, -inf
  %1377 = vmax.xlane.f32.xlu0 %v1376
  %v1378 = vpop.xlane.xlu0 %1377
  %v1379 = vsel %vm194, %v1375, -inf
  %1380 = vmax.xlane.f32.xlu0 %v1379
  %v1381 = vpop.xlane.xlu0 %1380
  %v1382 = vsub.f32 %v1374, %v1378
  %v1383 = vsub.f32 %v1375, %v1381
  %v1384 = vmul.f32 %v1382, 1.442695
  %v1385 = vpow.pop %v1384
  %v1386 = vmul.f32 %v1383, 1.442695
  %v1387 = vpow.pop %v1386
  %v1388 = vsel %vm194, %v1385, 0.0
  %1389 = vadd.xlane.f32.xlu0 %v1388
  %v1390 = vpop.xlane.xlu0 %1389
  %v1391 = vsel %vm194, %v1387, 0.0
  %1392 = vadd.xlane.f32.xlu0 %v1391
  %v1393 = vpop.xlane.xlu0 %1392
  %v1394 = vrcp.pop %v1390
  %v1395 = vrcp.pop %v1393
  %v1396 = vmul.f32 %v1385, %v1394
  %v1397 = vmul.f32 %v1387, %v1395
  %v1398 = vpack.c.bf16 %v1397, %v1396
  %1399 = vrot.lane.b32.xlu0 %v1193, 56
  %v1400 = vpop.permute.xlu0 %1399
  %v1403 = vsel %vm194, %v1398, 0
  %1405 = vmatprep.subr.bf16.mxu0 0
  %1406 = vmatpush1.bf16.msra.mxu0 %v1400
  %1407 = vmatprep.subr.bf16.mxu0 0
  %1408 = vmatpush1.bf16.msra.mxu0 0
  %1409 = vmatprep.subr.bf16.mxu0 0
  %1410 = vmatpush1.bf16.msra.mxu0 0
  %1411 = vmatprep.subr.bf16.mxu0 0
  %1412 = vmatpush1.bf16.msra.mxu0 0
  %1413 = vmatprep.subr.bf16.mxu0 0
  %1414 = vmatpush1.bf16.msra.mxu0 0
  %1415 = vmatprep.subr.bf16.mxu0 0
  %1416 = vmatpush1.bf16.msra.mxu0 0
  %1417 = vmatprep.subr.bf16.mxu0 0
  %1418 = vmatpush1.bf16.msra.mxu0 0
  %1419 = vmatprep.subr.bf16.mxu0 0
  %1420 = vmatpush1.bf16.msra.mxu0 0
  %1421 = vmatprep.subr.bf16.mxu0 0
  %1422 = vmatpush1.bf16.msra.mxu0 0
  %1423 = vmatprep.subr.bf16.mxu0 0
  %1424 = vmatpush1.bf16.msra.mxu0 0
  %1425 = vmatprep.subr.bf16.mxu0 0
  %1426 = vmatpush1.bf16.msra.mxu0 0
  %1427 = vmatprep.subr.bf16.mxu0 0
  %1428 = vmatpush1.bf16.msra.mxu0 0
  %1429 = vmatprep.subr.bf16.mxu0 0
  %1430 = vmatpush1.bf16.msra.mxu0 0
  %1431 = vmatprep.subr.bf16.mxu0 0
  %1432 = vmatpush1.bf16.msra.mxu0 0
  %1433 = vmatprep.subr.bf16.mxu0 0
  %1434 = vmatpush1.bf16.msra.mxu0 0
  %1435 = vmatprep.subr.bf16.mxu0 0
  %1436 = vmatpush1.bf16.msra.mxu0 0
  %1437 = vmatprep.mubr.bf16.mxu0 0
  %1438 = vmatmul.mubr.bf16.gmra.mrb[0].mxu0 %v1403
  %v1439 = vpop.f32.mrb[0].mxu0
  %v1440 = vadd.f32 0.0, %v1439
  %v1441 = vpop.f32.mrb[0].mxu0
  %v1442 = vpop.f32.mrb[0].mxu0
  %v1443 = vadd.f32 0.0, %v1442
  %v1444 = vpop.f32.mrb[0].mxu0
  %1445 = vdwg.mxu0
  %v1446 = vld [vmem:[%s1318 + $0x4] sm:$0xf]
  %v1447 = vpack.c.bf16 %v1443, %v1440
  %v1449 = vsel %vm142, %v1447, 0
  %v1452 = vsel %vm398, %v1446, 0
  %1454 = vmatprep.subr.bf16.mxu0 0
  %1455 = vmatpush1.bf16.msra.mxu0 %v1452
  %1456 = vmatprep.subr.bf16.mxu0 0
  %1457 = vmatpush1.bf16.msra.mxu0 0
  %1458 = vmatprep.subr.bf16.mxu0 0
  %1459 = vmatpush1.bf16.msra.mxu0 0
  %1460 = vmatprep.subr.bf16.mxu0 0
  %1461 = vmatpush1.bf16.msra.mxu0 0
  %1462 = vmatprep.subr.bf16.mxu0 0
  %1463 = vmatpush1.bf16.msra.mxu0 0
  %1464 = vmatprep.subr.bf16.mxu0 0
  %1465 = vmatpush1.bf16.msra.mxu0 0
  %1466 = vmatprep.subr.bf16.mxu0 0
  %1467 = vmatpush1.bf16.msra.mxu0 0
  %1468 = vmatprep.subr.bf16.mxu0 0
  %1469 = vmatpush1.bf16.msra.mxu0 0
  %1470 = vmatprep.subr.bf16.mxu0 0
  %1471 = vmatpush1.bf16.msra.mxu0 0
  %1472 = vmatprep.subr.bf16.mxu0 0
  %1473 = vmatpush1.bf16.msra.mxu0 0
  %1474 = vmatprep.subr.bf16.mxu0 0
  %1475 = vmatpush1.bf16.msra.mxu0 0
  %1476 = vmatprep.subr.bf16.mxu0 0
  %1477 = vmatpush1.bf16.msra.mxu0 0
  %1478 = vmatprep.subr.bf16.mxu0 0
  %1479 = vmatpush1.bf16.msra.mxu0 0
  %1480 = vmatprep.subr.bf16.mxu0 0
  %1481 = vmatpush1.bf16.msra.mxu0 0
  %1482 = vmatprep.subr.bf16.mxu0 0
  %1483 = vmatpush1.bf16.msra.mxu0 0
  %1484 = vmatprep.subr.bf16.mxu0 0
  %1485 = vmatpush1.bf16.msra.mxu0 0
  %1486 = vmatprep.mubr.bf16.mxu0 0
  %1487 = vmatmul.mubr.bf16.gmra.mrb[0].mxu0 %v1449
  %v1488 = vpop.f32.mrb[0].mxu0
  %v1489 = vadd.f32 0.0, %v1488
  %v1490 = vpop.f32.mrb[0].mxu0
  %v1491 = vpop.f32.mrb[0].mxu0
  %v1492 = vadd.f32 0.0, %v1491
  %v1493 = vpop.f32.mrb[0].mxu0
  %1494 = vdwg.mxu0
  %v1496 = vsel %vm142, %v1320, 0
  %v1499 = vsel %vm398, %v1319, 0
  %1501 = vmatprep.subr.bf16.mxu0 0
  %1502 = vmatpush1.bf16.msra.mxu0 %v1499
  %1503 = vmatprep.subr.bf16.mxu0 0
  %1504 = vmatpush1.bf16.msra.mxu0 0
  %1505 = vmatprep.subr.bf16.mxu0 0
  %1506 = vmatpush1.bf16.msra.mxu0 0
  %1507 = vmatprep.subr.bf16.mxu0 0
  %1508 = vmatpush1.bf16.msra.mxu0 0
  %1509 = vmatprep.subr.bf16.mxu0 0
  %1510 = vmatpush1.bf16.msra.mxu0 0
  %1511 = vmatprep.subr.bf16.mxu0 0
  %1512 = vmatpush1.bf16.msra.mxu0 0
  %1513 = vmatprep.subr.bf16.mxu0 0
  %1514 = vmatpush1.bf16.msra.mxu0 0
  %1515 = vmatprep.subr.bf16.mxu0 0
  %1516 = vmatpush1.bf16.msra.mxu0 0
  %1517 = vmatprep.subr.bf16.mxu0 0
  %1518 = vmatpush1.bf16.msra.mxu0 0
  %1519 = vmatprep.subr.bf16.mxu0 0
  %1520 = vmatpush1.bf16.msra.mxu0 0
  %1521 = vmatprep.subr.bf16.mxu0 0
  %1522 = vmatpush1.bf16.msra.mxu0 0
  %1523 = vmatprep.subr.bf16.mxu0 0
  %1524 = vmatpush1.bf16.msra.mxu0 0
  %1525 = vmatprep.subr.bf16.mxu0 0
  %1526 = vmatpush1.bf16.msra.mxu0 0
  %1527 = vmatprep.subr.bf16.mxu0 0
  %1528 = vmatpush1.bf16.msra.mxu0 0
  %1529 = vmatprep.subr.bf16.mxu0 0
  %1530 = vmatpush1.bf16.msra.mxu0 0
  %1531 = vmatprep.subr.bf16.mxu0 0
  %1532 = vmatpush1.bf16.msra.mxu0 0
  %1533 = vmatprep.mubr.bf16.mxu0 0
  %1534 = vmatmul.mubr.bf16.gmra.mrb[0].mxu0 %v1496
  %v1535 = vpop.f32.mrb[0].mxu0
  %v1536 = vadd.f32 %v1489, %v1535
  %v1537 = vpop.f32.mrb[0].mxu0
  %v1538 = vpop.f32.mrb[0].mxu0
  %v1539 = vadd.f32 %v1492, %v1538
  %v1540 = vpop.f32.mrb[0].mxu0
  %1541 = vdwg.mxu0
  %1542 = vrot.lane.b32.xlu0 %v1193, 112
  %v1543 = vpop.permute.xlu0 %1542
  %1544 = vrot.lane.b32.xlu0 %v1193, 80
  %v1545 = vpop.permute.xlu0 %1544
  %v1547 = vsel %vm142, %v1543, 0
  %v1550 = vsel %vm142, %v1545, 0
  %1552 = vmatprep.subr.bf16.mxu0 0
  %1553 = vmatpush1.bf16.xpose.msra.mxu0 %v1550
  %1554 = vmatprep.subr.bf16.mxu0 0
  %1555 = vmatpush1.bf16.xpose.msra.mxu0 0
  %1556 = vmatprep.subr.bf16.mxu0 0
  %1557 = vmatpush1.bf16.xpose.msra.mxu0 0
  %1558 = vmatprep.subr.bf16.mxu0 0
  %1559 = vmatpush1.bf16.xpose.msra.mxu0 0
  %1560 = vmatprep.subr.bf16.mxu0 0
  %1561 = vmatpush1.bf16.xpose.msra.mxu0 0
  %1562 = vmatprep.subr.bf16.mxu0 0
  %1563 = vmatpush1.bf16.xpose.msra.mxu0 0
  %1564 = vmatprep.subr.bf16.mxu0 0
  %1565 = vmatpush1.bf16.xpose.msra.mxu0 0
  %1566 = vmatprep.subr.bf16.mxu0 0
  %1567 = vmatpush1.bf16.xpose.msra.mxu0 0
  %1568 = vmatprep.subr.bf16.mxu0 0
  %1569 = vmatpush1.bf16.xpose.msra.mxu0 0
  %1570 = vmatprep.subr.bf16.mxu0 0
  %1571 = vmatpush1.bf16.xpose.msra.mxu0 0
  %1572 = vmatprep.subr.bf16.mxu0 0
  %1573 = vmatpush1.bf16.xpose.msra.mxu0 0
  %1574 = vmatprep.subr.bf16.mxu0 0
  %1575 = vmatpush1.bf16.xpose.msra.mxu0 0
  %1576 = vmatprep.subr.bf16.mxu0 0
  %1577 = vmatpush1.bf16.xpose.msra.mxu0 0
  %1578 = vmatprep.subr.bf16.mxu0 0
  %1579 = vmatpush1.bf16.xpose.msra.mxu0 0
  %1580 = vmatprep.subr.bf16.mxu0 0
  %1581 = vmatpush1.bf16.xpose.msra.mxu0 0
  %1582 = vmatprep.subr.bf16.mxu0 0
  %1583 = vmatpush1.bf16.xpose.msra.mxu0 0
  %1584 = vmatprep.mubr.bf16.mxu0 0
  %1585 = vmatmul.mubr.bf16.gmra.mrb[0].mxu0 %v1547
  %v1586 = vpop.f32.mrb[0].mxu0
  %v1587 = vadd.f32 0.0, %v1586
  %v1588 = vpop.f32.mrb[0].mxu0
  %v1589 = vpop.f32.mrb[0].mxu0
  %v1590 = vadd.f32 0.0, %v1589
  %v1591 = vpop.f32.mrb[0].mxu0
  %1592 = vdwg.mxu0
  %v1593 = vmul.f32 %v1587, 0.35355338
  %v1594 = vmul.f32 %v1590, 0.35355338
  %v1595 = vadd.f32 %v1593, %v67
  %v1596 = vadd.f32 %v1594, %v68
  %v1597 = vsel %vm194, %v1595, -inf
  %1598 = vmax.xlane.f32.xlu0 %v1597
  %v1599 = vpop.xlane.xlu0 %1598
  %v1600 = vsel %vm194, %v1596, -inf
  %1601 = vmax.xlane.f32.xlu0 %v1600
  %v1602 = vpop.xlane.xlu0 %1601
  %v1603 = vsub.f32 %v1595, %v1599
  %v1604 = vsub.f32 %v1596, %v1602
  %v1605 = vmul.f32 %v1603, 1.442695
  %v1606 = vpow.pop %v1605
  %v1607 = vmul.f32 %v1604, 1.442695
  %v1608 = vpow.pop %v1607
  %v1609 = vsel %vm194, %v1606, 0.0
  %1610 = vadd.xlane.f32.xlu0 %v1609
  %v1611 = vpop.xlane.xlu0 %1610
  %v1612 = vsel %vm194, %v1608, 0.0
  %1613 = vadd.xlane.f32.xlu0 %v1612
  %v1614 = vpop.xlane.xlu0 %1613
  %v1615 = vrcp.pop %v1611
  %v1616 = vrcp.pop %v1614
  %v1617 = vmul.f32 %v1606, %v1615
  %v1618 = vmul.f32 %v1608, %v1616
  %v1619 = vpack.c.bf16 %v1618, %v1617
  %1620 = vrot.lane.b32.xlu0 %v1193, 48
  %v1621 = vpop.permute.xlu0 %1620
  %v1624 = vsel %vm194, %v1619, 0
  %1626 = vmatprep.subr.bf16.mxu0 0
  %1627 = vmatpush1.bf16.msra.mxu0 %v1621
  %1628 = vmatprep.subr.bf16.mxu0 0
  %1629 = vmatpush1.bf16.msra.mxu0 0
  %1630 = vmatprep.subr.bf16.mxu0 0
  %1631 = vmatpush1.bf16.msra.mxu0 0
  %1632 = vmatprep.subr.bf16.mxu0 0
  %1633 = vmatpush1.bf16.msra.mxu0 0
  %1634 = vmatprep.subr.bf16.mxu0 0
  %1635 = vmatpush1.bf16.msra.mxu0 0
  %1636 = vmatprep.subr.bf16.mxu0 0
  %1637 = vmatpush1.bf16.msra.mxu0 0
  %1638 = vmatprep.subr.bf16.mxu0 0
  %1639 = vmatpush1.bf16.msra.mxu0 0
  %1640 = vmatprep.subr.bf16.mxu0 0
  %1641 = vmatpush1.bf16.msra.mxu0 0
  %1642 = vmatprep.subr.bf16.mxu0 0
  %1643 = vmatpush1.bf16.msra.mxu0 0
  %1644 = vmatprep.subr.bf16.mxu0 0
  %1645 = vmatpush1.bf16.msra.mxu0 0
  %1646 = vmatprep.subr.bf16.mxu0 0
  %1647 = vmatpush1.bf16.msra.mxu0 0
  %1648 = vmatprep.subr.bf16.mxu0 0
  %1649 = vmatpush1.bf16.msra.mxu0 0
  %1650 = vmatprep.subr.bf16.mxu0 0
  %1651 = vmatpush1.bf16.msra.mxu0 0
  %1652 = vmatprep.subr.bf16.mxu0 0
  %1653 = vmatpush1.bf16.msra.mxu0 0
  %1654 = vmatprep.subr.bf16.mxu0 0
  %1655 = vmatpush1.bf16.msra.mxu0 0
  %1656 = vmatprep.subr.bf16.mxu0 0
  %1657 = vmatpush1.bf16.msra.mxu0 0
  %1658 = vmatprep.mubr.bf16.mxu0 0
  %1659 = vmatmul.mubr.bf16.gmra.mrb[0].mxu0 %v1624
  %v1660 = vpop.f32.mrb[0].mxu0
  %v1661 = vadd.f32 0.0, %v1660
  %v1662 = vpop.f32.mrb[0].mxu0
  %v1663 = vpop.f32.mrb[0].mxu0
  %v1664 = vadd.f32 0.0, %v1663
  %v1665 = vpop.f32.mrb[0].mxu0
  %1666 = vdwg.mxu0
  %v1667 = vld [vmem:[%s1318 + $0x8] sm:$0xf]
  %v1668 = vpack.c.bf16 %v1664, %v1661
  %v1670 = vsel %vm142, %v1668, 0
  %v1673 = vsel %vm398, %v1667, 0
  %1675 = vmatprep.subr.bf16.mxu0 0
  %1676 = vmatpush1.bf16.msra.mxu0 %v1673
  %1677 = vmatprep.subr.bf16.mxu0 0
  %1678 = vmatpush1.bf16.msra.mxu0 0
  %1679 = vmatprep.subr.bf16.mxu0 0
  %1680 = vmatpush1.bf16.msra.mxu0 0
  %1681 = vmatprep.subr.bf16.mxu0 0
  %1682 = vmatpush1.bf16.msra.mxu0 0
  %1683 = vmatprep.subr.bf16.mxu0 0
  %1684 = vmatpush1.bf16.msra.mxu0 0
  %1685 = vmatprep.subr.bf16.mxu0 0
  %1686 = vmatpush1.bf16.msra.mxu0 0
  %1687 = vmatprep.subr.bf16.mxu0 0
  %1688 = vmatpush1.bf16.msra.mxu0 0
  %1689 = vmatprep.subr.bf16.mxu0 0
  %1690 = vmatpush1.bf16.msra.mxu0 0
  %1691 = vmatprep.subr.bf16.mxu0 0
  %1692 = vmatpush1.bf16.msra.mxu0 0
  %1693 = vmatprep.subr.bf16.mxu0 0
  %1694 = vmatpush1.bf16.msra.mxu0 0
  %1695 = vmatprep.subr.bf16.mxu0 0
  %1696 = vmatpush1.bf16.msra.mxu0 0
  %1697 = vmatprep.subr.bf16.mxu0 0
  %1698 = vmatpush1.bf16.msra.mxu0 0
  %1699 = vmatprep.subr.bf16.mxu0 0
  %1700 = vmatpush1.bf16.msra.mxu0 0
  %1701 = vmatprep.subr.bf16.mxu0 0
  %1702 = vmatpush1.bf16.msra.mxu0 0
  %1703 = vmatprep.subr.bf16.mxu0 0
  %1704 = vmatpush1.bf16.msra.mxu0 0
  %1705 = vmatprep.subr.bf16.mxu0 0
  %1706 = vmatpush1.bf16.msra.mxu0 0
  %1707 = vmatprep.mubr.bf16.mxu0 0
  %1708 = vmatmul.mubr.bf16.gmra.mrb[0].mxu0 %v1670
  %v1709 = vpop.f32.mrb[0].mxu0
  %v1710 = vadd.f32 0.0, %v1709
  %v1711 = vpop.f32.mrb[0].mxu0
  %v1712 = vpop.f32.mrb[0].mxu0
  %v1713 = vadd.f32 0.0, %v1712
  %v1714 = vpop.f32.mrb[0].mxu0
  %1715 = vdwg.mxu0
  %v1716 = vadd.f32 %v1536, %v1710
  %v1717 = vadd.f32 %v1539, %v1713
  %1718 = vrot.lane.b32.xlu0 %v1193, 104
  %v1719 = vpop.permute.xlu0 %1718
  %1720 = vrot.lane.b32.xlu0 %v1193, 72
  %v1721 = vpop.permute.xlu0 %1720
  %v1723 = vsel %vm142, %v1719, 0
  %v1726 = vsel %vm142, %v1721, 0
  %1728 = vmatprep.subr.bf16.mxu0 0
  %1729 = vmatpush1.bf16.xpose.msra.mxu0 %v1726
  %1730 = vmatprep.subr.bf16.mxu0 0
  %1731 = vmatpush1.bf16.xpose.msra.mxu0 0
  %1732 = vmatprep.subr.bf16.mxu0 0
  %1733 = vmatpush1.bf16.xpose.msra.mxu0 0
  %1734 = vmatprep.subr.bf16.mxu0 0
  %1735 = vmatpush1.bf16.xpose.msra.mxu0 0
  %1736 = vmatprep.subr.bf16.mxu0 0
  %1737 = vmatpush1.bf16.xpose.msra.mxu0 0
  %1738 = vmatprep.subr.bf16.mxu0 0
  %1739 = vmatpush1.bf16.xpose.msra.mxu0 0
  %1740 = vmatprep.subr.bf16.mxu0 0
  %1741 = vmatpush1.bf16.xpose.msra.mxu0 0
  %1742 = vmatprep.subr.bf16.mxu0 0
  %1743 = vmatpush1.bf16.xpose.msra.mxu0 0
  %1744 = vmatprep.subr.bf16.mxu0 0
  %1745 = vmatpush1.bf16.xpose.msra.mxu0 0
  %1746 = vmatprep.subr.bf16.mxu0 0
  %1747 = vmatpush1.bf16.xpose.msra.mxu0 0
  %1748 = vmatprep.subr.bf16.mxu0 0
  %1749 = vmatpush1.bf16.xpose.msra.mxu0 0
  %1750 = vmatprep.subr.bf16.mxu0 0
  %1751 = vmatpush1.bf16.xpose.msra.mxu0 0
  %1752 = vmatprep.subr.bf16.mxu0 0
  %1753 = vmatpush1.bf16.xpose.msra.mxu0 0
  %1754 = vmatprep.subr.bf16.mxu0 0
  %1755 = vmatpush1.bf16.xpose.msra.mxu0 0
  %1756 = vmatprep.subr.bf16.mxu0 0
  %1757 = vmatpush1.bf16.xpose.msra.mxu0 0
  %1758 = vmatprep.subr.bf16.mxu0 0
  %1759 = vmatpush1.bf16.xpose.msra.mxu0 0
  %1760 = vmatprep.mubr.bf16.mxu0 0
  %1761 = vmatmul.mubr.bf16.gmra.mrb[0].mxu0 %v1723
  %v1762 = vpop.f32.mrb[0].mxu0
  %v1763 = vadd.f32 0.0, %v1762
  %v1764 = vpop.f32.mrb[0].mxu0
  %v1765 = vpop.f32.mrb[0].mxu0
  %v1766 = vadd.f32 0.0, %v1765
  %v1767 = vpop.f32.mrb[0].mxu0
  %1768 = vdwg.mxu0
  %v1769 = vmul.f32 %v1763, 0.35355338
  %v1770 = vmul.f32 %v1766, 0.35355338
  %v1771 = vadd.f32 %v1769, %v67
  %v1772 = vadd.f32 %v1770, %v68
  %v1773 = vsel %vm194, %v1771, -inf
  %1774 = vmax.xlane.f32.xlu0 %v1773
  %v1775 = vpop.xlane.xlu0 %1774
  %v1776 = vsel %vm194, %v1772, -inf
  %1777 = vmax.xlane.f32.xlu0 %v1776
  %v1778 = vpop.xlane.xlu0 %1777
  %v1779 = vsub.f32 %v1771, %v1775
  %v1780 = vsub.f32 %v1772, %v1778
  %v1781 = vmul.f32 %v1779, 1.442695
  %v1782 = vpow.pop %v1781
  %v1783 = vmul.f32 %v1780, 1.442695
  %v1784 = vpow.pop %v1783
  %v1785 = vsel %vm194, %v1782, 0.0
  %1786 = vadd.xlane.f32.xlu0 %v1785
  %v1787 = vpop.xlane.xlu0 %1786
  %v1788 = vsel %vm194, %v1784, 0.0
  %1789 = vadd.xlane.f32.xlu0 %v1788
  %v1790 = vpop.xlane.xlu0 %1789
  %v1791 = vrcp.pop %v1787
  %v1792 = vrcp.pop %v1790
  %v1793 = vmul.f32 %v1782, %v1791
  %v1794 = vmul.f32 %v1784, %v1792
  %v1795 = vpack.c.bf16 %v1794, %v1793
  %1796 = vrot.lane.b32.xlu0 %v1193, 40
  %v1797 = vpop.permute.xlu0 %1796
  %v1800 = vsel %vm194, %v1795, 0
  %1802 = vmatprep.subr.bf16.mxu0 0
  %1803 = vmatpush1.bf16.msra.mxu0 %v1797
  %1804 = vmatprep.subr.bf16.mxu0 0
  %1805 = vmatpush1.bf16.msra.mxu0 0
  %1806 = vmatprep.subr.bf16.mxu0 0
  %1807 = vmatpush1.bf16.msra.mxu0 0
  %1808 = vmatprep.subr.bf16.mxu0 0
  %1809 = vmatpush1.bf16.msra.mxu0 0
  %1810 = vmatprep.subr.bf16.mxu0 0
  %1811 = vmatpush1.bf16.msra.mxu0 0
  %1812 = vmatprep.subr.bf16.mxu0 0
  %1813 = vmatpush1.bf16.msra.mxu0 0
  %1814 = vmatprep.subr.bf16.mxu0 0
  %1815 = vmatpush1.bf16.msra.mxu0 0
  %1816 = vmatprep.subr.bf16.mxu0 0
  %1817 = vmatpush1.bf16.msra.mxu0 0
  %1818 = vmatprep.subr.bf16.mxu0 0
  %1819 = vmatpush1.bf16.msra.mxu0 0
  %1820 = vmatprep.subr.bf16.mxu0 0
  %1821 = vmatpush1.bf16.msra.mxu0 0
  %1822 = vmatprep.subr.bf16.mxu0 0
  %1823 = vmatpush1.bf16.msra.mxu0 0
  %1824 = vmatprep.subr.bf16.mxu0 0
  %1825 = vmatpush1.bf16.msra.mxu0 0
  %1826 = vmatprep.subr.bf16.mxu0 0
  %1827 = vmatpush1.bf16.msra.mxu0 0
  %1828 = vmatprep.subr.bf16.mxu0 0
  %1829 = vmatpush1.bf16.msra.mxu0 0
  %1830 = vmatprep.subr.bf16.mxu0 0
  %1831 = vmatpush1.bf16.msra.mxu0 0
  %1832 = vmatprep.subr.bf16.mxu0 0
  %1833 = vmatpush1.bf16.msra.mxu0 0
  %1834 = vmatprep.mubr.bf16.mxu0 0
  %1835 = vmatmul.mubr.bf16.gmra.mrb[0].mxu0 %v1800
  %v1836 = vpop.f32.mrb[0].mxu0
  %v1837 = vadd.f32 0.0, %v1836
  %v1838 = vpop.f32.mrb[0].mxu0
  %v1839 = vpop.f32.mrb[0].mxu0
  %v1840 = vadd.f32 0.0, %v1839
  %v1841 = vpop.f32.mrb[0].mxu0
  %1842 = vdwg.mxu0
  %v1843 = vld [vmem:[%s1318 + $0xc] sm:$0xf]
  %v1844 = vpack.c.bf16 %v1840, %v1837
  %v1846 = vsel %vm142, %v1844, 0
  %v1849 = vsel %vm398, %v1843, 0
  %1851 = vmatprep.subr.bf16.mxu0 0
  %1852 = vmatpush1.bf16.msra.mxu0 %v1849
  %1853 = vmatprep.subr.bf16.mxu0 0
  %1854 = vmatpush1.bf16.msra.mxu0 0
  %1855 = vmatprep.subr.bf16.mxu0 0
  %1856 = vmatpush1.bf16.msra.mxu0 0
  %1857 = vmatprep.subr.bf16.mxu0 0
  %1858 = vmatpush1.bf16.msra.mxu0 0
  %1859 = vmatprep.subr.bf16.mxu0 0
  %1860 = vmatpush1.bf16.msra.mxu0 0
  %1861 = vmatprep.subr.bf16.mxu0 0
  %1862 = vmatpush1.bf16.msra.mxu0 0
  %1863 = vmatprep.subr.bf16.mxu0 0
  %1864 = vmatpush1.bf16.msra.mxu0 0
  %1865 = vmatprep.subr.bf16.mxu0 0
  %1866 = vmatpush1.bf16.msra.mxu0 0
  %1867 = vmatprep.subr.bf16.mxu0 0
  %1868 = vmatpush1.bf16.msra.mxu0 0
  %1869 = vmatprep.subr.bf16.mxu0 0
  %1870 = vmatpush1.bf16.msra.mxu0 0
  %1871 = vmatprep.subr.bf16.mxu0 0
  %1872 = vmatpush1.bf16.msra.mxu0 0
  %1873 = vmatprep.subr.bf16.mxu0 0
  %1874 = vmatpush1.bf16.msra.mxu0 0
  %1875 = vmatprep.subr.bf16.mxu0 0
  %1876 = vmatpush1.bf16.msra.mxu0 0
  %1877 = vmatprep.subr.bf16.mxu0 0
  %1878 = vmatpush1.bf16.msra.mxu0 0
  %1879 = vmatprep.subr.bf16.mxu0 0
  %1880 = vmatpush1.bf16.msra.mxu0 0
  %1881 = vmatprep.subr.bf16.mxu0 0
  %1882 = vmatpush1.bf16.msra.mxu0 0
  %1883 = vmatprep.mubr.bf16.mxu0 0
  %1884 = vmatmul.mubr.bf16.gmra.mrb[0].mxu0 %v1846
  %v1885 = vpop.f32.mrb[0].mxu0
  %v1886 = vadd.f32 0.0, %v1885
  %v1887 = vpop.f32.mrb[0].mxu0
  %v1888 = vpop.f32.mrb[0].mxu0
  %v1889 = vadd.f32 0.0, %v1888
  %v1890 = vpop.f32.mrb[0].mxu0
  %1891 = vdwg.mxu0
  %v1892 = vadd.f32 %v1716, %v1886
  %v1893 = vadd.f32 %v1717, %v1889
  %s1894 = scalar_lea.vmem %s3, 11
  %v1895 = vld [vmem:[%s1894] sm:$0x1]
  %v1897 = vlaneseq
  %v1898 = vshrl.u32 %v1897, 7
  %v1899 = vsub.s32 0, %v1898
  %v1900 = vrot.slane %v1895, %v1899
  %v1902 = vadd.f32 %v1892, %v1900
  %v1903 = vadd.f32 %v1893, %v1900
  %v1904 = vadd.f32 %v1902, %v1121
  %v1905 = vadd.f32 %v1903, %v1122
  %s1906 = scalar_lea.vmem %s3, 12
  %v1907 = vld [vmem:[%s1906] sm:$0x1]
  %s1908 = scalar_lea.vmem %s3, 13
  %v1909 = vld [vmem:[%s1908] sm:$0x1]
  %v1910 = vsel %vm23, %v1904, 0.0
  %1911 = vadd.xlane.f32.xlu0 %v1910
  %v1912 = vpop.xlane.xlu0 %1911
  %v1913 = vsel %vm23, %v1905, 0.0
  %1914 = vadd.xlane.f32.xlu0 %v1913
  %v1915 = vpop.xlane.xlu0 %1914
  %v1916 = vmul.f32 %v1912, %v30
  %v1917 = vmul.f32 %v1915, %v30
  %v1918 = vsub.f32 %v1904, %v1916
  %v1919 = vsub.f32 %v1905, %v1917
  %v1920 = vmul.f32 %v1918, %v1918
  %v1921 = vmul.f32 %v1919, %v1919
  %v1922 = vsel %vm23, %v1920, 0.0
  %1923 = vadd.xlane.f32.xlu0 %v1922
  %v1924 = vpop.xlane.xlu0 %1923
  %v1925 = vsel %vm23, %v1921, 0.0
  %1926 = vadd.xlane.f32.xlu0 %v1925
  %v1927 = vpop.xlane.xlu0 %1926
  %v1928 = vmul.f32 %v1924, %v30
  %v1929 = vmul.f32 %v1927, %v30
  %v1930 = vadd.f32 %v1928, 1e-12
  %v1931 = vadd.f32 %v1929, 1e-12
  %v1932 = vrsqrt.pop %v1930
  %v1933 = vrsqrt.pop %v1931
  %v1934 = vmul.f32 %v1918, %v1932
  %v1935 = vmul.f32 %v1919, %v1933
  %v1937 = vlaneseq
  %v1938 = vshrl.u32 %v1937, 7
  %v1939 = vsub.s32 0, %v1938
  %v1940 = vrot.slane %v1907, %v1939
  %v1942 = vmul.f32 %v1934, %v1940
  %v1943 = vmul.f32 %v1935, %v1940
  %v1945 = vlaneseq
  %v1946 = vshrl.u32 %v1945, 7
  %v1947 = vsub.s32 0, %v1946
  %v1948 = vrot.slane %v1909, %v1947
  %v1950 = vadd.f32 %v1942, %v1948
  %v1951 = vadd.f32 %v1943, %v1948
  %s1952 = scalar_lea.vmem %s2, 192
  %v1953 = vld [vmem:[%s1952] sm:$0xf]
  %v1954 = vld [vmem:[%s1952 + $0x4] sm:$0xf]
  %v1955 = vld [vmem:[%s1952 + $0x8] sm:$0xf]
  %v1956 = vld [vmem:[%s1952 + $0xc] sm:$0xf]
  %v1957 = vpack.c.bf16 %v1951, %v1950
  %s1958 = scalar_lea.vmem %s3, 14
  %v1959 = vld [vmem:[%s1958] sm:$0x1]
  %v1961 = vlaneseq
  %v1962 = vshrl.u32 %v1961, 7
  %v1963 = vsub.s32 0, %v1962
  %v1964 = vrot.slane %v1959, %v1963
  %v1970 = vunpack.c.l.b16 %v1953
  %v1971 = vunpack.c.l.b16 %v1954
  %v1972 = vunpack.c.l.b16 %v1955
  %v1973 = vunpack.c.l.b16 %v1956
  %v1974 = vpack.c.b16 %v1971, %v1970
  %v1975 = vpack.c.b16 %v1973, %v1972
  %v1979 = vsel %vm23, %v1957, 0
  %1981 = vmatprep.subr.bf16.mxu0 0
  %1982 = vmatpush1.bf16.msra.mxu0 %v1974
  %1983 = vmatprep.subr.bf16.mxu0 0
  %1984 = vmatpush1.bf16.msra.mxu0 %v1975
  %1985 = vmatprep.subr.bf16.mxu0 0
  %1986 = vmatpush1.bf16.msra.mxu0 0
  %1987 = vmatprep.subr.bf16.mxu0 0
  %1988 = vmatpush1.bf16.msra.mxu0 0
  %1989 = vmatprep.subr.bf16.mxu0 0
  %1990 = vmatpush1.bf16.msra.mxu0 0
  %1991 = vmatprep.subr.bf16.mxu0 0
  %1992 = vmatpush1.bf16.msra.mxu0 0
  %1993 = vmatprep.subr.bf16.mxu0 0
  %1994 = vmatpush1.bf16.msra.mxu0 0
  %1995 = vmatprep.subr.bf16.mxu0 0
  %1996 = vmatpush1.bf16.msra.mxu0 0
  %1997 = vmatprep.subr.bf16.mxu0 0
  %1998 = vmatpush1.bf16.msra.mxu0 0
  %1999 = vmatprep.subr.bf16.mxu0 0
  %2000 = vmatpush1.bf16.msra.mxu0 0
  %2001 = vmatprep.subr.bf16.mxu0 0
  %2002 = vmatpush1.bf16.msra.mxu0 0
  %2003 = vmatprep.subr.bf16.mxu0 0
  %2004 = vmatpush1.bf16.msra.mxu0 0
  %2005 = vmatprep.subr.bf16.mxu0 0
  %2006 = vmatpush1.bf16.msra.mxu0 0
  %2007 = vmatprep.subr.bf16.mxu0 0
  %2008 = vmatpush1.bf16.msra.mxu0 0
  %2009 = vmatprep.subr.bf16.mxu0 0
  %2010 = vmatpush1.bf16.msra.mxu0 0
  %2011 = vmatprep.subr.bf16.mxu0 0
  %2012 = vmatpush1.bf16.msra.mxu0 0
  %2013 = vmatprep.mubr.bf16.mxu0 0
  %2014 = vmatmul.mubr.bf16.gmra.mrb[0].mxu0 %v1979
  %v2015 = vpop.f32.mrb[0].mxu0
  %v2016 = vadd.f32 %v1964, %v2015
  %v2017 = vpop.f32.mrb[0].mxu0
  %v2018 = vpop.f32.mrb[0].mxu0
  %v2019 = vadd.f32 %v1964, %v2018
  %v2020 = vpop.f32.mrb[0].mxu0
  %2021 = vdwg.mxu0
  %v2022 = vmul.f32 %v2016, %v2016
  %v2023 = vmul.f32 %v2019, %v2019
  %v2024 = vmul.f32 %v2016, %v2022
  %v2025 = vmul.f32 %v2019, %v2023
  %v2026 = vmul.f32 %v2024, 0.044715
  %v2027 = vmul.f32 %v2025, 0.044715
  %v2028 = vadd.f32 %v2016, %v2026
  %v2029 = vadd.f32 %v2019, %v2027
  %v2030 = vmul.f32 %v2028, 0.7978846
  %v2031 = vmul.f32 %v2029, 0.7978846
  %v2032 = vtanh.pop %v2030
  %v2033 = vtanh.pop %v2031
  %v2034 = vadd.f32 %v2032, 1.0
  %v2035 = vadd.f32 %v2033, 1.0
  %v2036 = vmul.f32 %v2034, 0.5
  %v2037 = vmul.f32 %v2035, 0.5
  %v2038 = vmul.f32 %v2016, %v2036
  %v2039 = vmul.f32 %v2019, %v2037
  %s2040 = scalar_lea.vmem %s2, 224
  %v2041 = vld [vmem:[%s2040] sm:$0xf]
  %v2042 = vld [vmem:[%s2040 + $0x4] sm:$0xf]
  %v2043 = vld [vmem:[%s2040 + $0x8] sm:$0xf]
  %v2044 = vld [vmem:[%s2040 + $0xc] sm:$0xf]
  %v2045 = vld [vmem:[%s2040 + $0x10] sm:$0xf]
  %v2046 = vld [vmem:[%s2040 + $0x14] sm:$0xf]
  %v2047 = vld [vmem:[%s2040 + $0x18] sm:$0xf]
  %v2048 = vld [vmem:[%s2040 + $0x1c] sm:$0xf]
  %v2049 = vpack.c.bf16 %v2039, %v2038
  %s2050 = scalar_lea.vmem %s3, 15
  %v2051 = vld [vmem:[%s2050] sm:$0x1]
  %v2053 = vlaneseq
  %v2054 = vshrl.u32 %v2053, 7
  %v2055 = vsub.s32 0, %v2054
  %v2056 = vrot.slane %v2051, %v2055
  %v2066 = vunpack.c.l.b16 %v2041
  %v2067 = vunpack.c.l.b16 %v2042
  %v2068 = vunpack.c.l.b16 %v2043
  %v2069 = vunpack.c.l.b16 %v2044
  %v2070 = vunpack.c.l.b16 %v2045
  %v2071 = vunpack.c.l.b16 %v2046
  %v2072 = vunpack.c.l.b16 %v2047
  %v2073 = vunpack.c.l.b16 %v2048
  %v2074 = vpack.c.b16 %v2067, %v2066
  %v2075 = vpack.c.b16 %v2069, %v2068
  %v2076 = vpack.c.b16 %v2071, %v2070
  %v2077 = vpack.c.b16 %v2073, %v2072
  %v2083 = vsel %vm1030, %v2049, 0
  %2085 = vmatprep.subr.bf16.mxu0 0
  %2086 = vmatpush1.bf16.msra.mxu0 %v2074
  %2087 = vmatprep.subr.bf16.mxu0 0
  %2088 = vmatpush1.bf16.msra.mxu0 %v2075
  %2089 = vmatprep.subr.bf16.mxu0 0
  %2090 = vmatpush1.bf16.msra.mxu0 %v2076
  %2091 = vmatprep.subr.bf16.mxu0 0
  %2092 = vmatpush1.bf16.msra.mxu0 %v2077
  %2093 = vmatprep.subr.bf16.mxu0 0
  %2094 = vmatpush1.bf16.msra.mxu0 0
  %2095 = vmatprep.subr.bf16.mxu0 0
  %2096 = vmatpush1.bf16.msra.mxu0 0
  %2097 = vmatprep.subr.bf16.mxu0 0
  %2098 = vmatpush1.bf16.msra.mxu0 0
  %2099 = vmatprep.subr.bf16.mxu0 0
  %2100 = vmatpush1.bf16.msra.mxu0 0
  %2101 = vmatprep.subr.bf16.mxu0 0
  %2102 = vmatpush1.bf16.msra.mxu0 0
  %2103 = vmatprep.subr.bf16.mxu0 0
  %2104 = vmatpush1.bf16.msra.mxu0 0
  %2105 = vmatprep.subr.bf16.mxu0 0
  %2106 = vmatpush1.bf16.msra.mxu0 0
  %2107 = vmatprep.subr.bf16.mxu0 0
  %2108 = vmatpush1.bf16.msra.mxu0 0
  %2109 = vmatprep.subr.bf16.mxu0 0
  %2110 = vmatpush1.bf16.msra.mxu0 0
  %2111 = vmatprep.subr.bf16.mxu0 0
  %2112 = vmatpush1.bf16.msra.mxu0 0
  %2113 = vmatprep.subr.bf16.mxu0 0
  %2114 = vmatpush1.bf16.msra.mxu0 0
  %2115 = vmatprep.subr.bf16.mxu0 0
  %2116 = vmatpush1.bf16.msra.mxu0 0
  %2117 = vmatprep.mubr.bf16.mxu0 0
  %2118 = vmatmul.mubr.bf16.gmra.mrb[0].mxu0 %v2083
  %v2119 = vpop.f32.mrb[0].mxu0
  %v2120 = vadd.f32 %v2056, %v2119
  %v2121 = vpop.f32.mrb[0].mxu0
  %v2122 = vpop.f32.mrb[0].mxu0
  %v2123 = vadd.f32 %v2056, %v2122
  %v2124 = vpop.f32.mrb[0].mxu0
  %2125 = vdwg.mxu0
  %v2126 = vadd.f32 %v2120, %v1950
  %v2127 = vadd.f32 %v2123, %v1951
  %s2128 = scalar_lea.vmem %s3, 16
  %v2129 = vld [vmem:[%s2128] sm:$0x1]
  %s2130 = scalar_lea.vmem %s3, 17
  %v2131 = vld [vmem:[%s2130] sm:$0x1]
  %v2132 = vsel %vm23, %v2126, 0.0
  %2133 = vadd.xlane.f32.xlu0 %v2132
  %v2134 = vpop.xlane.xlu0 %2133
  %v2135 = vsel %vm23, %v2127, 0.0
  %2136 = vadd.xlane.f32.xlu0 %v2135
  %v2137 = vpop.xlane.xlu0 %2136
  %v2138 = vmul.f32 %v2134, %v30
  %v2139 = vmul.f32 %v2137, %v30
  %v2140 = vsub.f32 %v2126, %v2138
  %v2141 = vsub.f32 %v2127, %v2139
  %v2142 = vmul.f32 %v2140, %v2140
  %v2143 = vmul.f32 %v2141, %v2141
  %v2144 = vsel %vm23, %v2142, 0.0
  %2145 = vadd.xlane.f32.xlu0 %v2144
  %v2146 = vpop.xlane.xlu0 %2145
  %v2147 = vsel %vm23, %v2143, 0.0
  %2148 = vadd.xlane.f32.xlu0 %v2147
  %v2149 = vpop.xlane.xlu0 %2148
  %v2150 = vmul.f32 %v2146, %v30
  %v2151 = vmul.f32 %v2149, %v30
  %v2152 = vadd.f32 %v2150, 1e-12
  %v2153 = vadd.f32 %v2151, 1e-12
  %v2154 = vrsqrt.pop %v2152
  %v2155 = vrsqrt.pop %v2153
  %v2156 = vmul.f32 %v2140, %v2154
  %v2157 = vmul.f32 %v2141, %v2155
  %v2159 = vlaneseq
  %v2160 = vshrl.u32 %v2159, 7
  %v2161 = vsub.s32 0, %v2160
  %v2162 = vrot.slane %v2129, %v2161
  %v2164 = vmul.f32 %v2156, %v2162
  %v2165 = vmul.f32 %v2157, %v2162
  %v2167 = vlaneseq
  %v2168 = vshrl.u32 %v2167, 7
  %v2169 = vsub.s32 0, %v2168
  %v2170 = vrot.slane %v2131, %v2169
  %v2172 = vadd.f32 %v2164, %v2170
  %v2173 = vadd.f32 %v2165, %v2170
  %s2174 = scalar_lea.vmem %s2, 256
  %v2175 = vld [vmem:[%s2174] sm:$0xf]
  %v2176 = vld [vmem:[%s2174 + $0x4] sm:$0xf]
  %v2177 = vld [vmem:[%s2174 + $0x8] sm:$0xf]
  %v2178 = vld [vmem:[%s2174 + $0xc] sm:$0xf]
  %s2179 = scalar_lea.vmem %s2, 288
  %v2180 = vld [vmem:[%s2179] sm:$0xf]
  %v2181 = vld [vmem:[%s2179 + $0x4] sm:$0xf]
  %v2182 = vld [vmem:[%s2179 + $0x8] sm:$0xf]
  %v2183 = vld [vmem:[%s2179 + $0xc] sm:$0xf]
  %v2184 = vpack.c.bf16 %v2173, %v2172
  %s2185 = scalar_lea.vmem %s3, 18
  %v2186 = vld [vmem:[%s2185] sm:$0x1]
  %v2188 = vlaneseq
  %v2189 = vshrl.u32 %v2188, 7
  %v2190 = vsub.s32 0, %v2189
  %v2191 = vrot.slane %v2186, %v2190
  %v2197 = vunpack.c.l.b16 %v2175
  %v2198 = vunpack.c.l.b16 %v2176
  %v2199 = vunpack.c.l.b16 %v2177
  %v2200 = vunpack.c.l.b16 %v2178
  %v2201 = vpack.c.b16 %v2198, %v2197
  %v2202 = vpack.c.b16 %v2200, %v2199
  %v2206 = vsel %vm23, %v2184, 0
  %2208 = vmatprep.subr.bf16.mxu0 0
  %2209 = vmatpush1.bf16.msra.mxu0 %v2201
  %2210 = vmatprep.subr.bf16.mxu0 0
  %2211 = vmatpush1.bf16.msra.mxu0 %v2202
  %2212 = vmatprep.subr.bf16.mxu0 0
  %2213 = vmatpush1.bf16.msra.mxu0 0
  %2214 = vmatprep.subr.bf16.mxu0 0
  %2215 = vmatpush1.bf16.msra.mxu0 0
  %2216 = vmatprep.subr.bf16.mxu0 0
  %2217 = vmatpush1.bf16.msra.mxu0 0
  %2218 = vmatprep.subr.bf16.mxu0 0
  %2219 = vmatpush1.bf16.msra.mxu0 0
  %2220 = vmatprep.subr.bf16.mxu0 0
  %2221 = vmatpush1.bf16.msra.mxu0 0
  %2222 = vmatprep.subr.bf16.mxu0 0
  %2223 = vmatpush1.bf16.msra.mxu0 0
  %2224 = vmatprep.subr.bf16.mxu0 0
  %2225 = vmatpush1.bf16.msra.mxu0 0
  %2226 = vmatprep.subr.bf16.mxu0 0
  %2227 = vmatpush1.bf16.msra.mxu0 0
  %2228 = vmatprep.subr.bf16.mxu0 0
  %2229 = vmatpush1.bf16.msra.mxu0 0
  %2230 = vmatprep.subr.bf16.mxu0 0
  %2231 = vmatpush1.bf16.msra.mxu0 0
  %2232 = vmatprep.subr.bf16.mxu0 0
  %2233 = vmatpush1.bf16.msra.mxu0 0
  %2234 = vmatprep.subr.bf16.mxu0 0
  %2235 = vmatpush1.bf16.msra.mxu0 0
  %2236 = vmatprep.subr.bf16.mxu0 0
  %2237 = vmatpush1.bf16.msra.mxu0 0
  %2238 = vmatprep.subr.bf16.mxu0 0
  %2239 = vmatpush1.bf16.msra.mxu0 0
  %2240 = vmatprep.mubr.bf16.mxu0 0
  %2241 = vmatmul.mubr.bf16.gmra.mrb[0].mxu0 %v2206
  %v2242 = vpop.f32.mrb[0].mxu0
  %v2243 = vadd.f32 %v2191, %v2242
  %v2244 = vpop.f32.mrb[0].mxu0
  %v2245 = vpop.f32.mrb[0].mxu0
  %v2246 = vadd.f32 %v2191, %v2245
  %v2247 = vpop.f32.mrb[0].mxu0
  %2248 = vdwg.mxu0
  %v2253 = vunpack.c.l.b16 %v2180
  %v2254 = vunpack.c.l.b16 %v2181
  %v2255 = vunpack.c.l.b16 %v2182
  %v2256 = vunpack.c.l.b16 %v2183
  %v2257 = vpack.c.b16 %v2254, %v2253
  %v2258 = vpack.c.b16 %v2256, %v2255
  %v2262 = vsel %vm23, 0, 0
  %2264 = vmatprep.subr.bf16.mxu0 0
  %2265 = vmatpush1.bf16.msra.mxu0 %v2257
  %2266 = vmatprep.subr.bf16.mxu0 0
  %2267 = vmatpush1.bf16.msra.mxu0 %v2258
  %2268 = vmatprep.subr.bf16.mxu0 0
  %2269 = vmatpush1.bf16.msra.mxu0 0
  %2270 = vmatprep.subr.bf16.mxu0 0
  %2271 = vmatpush1.bf16.msra.mxu0 0
  %2272 = vmatprep.subr.bf16.mxu0 0
  %2273 = vmatpush1.bf16.msra.mxu0 0
  %2274 = vmatprep.subr.bf16.mxu0 0
  %2275 = vmatpush1.bf16.msra.mxu0 0
  %2276 = vmatprep.subr.bf16.mxu0 0
  %2277 = vmatpush1.bf16.msra.mxu0 0
  %2278 = vmatprep.subr.bf16.mxu0 0
  %2279 = vmatpush1.bf16.msra.mxu0 0
  %2280 = vmatprep.subr.bf16.mxu0 0
  %2281 = vmatpush1.bf16.msra.mxu0 0
  %2282 = vmatprep.subr.bf16.mxu0 0
  %2283 = vmatpush1.bf16.msra.mxu0 0
  %2284 = vmatprep.subr.bf16.mxu0 0
  %2285 = vmatpush1.bf16.msra.mxu0 0
  %2286 = vmatprep.subr.bf16.mxu0 0
  %2287 = vmatpush1.bf16.msra.mxu0 0
  %2288 = vmatprep.subr.bf16.mxu0 0
  %2289 = vmatpush1.bf16.msra.mxu0 0
  %2290 = vmatprep.subr.bf16.mxu0 0
  %2291 = vmatpush1.bf16.msra.mxu0 0
  %2292 = vmatprep.subr.bf16.mxu0 0
  %2293 = vmatpush1.bf16.msra.mxu0 0
  %2294 = vmatprep.subr.bf16.mxu0 0
  %2295 = vmatpush1.bf16.msra.mxu0 0
  %2296 = vmatprep.mubr.bf16.mxu0 0
  %2297 = vmatmul.mubr.bf16.gmra.mrb[0].mxu0 %v2262
  %v2298 = vpop.f32.mrb[0].mxu0
  %v2299 = vadd.f32 0.0, %v2298
  %v2300 = vpop.f32.mrb[0].mxu0
  %v2301 = vpop.f32.mrb[0].mxu0
  %v2302 = vpop.f32.mrb[0].mxu0
  %2303 = vdwg.mxu0
  %v2304 = vadd.f32 %v2243, %v2299
  %v2305 = vxor.u32 %v2304, 2147483648
  %v2306 = vmul.f32 %v2305, 1.442695
  %v2307 = vpow.pop %v2306
  %v2308 = vadd.f32 %v2307, 1.0
  %v2309 = vrcp.pop %v2308
  %v2310 = vmul.f32 1.0, %v2309
  %v2311 = vtanh.pop %v2304
  %v2312 = vmul.f32 %v2310, 0.0
  %2314 = vrot.lane.b32.xlu0 %v2311, 64
  %v2315 = vpop.permute.xlu0 %2314
  %v2317 = vmul.f32 %v2310, %v2315
  %2319 = vrot.lane.b32.xlu0 %v2317, 32
  %v2320 = vpop.permute.xlu0 %2319
  %v2322 = vadd.f32 %v2312, %v2320
  %v2323 = vtanh.pop %v2322
  %2325 = vrot.lane.b32.xlu0 %v2323, 64
  %v2326 = vpop.permute.xlu0 %2325
  %v2328 = vmul.f32 %v2310, %v2326
  %2330 = vrot.lane.b32.xlu0 %v2328, 32
  %v2331 = vpop.permute.xlu0 %2330
  %vm2333 = vcmask 254976
  %2334 = vst.msk [vmem:[#allocation2] sm:$0x3] %vm2333, %v2331
  %v2335 = vpack.c.bf16 %v2328, %v2328
  %2337 = vrot.lane.b32.xlu0 %v2335, 32
  %v2338 = vpop.permute.xlu0 %2337
  %v2340 = vsel %vm23, %v2338, 0
  %2342 = vmatprep.subr.bf16.mxu0 0
  %2343 = vmatpush1.bf16.msra.mxu0 %v2257
  %2344 = vmatprep.subr.bf16.mxu0 0
  %2345 = vmatpush1.bf16.msra.mxu0 %v2258
  %2346 = vmatprep.subr.bf16.mxu0 0
  %2347 = vmatpush1.bf16.msra.mxu0 0
  %2348 = vmatprep.subr.bf16.mxu0 0
  %2349 = vmatpush1.bf16.msra.mxu0 0
  %2350 = vmatprep.subr.bf16.mxu0 0
  %2351 = vmatpush1.bf16.msra.mxu0 0
  %2352 = vmatprep.subr.bf16.mxu0 0
  %2353 = vmatpush1.bf16.msra.mxu0 0
  %2354 = vmatprep.subr.bf16.mxu0 0
  %2355 = vmatpush1.bf16.msra.mxu0 0
  %2356 = vmatprep.subr.bf16.mxu0 0
  %2357 = vmatpush1.bf16.msra.mxu0 0
  %2358 = vmatprep.subr.bf16.mxu0 0
  %2359 = vmatpush1.bf16.msra.mxu0 0
  %2360 = vmatprep.subr.bf16.mxu0 0
  %2361 = vmatpush1.bf16.msra.mxu0 0
  %2362 = vmatprep.subr.bf16.mxu0 0
  %2363 = vmatpush1.bf16.msra.mxu0 0
  %2364 = vmatprep.subr.bf16.mxu0 0
  %2365 = vmatpush1.bf16.msra.mxu0 0
  %2366 = vmatprep.subr.bf16.mxu0 0
  %2367 = vmatpush1.bf16.msra.mxu0 0
  %2368 = vmatprep.subr.bf16.mxu0 0
  %2369 = vmatpush1.bf16.msra.mxu0 0
  %2370 = vmatprep.subr.bf16.mxu0 0
  %2371 = vmatpush1.bf16.msra.mxu0 0
  %2372 = vmatprep.subr.bf16.mxu0 0
  %2373 = vmatpush1.bf16.msra.mxu0 0
  %2374 = vmatprep.mubr.bf16.mxu0 0
  %2375 = vmatmul.mubr.bf16.gmra.mrb[0].mxu0 %v2340
  %v2376 = vpop.f32.mrb[0].mxu0
  %v2377 = vadd.f32 0.0, %v2376
  %v2378 = vpop.f32.mrb[0].mxu0
  %v2379 = vpop.f32.mrb[0].mxu0
  %v2380 = vpop.f32.mrb[0].mxu0
  %2381 = vdwg.mxu0
  %v2383 = vrot.slane %v2377, 6
  %v2385 = vadd.f32 %v2243, %v2383
  %v2386 = vxor.u32 %v2385, 2147483648
  %v2387 = vmul.f32 %v2386, 1.442695
  %v2388 = vpow.pop %v2387
  %v2389 = vadd.f32 %v2388, 1.0
  %v2390 = vrcp.pop %v2389
  %v2391 = vmul.f32 1.0, %v2390
  %v2392 = vtanh.pop %v2385
  %v2394 = vrot.slane %v2322, 6
  %v2396 = vmul.f32 %v2391, %v2394
  %2398 = vrot.lane.b32.xlu0 %v2392, 64
  %v2399 = vpop.permute.xlu0 %2398
  %v2401 = vmul.f32 %v2391, %v2399
  %2403 = vrot.lane.b32.xlu0 %v2401, 32
  %v2404 = vpop.permute.xlu0 %2403
  %v2406 = vadd.f32 %v2396, %v2404
  %v2407 = vtanh.pop %v2406
  %2409 = vrot.lane.b32.xlu0 %v2407, 64
  %v2410 = vpop.permute.xlu0 %2409
  %v2412 = vmul.f32 %v2391, %v2410
  %2414 = vrot.lane.b32.xlu0 %v2412, 32
  %v2415 = vpop.permute.xlu0 %2414
  %vm2417 = vcmask 257026
  %2418 = vst.msk [vmem:[#allocation2] sm:$0xc] %vm2417, %v2415
  %v2419 = vpack.c.bf16 %v2412, %v2412
  %v2421 = vrot.slane %v2419, 1
  %2422 = vrot.lane.b32.xlu0 %v2421, 32
  %v2423 = vpop.permute.xlu0 %2422
  %v2425 = vsel %vm23, %v2423, 0
  %2427 = vmatprep.subr.bf16.mxu0 0
  %2428 = vmatpush1.bf16.msra.mxu0 %v2257
  %2429 = vmatprep.subr.bf16.mxu0 0
  %2430 = vmatpush1.bf16.msra.mxu0 %v2258
  %2431 = vmatprep.subr.bf16.mxu0 0
  %2432 = vmatpush1.bf16.msra.mxu0 0
  %2433 = vmatprep.subr.bf16.mxu0 0
  %2434 = vmatpush1.bf16.msra.mxu0 0
  %2435 = vmatprep.subr.bf16.mxu0 0
  %2436 = vmatpush1.bf16.msra.mxu0 0
  %2437 = vmatprep.subr.bf16.mxu0 0
  %2438 = vmatpush1.bf16.msra.mxu0 0
  %2439 = vmatprep.subr.bf16.mxu0 0
  %2440 = vmatpush1.bf16.msra.mxu0 0
  %2441 = vmatprep.subr.bf16.mxu0 0
  %2442 = vmatpush1.bf16.msra.mxu0 0
  %2443 = vmatprep.subr.bf16.mxu0 0
  %2444 = vmatpush1.bf16.msra.mxu0 0
  %2445 = vmatprep.subr.bf16.mxu0 0
  %2446 = vmatpush1.bf16.msra.mxu0 0
  %2447 = vmatprep.subr.bf16.mxu0 0
  %2448 = vmatpush1.bf16.msra.mxu0 0
  %2449 = vmatprep.subr.bf16.mxu0 0
  %2450 = vmatpush1.bf16.msra.mxu0 0
  %2451 = vmatprep.subr.bf16.mxu0 0
  %2452 = vmatpush1.bf16.msra.mxu0 0
  %2453 = vmatprep.subr.bf16.mxu0 0
  %2454 = vmatpush1.bf16.msra.mxu0 0
  %2455 = vmatprep.subr.bf16.mxu0 0
  %2456 = vmatpush1.bf16.msra.mxu0 0
  %2457 = vmatprep.subr.bf16.mxu0 0
  %2458 = vmatpush1.bf16.msra.mxu0 0
  %2459 = vmatprep.mubr.bf16.mxu0 0
  %2460 = vmatmul.mubr.bf16.gmra.mrb[0].mxu0 %v2425
  %v2461 = vpop.f32.mrb[0].mxu0
  %v2462 = vadd.f32 0.0, %v2461
  %v2463 = vpop.f32.mrb[0].mxu0
  %v2464 = vpop.f32.mrb[0].mxu0
  %v2465 = vpop.f32.mrb[0].mxu0
  %2466 = vdwg.mxu0
  %v2468 = vrot.slane %v2462, 4
  %v2470 = vadd.f32 %v2243, %v2468
  %v2471 = vxor.u32 %v2470, 2147483648
  %v2472 = vmul.f32 %v2471, 1.442695
  %v2473 = vpow.pop %v2472
  %v2474 = vadd.f32 %v2473, 1.0
  %v2475 = vrcp.pop %v2474
  %v2476 = vmul.f32 1.0, %v2475
  %v2477 = vtanh.pop %v2470
  %v2479 = vrot.slane %v2406, 6
  %v2481 = vmul.f32 %v2476, %v2479
  %2483 = vrot.lane.b32.xlu0 %v2477, 64
  %v2484 = vpop.permute.xlu0 %2483
  %v2486 = vmul.f32 %v2476, %v2484
  %2488 = vrot.lane.b32.xlu0 %v2486, 32
  %v2489 = vpop.permute.xlu0 %2488
  %v2491 = vadd.f32 %v2481, %v2489
  %v2492 = vtanh.pop %v2491
  %2494 = vrot.lane.b32.xlu0 %v2492, 64
  %v2495 = vpop.permute.xlu0 %2494
  %v2497 = vmul.f32 %v2476, %v2495
  %2499 = vrot.lane.b32.xlu0 %v2497, 32
  %v2500 = vpop.permute.xlu0 %2499
  %vm2502 = vcmask 259076
  %2503 = vst.msk [vmem:[#allocation2] sm:$0x30] %vm2502, %v2500
  %v2504 = vpack.c.bf16 %v2497, %v2497
  %v2506 = vrot.slane %v2504, 2
  %2507 = vrot.lane.b32.xlu0 %v2506, 32
  %v2508 = vpop.permute.xlu0 %2507
  %v2510 = vsel %vm23, %v2508, 0
  %2512 = vmatprep.subr.bf16.mxu0 0
  %2513 = vmatpush1.bf16.msra.mxu0 %v2257
  %2514 = vmatprep.subr.bf16.mxu0 0
  %2515 = vmatpush1.bf16.msra.mxu0 %v2258
  %2516 = vmatprep.subr.bf16.mxu0 0
  %2517 = vmatpush1.bf16.msra.mxu0 0
  %2518 = vmatprep.subr.bf16.mxu0 0
  %2519 = vmatpush1.bf16.msra.mxu0 0
  %2520 = vmatprep.subr.bf16.mxu0 0
  %2521 = vmatpush1.bf16.msra.mxu0 0
  %2522 = vmatprep.subr.bf16.mxu0 0
  %2523 = vmatpush1.bf16.msra.mxu0 0
  %2524 = vmatprep.subr.bf16.mxu0 0
  %2525 = vmatpush1.bf16.msra.mxu0 0
  %2526 = vmatprep.subr.bf16.mxu0 0
  %2527 = vmatpush1.bf16.msra.mxu0 0
  %2528 = vmatprep.subr.bf16.mxu0 0
  %2529 = vmatpush1.bf16.msra.mxu0 0
  %2530 = vmatprep.subr.bf16.mxu0 0
  %2531 = vmatpush1.bf16.msra.mxu0 0
  %2532 = vmatprep.subr.bf16.mxu0 0
  %2533 = vmatpush1.bf16.msra.mxu0 0
  %2534 = vmatprep.subr.bf16.mxu0 0
  %2535 = vmatpush1.bf16.msra.mxu0 0
  %2536 = vmatprep.subr.bf16.mxu0 0
  %2537 = vmatpush1.bf16.msra.mxu0 0
  %2538 = vmatprep.subr.bf16.mxu0 0
  %2539 = vmatpush1.bf16.msra.mxu0 0
  %2540 = vmatprep.subr.bf16.mxu0 0
  %2541 = vmatpush1.bf16.msra.mxu0 0
  %2542 = vmatprep.subr.bf16.mxu0 0
  %2543 = vmatpush1.bf16.msra.mxu0 0
  %2544 = vmatprep.mubr.bf16.mxu0 0
  %2545 = vmatmul.mubr.bf16.gmra.mrb[0].mxu0 %v2510
  %v2546 = vpop.f32.mrb[0].mxu0
  %v2547 = vadd.f32 0.0, %v2546
  %v2548 = vpop.f32.mrb[0].mxu0
  %v2549 = vpop.f32.mrb[0].mxu0
  %v2550 = vpop.f32.mrb[0].mxu0
  %2551 = vdwg.mxu0
  %v2553 = vrot.slane %v2547, 2
  %v2555 = vadd.f32 %v2243, %v2553
  %v2556 = vxor.u32 %v2555, 2147483648
  %v2557 = vmul.f32 %v2556, 1.442695
  %v2558 = vpow.pop %v2557
  %v2559 = vadd.f32 %v2558, 1.0
  %v2560 = vrcp.pop %v2559
  %v2561 = vmul.f32 1.0, %v2560
  %v2562 = vtanh.pop %v2555
  %v2564 = vrot.slane %v2491, 6
  %v2566 = vmul.f32 %v2561, %v2564
  %2568 = vrot.lane.b32.xlu0 %v2562, 64
  %v2569 = vpop.permute.xlu0 %2568
  %v2571 = vmul.f32 %v2561, %v2569
  %2573 = vrot.lane.b32.xlu0 %v2571, 32
  %v2574 = vpop.permute.xlu0 %2573
  %v2576 = vadd.f32 %v2566, %v2574
  %v2577 = vtanh.pop %v2576
  %2579 = vrot.lane.b32.xlu0 %v2577, 64
  %v2580 = vpop.permute.xlu0 %2579
  %v2582 = vmul.f32 %v2561, %v2580
  %2584 = vrot.lane.b32.xlu0 %v2582, 32
  %v2585 = vpop.permute.xlu0 %2584
  %vm2587 = vcmask 261126
  %2588 = vst.msk [vmem:[#allocation2] sm:$0xc0] %vm2587, %v2585
  %v2589 = vpack.c.bf16 %v2582, %v2582
  %v2591 = vrot.slane %v2589, 3
  %2592 = vrot.lane.b32.xlu0 %v2591, 32
  %v2593 = vpop.permute.xlu0 %2592
  %v2595 = vsel %vm23, %v2593, 0
  %2597 = vmatprep.subr.bf16.mxu0 0
  %2598 = vmatpush1.bf16.msra.mxu0 %v2257
  %2599 = vmatprep.subr.bf16.mxu0 0
  %2600 = vmatpush1.bf16.msra.mxu0 %v2258
  %2601 = vmatprep.subr.bf16.mxu0 0
  %2602 = vmatpush1.bf16.msra.mxu0 0
  %2603 = vmatprep.subr.bf16.mxu0 0
  %2604 = vmatpush1.bf16.msra.mxu0 0
  %2605 = vmatprep.subr.bf16.mxu0 0
  %2606 = vmatpush1.bf16.msra.mxu0 0
  %2607 = vmatprep.subr.bf16.mxu0 0
  %2608 = vmatpush1.bf16.msra.mxu0 0
  %2609 = vmatprep.subr.bf16.mxu0 0
  %2610 = vmatpush1.bf16.msra.mxu0 0
  %2611 = vmatprep.subr.bf16.mxu0 0
  %2612 = vmatpush1.bf16.msra.mxu0 0
  %2613 = vmatprep.subr.bf16.mxu0 0
  %2614 = vmatpush1.bf16.msra.mxu0 0
  %2615 = vmatprep.subr.bf16.mxu0 0
  %2616 = vmatpush1.bf16.msra.mxu0 0
  %2617 = vmatprep.subr.bf16.mxu0 0
  %2618 = vmatpush1.bf16.msra.mxu0 0
  %2619 = vmatprep.subr.bf16.mxu0 0
  %2620 = vmatpush1.bf16.msra.mxu0 0
  %2621 = vmatprep.subr.bf16.mxu0 0
  %2622 = vmatpush1.bf16.msra.mxu0 0
  %2623 = vmatprep.subr.bf16.mxu0 0
  %2624 = vmatpush1.bf16.msra.mxu0 0
  %2625 = vmatprep.subr.bf16.mxu0 0
  %2626 = vmatpush1.bf16.msra.mxu0 0
  %2627 = vmatprep.subr.bf16.mxu0 0
  %2628 = vmatpush1.bf16.msra.mxu0 0
  %2629 = vmatprep.mubr.bf16.mxu0 0
  %2630 = vmatmul.mubr.bf16.gmra.mrb[0].mxu0 %v2595
  %v2631 = vpop.f32.mrb[0].mxu0
  %v2632 = vadd.f32 0.0, %v2631
  %v2633 = vpop.f32.mrb[0].mxu0
  %v2634 = vpop.f32.mrb[0].mxu0
  %v2635 = vpop.f32.mrb[0].mxu0
  %2636 = vdwg.mxu0
  %v2637 = vadd.f32 %v2246, %v2632
  %v2638 = vxor.u32 %v2637, 2147483648
  %v2639 = vmul.f32 %v2638, 1.442695
  %v2640 = vpow.pop %v2639
  %v2641 = vadd.f32 %v2640, 1.0
  %v2642 = vrcp.pop %v2641
  %v2643 = vmul.f32 1.0, %v2642
  %v2644 = vtanh.pop %v2637
  %v2646 = vrot.slane %v2576, 6
  %v2648 = vmul.f32 %v2643, %v2646
  %2650 = vrot.lane.b32.xlu0 %v2644, 64
  %v2651 = vpop.permute.xlu0 %2650
  %v2653 = vmul.f32 %v2643, %v2651
  %2655 = vrot.lane.b32.xlu0 %v2653, 32
  %v2656 = vpop.permute.xlu0 %2655
  %v2658 = vadd.f32 %v2648, %v2656
  %v2659 = vtanh.pop %v2658
  %2661 = vrot.lane.b32.xlu0 %v2659, 64
  %v2662 = vpop.permute.xlu0 %2661
  %v2664 = vmul.f32 %v2643, %v2662
  %2666 = vrot.lane.b32.xlu0 %v2664, 32
  %v2667 = vpop.permute.xlu0 %2666
  %2669 = vst.msk [vmem:[#allocation2 + $0x8] sm:$0x3] %vm2333, %v2667
  %v2670 = vpack.c.bf16 %v2664, %v2664
  %2672 = vrot.lane.b32.xlu0 %v2670, 32
  %v2673 = vpop.permute.xlu0 %2672
  %v2675 = vsel %vm23, %v2673, 0
  %2677 = vmatprep.subr.bf16.mxu0 0
  %2678 = vmatpush1.bf16.msra.mxu0 %v2257
  %2679 = vmatprep.subr.bf16.mxu0 0
  %2680 = vmatpush1.bf16.msra.mxu0 %v2258
  %2681 = vmatprep.subr.bf16.mxu0 0
  %2682 = vmatpush1.bf16.msra.mxu0 0
  %2683 = vmatprep.subr.bf16.mxu0 0
  %2684 = vmatpush1.bf16.msra.mxu0 0
  %2685 = vmatprep.subr.bf16.mxu0 0
  %2686 = vmatpush1.bf16.msra.mxu0 0
  %2687 = vmatprep.subr.bf16.mxu0 0
  %2688 = vmatpush1.bf16.msra.mxu0 0
  %2689 = vmatprep.subr.bf16.mxu0 0
  %2690 = vmatpush1.bf16.msra.mxu0 0
  %2691 = vmatprep.subr.bf16.mxu0 0
  %2692 = vmatpush1.bf16.msra.mxu0 0
  %2693 = vmatprep.subr.bf16.mxu0 0
  %2694 = vmatpush1.bf16.msra.mxu0 0
  %2695 = vmatprep.subr.bf16.mxu0 0
  %2696 = vmatpush1.bf16.msra.mxu0 0
  %2697 = vmatprep.subr.bf16.mxu0 0
  %2698 = vmatpush1.bf16.msra.mxu0 0
  %2699 = vmatprep.subr.bf16.mxu0 0
  %2700 = vmatpush1.bf16.msra.mxu0 0
  %2701 = vmatprep.subr.bf16.mxu0 0
  %2702 = vmatpush1.bf16.msra.mxu0 0
  %2703 = vmatprep.subr.bf16.mxu0 0
  %2704 = vmatpush1.bf16.msra.mxu0 0
  %2705 = vmatprep.subr.bf16.mxu0 0
  %2706 = vmatpush1.bf16.msra.mxu0 0
  %2707 = vmatprep.subr.bf16.mxu0 0
  %2708 = vmatpush1.bf16.msra.mxu0 0
  %2709 = vmatprep.mubr.bf16.mxu0 0
  %2710 = vmatmul.mubr.bf16.gmra.mrb[0].mxu0 %v2675
  %v2711 = vpop.f32.mrb[0].mxu0
  %v2712 = vadd.f32 0.0, %v2711
  %v2713 = vpop.f32.mrb[0].mxu0
  %v2714 = vpop.f32.mrb[0].mxu0
  %v2715 = vpop.f32.mrb[0].mxu0
  %2716 = vdwg.mxu0
  %v2718 = vrot.slane %v2712, 6
  %v2720 = vadd.f32 %v2246, %v2718
  %v2721 = vxor.u32 %v2720, 2147483648
  %v2722 = vmul.f32 %v2721, 1.442695
  %v2723 = vpow.pop %v2722
  %v2724 = vadd.f32 %v2723, 1.0
  %v2725 = vrcp.pop %v2724
  %v2726 = vmul.f32 1.0, %v2725
  %v2727 = vtanh.pop %v2720
  %v2729 = vrot.slane %v2658, 6
  %v2731 = vmul.f32 %v2726, %v2729
  %2733 = vrot.lane.b32.xlu0 %v2727, 64
  %v2734 = vpop.permute.xlu0 %2733
  %v2736 = vmul.f32 %v2726, %v2734
  %2738 = vrot.lane.b32.xlu0 %v2736, 32
  %v2739 = vpop.permute.xlu0 %2738
  %v2741 = vadd.f32 %v2731, %v2739
  %v2742 = vtanh.pop %v2741
  %2744 = vrot.lane.b32.xlu0 %v2742, 64
  %v2745 = vpop.permute.xlu0 %2744
  %v2747 = vmul.f32 %v2726, %v2745
  %2749 = vrot.lane.b32.xlu0 %v2747, 32
  %v2750 = vpop.permute.xlu0 %2749
  %2752 = vst.msk [vmem:[#allocation2 + $0x8] sm:$0xc] %vm2417, %v2750
  %v2753 = vpack.c.bf16 %v2747, %v2747
  %v2755 = vrot.slane %v2753, 1
  %2756 = vrot.lane.b32.xlu0 %v2755, 32
  %v2757 = vpop.permute.xlu0 %2756
  %v2759 = vsel %vm23, %v2757, 0
  %2761 = vmatprep.subr.bf16.mxu0 0
  %2762 = vmatpush1.bf16.msra.mxu0 %v2257
  %2763 = vmatprep.subr.bf16.mxu0 0
  %2764 = vmatpush1.bf16.msra.mxu0 %v2258
  %2765 = vmatprep.subr.bf16.mxu0 0
  %2766 = vmatpush1.bf16.msra.mxu0 0
  %2767 = vmatprep.subr.bf16.mxu0 0
  %2768 = vmatpush1.bf16.msra.mxu0 0
  %2769 = vmatprep.subr.bf16.mxu0 0
  %2770 = vmatpush1.bf16.msra.mxu0 0
  %2771 = vmatprep.subr.bf16.mxu0 0
  %2772 = vmatpush1.bf16.msra.mxu0 0
  %2773 = vmatprep.subr.bf16.mxu0 0
  %2774 = vmatpush1.bf16.msra.mxu0 0
  %2775 = vmatprep.subr.bf16.mxu0 0
  %2776 = vmatpush1.bf16.msra.mxu0 0
  %2777 = vmatprep.subr.bf16.mxu0 0
  %2778 = vmatpush1.bf16.msra.mxu0 0
  %2779 = vmatprep.subr.bf16.mxu0 0
  %2780 = vmatpush1.bf16.msra.mxu0 0
  %2781 = vmatprep.subr.bf16.mxu0 0
  %2782 = vmatpush1.bf16.msra.mxu0 0
  %2783 = vmatprep.subr.bf16.mxu0 0
  %2784 = vmatpush1.bf16.msra.mxu0 0
  %2785 = vmatprep.subr.bf16.mxu0 0
  %2786 = vmatpush1.bf16.msra.mxu0 0
  %2787 = vmatprep.subr.bf16.mxu0 0
  %2788 = vmatpush1.bf16.msra.mxu0 0
  %2789 = vmatprep.subr.bf16.mxu0 0
  %2790 = vmatpush1.bf16.msra.mxu0 0
  %2791 = vmatprep.subr.bf16.mxu0 0
  %2792 = vmatpush1.bf16.msra.mxu0 0
  %2793 = vmatprep.mubr.bf16.mxu0 0
  %2794 = vmatmul.mubr.bf16.gmra.mrb[0].mxu0 %v2759
  %v2795 = vpop.f32.mrb[0].mxu0
  %v2796 = vadd.f32 0.0, %v2795
  %v2797 = vpop.f32.mrb[0].mxu0
  %v2798 = vpop.f32.mrb[0].mxu0
  %v2799 = vpop.f32.mrb[0].mxu0
  %2800 = vdwg.mxu0
  %v2802 = vrot.slane %v2796, 4
  %v2804 = vadd.f32 %v2246, %v2802
  %v2805 = vxor.u32 %v2804, 2147483648
  %v2806 = vmul.f32 %v2805, 1.442695
  %v2807 = vpow.pop %v2806
  %v2808 = vadd.f32 %v2807, 1.0
  %v2809 = vrcp.pop %v2808
  %v2810 = vmul.f32 1.0, %v2809
  %v2811 = vtanh.pop %v2804
  %v2813 = vrot.slane %v2741, 6
  %v2815 = vmul.f32 %v2810, %v2813
  %2817 = vrot.lane.b32.xlu0 %v2811, 64
  %v2818 = vpop.permute.xlu0 %2817
  %v2820 = vmul.f32 %v2810, %v2818
  %2822 = vrot.lane.b32.xlu0 %v2820, 32
  %v2823 = vpop.permute.xlu0 %2822
  %v2825 = vadd.f32 %v2815, %v2823
  %v2826 = vtanh.pop %v2825
  %2828 = vrot.lane.b32.xlu0 %v2826, 64
  %v2829 = vpop.permute.xlu0 %2828
  %v2831 = vmul.f32 %v2810, %v2829
  %2833 = vrot.lane.b32.xlu0 %v2831, 32
  %v2834 = vpop.permute.xlu0 %2833
  %2836 = vst.msk [vmem:[#allocation2 + $0x8] sm:$0x30] %vm2502, %v2834
  %v2837 = vpack.c.bf16 %v2831, %v2831
  %v2839 = vrot.slane %v2837, 2
  %2840 = vrot.lane.b32.xlu0 %v2839, 32
  %v2841 = vpop.permute.xlu0 %2840
  %v2843 = vsel %vm23, %v2841, 0
  %2845 = vmatprep.subr.bf16.mxu0 0
  %2846 = vmatpush1.bf16.msra.mxu0 %v2257
  %2847 = vmatprep.subr.bf16.mxu0 0
  %2848 = vmatpush1.bf16.msra.mxu0 %v2258
  %2849 = vmatprep.subr.bf16.mxu0 0
  %2850 = vmatpush1.bf16.msra.mxu0 0
  %2851 = vmatprep.subr.bf16.mxu0 0
  %2852 = vmatpush1.bf16.msra.mxu0 0
  %2853 = vmatprep.subr.bf16.mxu0 0
  %2854 = vmatpush1.bf16.msra.mxu0 0
  %2855 = vmatprep.subr.bf16.mxu0 0
  %2856 = vmatpush1.bf16.msra.mxu0 0
  %2857 = vmatprep.subr.bf16.mxu0 0
  %2858 = vmatpush1.bf16.msra.mxu0 0
  %2859 = vmatprep.subr.bf16.mxu0 0
  %2860 = vmatpush1.bf16.msra.mxu0 0
  %2861 = vmatprep.subr.bf16.mxu0 0
  %2862 = vmatpush1.bf16.msra.mxu0 0
  %2863 = vmatprep.subr.bf16.mxu0 0
  %2864 = vmatpush1.bf16.msra.mxu0 0
  %2865 = vmatprep.subr.bf16.mxu0 0
  %2866 = vmatpush1.bf16.msra.mxu0 0
  %2867 = vmatprep.subr.bf16.mxu0 0
  %2868 = vmatpush1.bf16.msra.mxu0 0
  %2869 = vmatprep.subr.bf16.mxu0 0
  %2870 = vmatpush1.bf16.msra.mxu0 0
  %2871 = vmatprep.subr.bf16.mxu0 0
  %2872 = vmatpush1.bf16.msra.mxu0 0
  %2873 = vmatprep.subr.bf16.mxu0 0
  %2874 = vmatpush1.bf16.msra.mxu0 0
  %2875 = vmatprep.subr.bf16.mxu0 0
  %2876 = vmatpush1.bf16.msra.mxu0 0
  %2877 = vmatprep.mubr.bf16.mxu0 0
  %2878 = vmatmul.mubr.bf16.gmra.mrb[0].mxu0 %v2843
  %v2879 = vpop.f32.mrb[0].mxu0
  %v2880 = vadd.f32 0.0, %v2879
  %v2881 = vpop.f32.mrb[0].mxu0
  %v2882 = vpop.f32.mrb[0].mxu0
  %v2883 = vpop.f32.mrb[0].mxu0
  %2884 = vdwg.mxu0
  %v2886 = vrot.slane %v2880, 2
  %v2888 = vadd.f32 %v2246, %v2886
  %v2889 = vxor.u32 %v2888, 2147483648
  %v2890 = vmul.f32 %v2889, 1.442695
  %v2891 = vpow.pop %v2890
  %v2892 = vadd.f32 %v2891, 1.0
  %v2893 = vrcp.pop %v2892
  %v2894 = vmul.f32 1.0, %v2893
  %v2895 = vtanh.pop %v2888
  %v2897 = vrot.slane %v2825, 6
  %v2899 = vmul.f32 %v2894, %v2897
  %2901 = vrot.lane.b32.xlu0 %v2895, 64
  %v2902 = vpop.permute.xlu0 %2901
  %v2904 = vmul.f32 %v2894, %v2902
  %2906 = vrot.lane.b32.xlu0 %v2904, 32
  %v2907 = vpop.permute.xlu0 %2906
  %v2909 = vadd.f32 %v2899, %v2907
  %v2910 = vtanh.pop %v2909
  %2912 = vrot.lane.b32.xlu0 %v2910, 64
  %v2913 = vpop.permute.xlu0 %2912
  %v2915 = vmul.f32 %v2894, %v2913
  %2917 = vrot.lane.b32.xlu0 %v2915, 32
  %v2918 = vpop.permute.xlu0 %2917
  %2920 = vst.msk [vmem:[#allocation2 + $0x8] sm:$0xc0] %vm2587, %v2918
  %v2921 = vld [vmem:[#allocation2] sm:$0xff]
  %v2922 = vld [vmem:[#allocation2 + $0x8] sm:$0xff]
  %s2923 = scalar_lea.vmem %s2, 320
  %v2924 = vld [vmem:[%s2923] sm:$0xf]
  %v2925 = vld [vmem:[%s2923 + $0x4] sm:$0xf]
  %v2926 = vld [vmem:[%s2923 + $0x8] sm:$0xf]
  %v2927 = vld [vmem:[%s2923 + $0xc] sm:$0xf]
  %s2928 = scalar_lea.vmem %s2, 352
  %v2929 = vld [vmem:[%s2928] sm:$0xf]
  %v2930 = vld [vmem:[%s2928 + $0x4] sm:$0xf]
  %v2931 = vld [vmem:[%s2928 + $0x8] sm:$0xf]
  %v2932 = vld [vmem:[%s2928 + $0xc] sm:$0xf]
  %v2933 = vpack.c.bf16 %v2922, %v2921
  %s2934 = scalar_lea.vmem %s3, 19
  %v2935 = vld [vmem:[%s2934] sm:$0x1]
  %v2937 = vlaneseq
  %v2938 = vshrl.u32 %v2937, 7
  %v2939 = vsub.s32 0, %v2938
  %v2940 = vrot.slane %v2935, %v2939
  %v2946 = vunpack.c.l.b16 %v2924
  %v2947 = vunpack.c.l.b16 %v2925
  %v2948 = vunpack.c.l.b16 %v2926
  %v2949 = vunpack.c.l.b16 %v2927
  %v2950 = vpack.c.b16 %v2947, %v2946
  %v2951 = vpack.c.b16 %v2949, %v2948
  %v2955 = vsel %vm23, %v2933, 0
  %2957 = vmatprep.subr.bf16.mxu0 0
  %2958 = vmatpush1.bf16.msra.mxu0 %v2950
  %2959 = vmatprep.subr.bf16.mxu0 0
  %2960 = vmatpush1.bf16.msra.mxu0 %v2951
  %2961 = vmatprep.subr.bf16.mxu0 0
  %2962 = vmatpush1.bf16.msra.mxu0 0
  %2963 = vmatprep.subr.bf16.mxu0 0
  %2964 = vmatpush1.bf16.msra.mxu0 0
  %2965 = vmatprep.subr.bf16.mxu0 0
  %2966 = vmatpush1.bf16.msra.mxu0 0
  %2967 = vmatprep.subr.bf16.mxu0 0
  %2968 = vmatpush1.bf16.msra.mxu0 0
  %2969 = vmatprep.subr.bf16.mxu0 0
  %2970 = vmatpush1.bf16.msra.mxu0 0
  %2971 = vmatprep.subr.bf16.mxu0 0
  %2972 = vmatpush1.bf16.msra.mxu0 0
  %2973 = vmatprep.subr.bf16.mxu0 0
  %2974 = vmatpush1.bf16.msra.mxu0 0
  %2975 = vmatprep.subr.bf16.mxu0 0
  %2976 = vmatpush1.bf16.msra.mxu0 0
  %2977 = vmatprep.subr.bf16.mxu0 0
  %2978 = vmatpush1.bf16.msra.mxu0 0
  %2979 = vmatprep.subr.bf16.mxu0 0
  %2980 = vmatpush1.bf16.msra.mxu0 0
  %2981 = vmatprep.subr.bf16.mxu0 0
  %2982 = vmatpush1.bf16.msra.mxu0 0
  %2983 = vmatprep.subr.bf16.mxu0 0
  %2984 = vmatpush1.bf16.msra.mxu0 0
  %2985 = vmatprep.subr.bf16.mxu0 0
  %2986 = vmatpush1.bf16.msra.mxu0 0
  %2987 = vmatprep.subr.bf16.mxu0 0
  %2988 = vmatpush1.bf16.msra.mxu0 0
  %2989 = vmatprep.mubr.bf16.mxu0 0
  %2990 = vmatmul.mubr.bf16.gmra.mrb[0].mxu0 %v2955
  %v2991 = vpop.f32.mrb[0].mxu0
  %v2992 = vadd.f32 %v2940, %v2991
  %v2993 = vpop.f32.mrb[0].mxu0
  %v2994 = vpop.f32.mrb[0].mxu0
  %v2995 = vadd.f32 %v2940, %v2994
  %v2996 = vpop.f32.mrb[0].mxu0
  %2997 = vdwg.mxu0
  %v3002 = vunpack.c.l.b16 %v2929
  %v3003 = vunpack.c.l.b16 %v2930
  %v3004 = vunpack.c.l.b16 %v2931
  %v3005 = vunpack.c.l.b16 %v2932
  %v3006 = vpack.c.b16 %v3003, %v3002
  %v3007 = vpack.c.b16 %v3005, %v3004
  %3010 = vmatprep.subr.bf16.mxu0 0
  %3011 = vmatpush1.bf16.msra.mxu0 %v3006
  %3012 = vmatprep.subr.bf16.mxu0 0
  %3013 = vmatpush1.bf16.msra.mxu0 %v3007
  %3014 = vmatprep.subr.bf16.mxu0 0
  %3015 = vmatpush1.bf16.msra.mxu0 0
  %3016 = vmatprep.subr.bf16.mxu0 0
  %3017 = vmatpush1.bf16.msra.mxu0 0
  %3018 = vmatprep.subr.bf16.mxu0 0
  %3019 = vmatpush1.bf16.msra.mxu0 0
  %3020 = vmatprep.subr.bf16.mxu0 0
  %3021 = vmatpush1.bf16.msra.mxu0 0
  %3022 = vmatprep.subr.bf16.mxu0 0
  %3023 = vmatpush1.bf16.msra.mxu0 0
  %3024 = vmatprep.subr.bf16.mxu0 0
  %3025 = vmatpush1.bf16.msra.mxu0 0
  %3026 = vmatprep.subr.bf16.mxu0 0
  %3027 = vmatpush1.bf16.msra.mxu0 0
  %3028 = vmatprep.subr.bf16.mxu0 0
  %3029 = vmatpush1.bf16.msra.mxu0 0
  %3030 = vmatprep.subr.bf16.mxu0 0
  %3031 = vmatpush1.bf16.msra.mxu0 0
  %3032 = vmatprep.subr.bf16.mxu0 0
  %3033 = vmatpush1.bf16.msra.mxu0 0
  %3034 = vmatprep.subr.bf16.mxu0 0
  %3035 = vmatpush1.bf16.msra.mxu0 0
  %3036 = vmatprep.subr.bf16.mxu0 0
  %3037 = vmatpush1.bf16.msra.mxu0 0
  %3038 = vmatprep.subr.bf16.mxu0 0
  %3039 = vmatpush1.bf16.msra.mxu0 0
  %3040 = vmatprep.subr.bf16.mxu0 0
  %3041 = vmatpush1.bf16.msra.mxu0 0
  %3042 = vmatprep.mubr.bf16.mxu0 0
  %3043 = vmatmul.mubr.bf16.gmra.mrb[0].mxu0 %v2262
  %v3044 = vpop.f32.mrb[0].mxu0
  %v3045 = vadd.f32 0.0, %v3044
  %v3046 = vpop.f32.mrb[0].mxu0
  %v3047 = vpop.f32.mrb[0].mxu0
  %v3048 = vpop.f32.mrb[0].mxu0
  %3049 = vdwg.mxu0
  %v3050 = vadd.f32 %v2992, %v3045
  %v3051 = vxor.u32 %v3050, 2147483648
  %v3052 = vmul.f32 %v3051, 1.442695
  %v3053 = vpow.pop %v3052
  %v3054 = vadd.f32 %v3053, 1.0
  %v3055 = vrcp.pop %v3054
  %v3056 = vmul.f32 1.0, %v3055
  %v3057 = vtanh.pop %v3050
  %v3058 = vmul.f32 %v3056, 0.0
  %3060 = vrot.lane.b32.xlu0 %v3057, 64
  %v3061 = vpop.permute.xlu0 %3060
  %v3063 = vmul.f32 %v3056, %v3061
  %3065 = vrot.lane.b32.xlu0 %v3063, 32
  %v3066 = vpop.permute.xlu0 %3065
  %v3068 = vadd.f32 %v3058, %v3066
  %v3069 = vtanh.pop %v3068
  %3071 = vrot.lane.b32.xlu0 %v3069, 64
  %v3072 = vpop.permute.xlu0 %3071
  %v3074 = vmul.f32 %v3056, %v3072
  %3076 = vrot.lane.b32.xlu0 %v3074, 32
  %v3077 = vpop.permute.xlu0 %3076
  %3079 = vst.msk [vmem:[#allocation3] sm:$0x3] %vm2333, %v3077
  %v3080 = vpack.c.bf16 %v3074, %v3074
  %3082 = vrot.lane.b32.xlu0 %v3080, 32
  %v3083 = vpop.permute.xlu0 %3082
  %v3085 = vsel %vm23, %v3083, 0
  %3087 = vmatprep.subr.bf16.mxu0 0
  %3088 = vmatpush1.bf16.msra.mxu0 %v3006
  %3089 = vmatprep.subr.bf16.mxu0 0
  %3090 = vmatpush1.bf16.msra.mxu0 %v3007
  %3091 = vmatprep.subr.bf16.mxu0 0
  %3092 = vmatpush1.bf16.msra.mxu0 0
  %3093 = vmatprep.subr.bf16.mxu0 0
  %3094 = vmatpush1.bf16.msra.mxu0 0
  %3095 = vmatprep.subr.bf16.mxu0 0
  %3096 = vmatpush1.bf16.msra.mxu0 0
  %3097 = vmatprep.subr.bf16.mxu0 0
  %3098 = vmatpush1.bf16.msra.mxu0 0
  %3099 = vmatprep.subr.bf16.mxu0 0
  %3100 = vmatpush1.bf16.msra.mxu0 0
  %3101 = vmatprep.subr.bf16.mxu0 0
  %3102 = vmatpush1.bf16.msra.mxu0 0
  %3103 = vmatprep.subr.bf16.mxu0 0
  %3104 = vmatpush1.bf16.msra.mxu0 0
  %3105 = vmatprep.subr.bf16.mxu0 0
  %3106 = vmatpush1.bf16.msra.mxu0 0
  %3107 = vmatprep.subr.bf16.mxu0 0
  %3108 = vmatpush1.bf16.msra.mxu0 0
  %3109 = vmatprep.subr.bf16.mxu0 0
  %3110 = vmatpush1.bf16.msra.mxu0 0
  %3111 = vmatprep.subr.bf16.mxu0 0
  %3112 = vmatpush1.bf16.msra.mxu0 0
  %3113 = vmatprep.subr.bf16.mxu0 0
  %3114 = vmatpush1.bf16.msra.mxu0 0
  %3115 = vmatprep.subr.bf16.mxu0 0
  %3116 = vmatpush1.bf16.msra.mxu0 0
  %3117 = vmatprep.subr.bf16.mxu0 0
  %3118 = vmatpush1.bf16.msra.mxu0 0
  %3119 = vmatprep.mubr.bf16.mxu0 0
  %3120 = vmatmul.mubr.bf16.gmra.mrb[0].mxu0 %v3085
  %v3121 = vpop.f32.mrb[0].mxu0
  %v3122 = vadd.f32 0.0, %v3121
  %v3123 = vpop.f32.mrb[0].mxu0
  %v3124 = vpop.f32.mrb[0].mxu0
  %v3125 = vpop.f32.mrb[0].mxu0
  %3126 = vdwg.mxu0
  %v3128 = vrot.slane %v3122, 6
  %v3130 = vadd.f32 %v2992, %v3128
  %v3131 = vxor.u32 %v3130, 2147483648
  %v3132 = vmul.f32 %v3131, 1.442695
  %v3133 = vpow.pop %v3132
  %v3134 = vadd.f32 %v3133, 1.0
  %v3135 = vrcp.pop %v3134
  %v3136 = vmul.f32 1.0, %v3135
  %v3137 = vtanh.pop %v3130
  %v3139 = vrot.slane %v3068, 6
  %v3141 = vmul.f32 %v3136, %v3139
  %3143 = vrot.lane.b32.xlu0 %v3137, 64
  %v3144 = vpop.permute.xlu0 %3143
  %v3146 = vmul.f32 %v3136, %v3144
  %3148 = vrot.lane.b32.xlu0 %v3146, 32
  %v3149 = vpop.permute.xlu0 %3148
  %v3151 = vadd.f32 %v3141, %v3149
  %v3152 = vtanh.pop %v3151
  %3154 = vrot.lane.b32.xlu0 %v3152, 64
  %v3155 = vpop.permute.xlu0 %3154
  %v3157 = vmul.f32 %v3136, %v3155
  %3159 = vrot.lane.b32.xlu0 %v3157, 32
  %v3160 = vpop.permute.xlu0 %3159
  %3162 = vst.msk [vmem:[#allocation3] sm:$0xc] %vm2417, %v3160
  %v3163 = vpack.c.bf16 %v3157, %v3157
  %v3165 = vrot.slane %v3163, 1
  %3166 = vrot.lane.b32.xlu0 %v3165, 32
  %v3167 = vpop.permute.xlu0 %3166
  %v3169 = vsel %vm23, %v3167, 0
  %3171 = vmatprep.subr.bf16.mxu0 0
  %3172 = vmatpush1.bf16.msra.mxu0 %v3006
  %3173 = vmatprep.subr.bf16.mxu0 0
  %3174 = vmatpush1.bf16.msra.mxu0 %v3007
  %3175 = vmatprep.subr.bf16.mxu0 0
  %3176 = vmatpush1.bf16.msra.mxu0 0
  %3177 = vmatprep.subr.bf16.mxu0 0
  %3178 = vmatpush1.bf16.msra.mxu0 0
  %3179 = vmatprep.subr.bf16.mxu0 0
  %3180 = vmatpush1.bf16.msra.mxu0 0
  %3181 = vmatprep.subr.bf16.mxu0 0
  %3182 = vmatpush1.bf16.msra.mxu0 0
  %3183 = vmatprep.subr.bf16.mxu0 0
  %3184 = vmatpush1.bf16.msra.mxu0 0
  %3185 = vmatprep.subr.bf16.mxu0 0
  %3186 = vmatpush1.bf16.msra.mxu0 0
  %3187 = vmatprep.subr.bf16.mxu0 0
  %3188 = vmatpush1.bf16.msra.mxu0 0
  %3189 = vmatprep.subr.bf16.mxu0 0
  %3190 = vmatpush1.bf16.msra.mxu0 0
  %3191 = vmatprep.subr.bf16.mxu0 0
  %3192 = vmatpush1.bf16.msra.mxu0 0
  %3193 = vmatprep.subr.bf16.mxu0 0
  %3194 = vmatpush1.bf16.msra.mxu0 0
  %3195 = vmatprep.subr.bf16.mxu0 0
  %3196 = vmatpush1.bf16.msra.mxu0 0
  %3197 = vmatprep.subr.bf16.mxu0 0
  %3198 = vmatpush1.bf16.msra.mxu0 0
  %3199 = vmatprep.subr.bf16.mxu0 0
  %3200 = vmatpush1.bf16.msra.mxu0 0
  %3201 = vmatprep.subr.bf16.mxu0 0
  %3202 = vmatpush1.bf16.msra.mxu0 0
  %3203 = vmatprep.mubr.bf16.mxu0 0
  %3204 = vmatmul.mubr.bf16.gmra.mrb[0].mxu0 %v3169
  %v3205 = vpop.f32.mrb[0].mxu0
  %v3206 = vadd.f32 0.0, %v3205
  %v3207 = vpop.f32.mrb[0].mxu0
  %v3208 = vpop.f32.mrb[0].mxu0
  %v3209 = vpop.f32.mrb[0].mxu0
  %3210 = vdwg.mxu0
  %v3212 = vrot.slane %v3206, 4
  %v3214 = vadd.f32 %v2992, %v3212
  %v3215 = vxor.u32 %v3214, 2147483648
  %v3216 = vmul.f32 %v3215, 1.442695
  %v3217 = vpow.pop %v3216
  %v3218 = vadd.f32 %v3217, 1.0
  %v3219 = vrcp.pop %v3218
  %v3220 = vmul.f32 1.0, %v3219
  %v3221 = vtanh.pop %v3214
  %v3223 = vrot.slane %v3151, 6
  %v3225 = vmul.f32 %v3220, %v3223
  %3227 = vrot.lane.b32.xlu0 %v3221, 64
  %v3228 = vpop.permute.xlu0 %3227
  %v3230 = vmul.f32 %v3220, %v3228
  %3232 = vrot.lane.b32.xlu0 %v3230, 32
  %v3233 = vpop.permute.xlu0 %3232
  %v3235 = vadd.f32 %v3225, %v3233
  %v3236 = vtanh.pop %v3235
  %3238 = vrot.lane.b32.xlu0 %v3236, 64
  %v3239 = vpop.permute.xlu0 %3238
  %v3241 = vmul.f32 %v3220, %v3239
  %3243 = vrot.lane.b32.xlu0 %v3241, 32
  %v3244 = vpop.permute.xlu0 %3243
  %3246 = vst.msk [vmem:[#allocation3] sm:$0x30] %vm2502, %v3244
  %v3247 = vpack.c.bf16 %v3241, %v3241
  %v3249 = vrot.slane %v3247, 2
  %3250 = vrot.lane.b32.xlu0 %v3249, 32
  %v3251 = vpop.permute.xlu0 %3250
  %v3253 = vsel %vm23, %v3251, 0
  %3255 = vmatprep.subr.bf16.mxu0 0
  %3256 = vmatpush1.bf16.msra.mxu0 %v3006
  %3257 = vmatprep.subr.bf16.mxu0 0
  %3258 = vmatpush1.bf16.msra.mxu0 %v3007
  %3259 = vmatprep.subr.bf16.mxu0 0
  %3260 = vmatpush1.bf16.msra.mxu0 0
  %3261 = vmatprep.subr.bf16.mxu0 0
  %3262 = vmatpush1.bf16.msra.mxu0 0
  %3263 = vmatprep.subr.bf16.mxu0 0
  %3264 = vmatpush1.bf16.msra.mxu0 0
  %3265 = vmatprep.subr.bf16.mxu0 0
  %3266 = vmatpush1.bf16.msra.mxu0 0
  %3267 = vmatprep.subr.bf16.mxu0 0
  %3268 = vmatpush1.bf16.msra.mxu0 0
  %3269 = vmatprep.subr.bf16.mxu0 0
  %3270 = vmatpush1.bf16.msra.mxu0 0
  %3271 = vmatprep.subr.bf16.mxu0 0
  %3272 = vmatpush1.bf16.msra.mxu0 0
  %3273 = vmatprep.subr.bf16.mxu0 0
  %3274 = vmatpush1.bf16.msra.mxu0 0
  %3275 = vmatprep.subr.bf16.mxu0 0
  %3276 = vmatpush1.bf16.msra.mxu0 0
  %3277 = vmatprep.subr.bf16.mxu0 0
  %3278 = vmatpush1.bf16.msra.mxu0 0
  %3279 = vmatprep.subr.bf16.mxu0 0
  %3280 = vmatpush1.bf16.msra.mxu0 0
  %3281 = vmatprep.subr.bf16.mxu0 0
  %3282 = vmatpush1.bf16.msra.mxu0 0
  %3283 = vmatprep.subr.bf16.mxu0 0
  %3284 = vmatpush1.bf16.msra.mxu0 0
  %3285 = vmatprep.subr.bf16.mxu0 0
  %3286 = vmatpush1.bf16.msra.mxu0 0
  %3287 = vmatprep.mubr.bf16.mxu0 0
  %3288 = vmatmul.mubr.bf16.gmra.mrb[0].mxu0 %v3253
  %v3289 = vpop.f32.mrb[0].mxu0
  %v3290 = vadd.f32 0.0, %v3289
  %v3291 = vpop.f32.mrb[0].mxu0
  %v3292 = vpop.f32.mrb[0].mxu0
  %v3293 = vpop.f32.mrb[0].mxu0
  %3294 = vdwg.mxu0
  %v3296 = vrot.slane %v3290, 2
  %v3298 = vadd.f32 %v2992, %v3296
  %v3299 = vxor.u32 %v3298, 2147483648
  %v3300 = vmul.f32 %v3299, 1.442695
  %v3301 = vpow.pop %v3300
  %v3302 = vadd.f32 %v3301, 1.0
  %v3303 = vrcp.pop %v3302
  %v3304 = vmul.f32 1.0, %v3303
  %v3305 = vtanh.pop %v3298
  %v3307 = vrot.slane %v3235, 6
  %v3309 = vmul.f32 %v3304, %v3307
  %3311 = vrot.lane.b32.xlu0 %v3305, 64
  %v3312 = vpop.permute.xlu0 %3311
  %v3314 = vmul.f32 %v3304, %v3312
  %3316 = vrot.lane.b32.xlu0 %v3314, 32
  %v3317 = vpop.permute.xlu0 %3316
  %v3319 = vadd.f32 %v3309, %v3317
  %v3320 = vtanh.pop %v3319
  %3322 = vrot.lane.b32.xlu0 %v3320, 64
  %v3323 = vpop.permute.xlu0 %3322
  %v3325 = vmul.f32 %v3304, %v3323
  %3327 = vrot.lane.b32.xlu0 %v3325, 32
  %v3328 = vpop.permute.xlu0 %3327
  %3330 = vst.msk [vmem:[#allocation3] sm:$0xc0] %vm2587, %v3328
  %v3331 = vpack.c.bf16 %v3325, %v3325
  %v3333 = vrot.slane %v3331, 3
  %3334 = vrot.lane.b32.xlu0 %v3333, 32
  %v3335 = vpop.permute.xlu0 %3334
  %v3337 = vsel %vm23, %v3335, 0
  %3339 = vmatprep.subr.bf16.mxu0 0
  %3340 = vmatpush1.bf16.msra.mxu0 %v3006
  %3341 = vmatprep.subr.bf16.mxu0 0
  %3342 = vmatpush1.bf16.msra.mxu0 %v3007
  %3343 = vmatprep.subr.bf16.mxu0 0
  %3344 = vmatpush1.bf16.msra.mxu0 0
  %3345 = vmatprep.subr.bf16.mxu0 0
  %3346 = vmatpush1.bf16.msra.mxu0 0
  %3347 = vmatprep.subr.bf16.mxu0 0
  %3348 = vmatpush1.bf16.msra.mxu0 0
  %3349 = vmatprep.subr.bf16.mxu0 0
  %3350 = vmatpush1.bf16.msra.mxu0 0
  %3351 = vmatprep.subr.bf16.mxu0 0
  %3352 = vmatpush1.bf16.msra.mxu0 0
  %3353 = vmatprep.subr.bf16.mxu0 0
  %3354 = vmatpush1.bf16.msra.mxu0 0
  %3355 = vmatprep.subr.bf16.mxu0 0
  %3356 = vmatpush1.bf16.msra.mxu0 0
  %3357 = vmatprep.subr.bf16.mxu0 0
  %3358 = vmatpush1.bf16.msra.mxu0 0
  %3359 = vmatprep.subr.bf16.mxu0 0
  %3360 = vmatpush1.bf16.msra.mxu0 0
  %3361 = vmatprep.subr.bf16.mxu0 0
  %3362 = vmatpush1.bf16.msra.mxu0 0
  %3363 = vmatprep.subr.bf16.mxu0 0
  %3364 = vmatpush1.bf16.msra.mxu0 0
  %3365 = vmatprep.subr.bf16.mxu0 0
  %3366 = vmatpush1.bf16.msra.mxu0 0
  %3367 = vmatprep.subr.bf16.mxu0 0
  %3368 = vmatpush1.bf16.msra.mxu0 0
  %3369 = vmatprep.subr.bf16.mxu0 0
  %3370 = vmatpush1.bf16.msra.mxu0 0
  %3371 = vmatprep.mubr.bf16.mxu0 0
  %3372 = vmatmul.mubr.bf16.gmra.mrb[0].mxu0 %v3337
  %v3373 = vpop.f32.mrb[0].mxu0
  %v3374 = vadd.f32 0.0, %v3373
  %v3375 = vpop.f32.mrb[0].mxu0
  %v3376 = vpop.f32.mrb[0].mxu0
  %v3377 = vpop.f32.mrb[0].mxu0
  %3378 = vdwg.mxu0
  %v3379 = vadd.f32 %v2995, %v3374
  %v3380 = vxor.u32 %v3379, 2147483648
  %v3381 = vmul.f32 %v3380, 1.442695
  %v3382 = vpow.pop %v3381
  %v3383 = vadd.f32 %v3382, 1.0
  %v3384 = vrcp.pop %v3383
  %v3385 = vmul.f32 1.0, %v3384
  %v3386 = vtanh.pop %v3379
  %v3388 = vrot.slane %v3319, 6
  %v3390 = vmul.f32 %v3385, %v3388
  %3392 = vrot.lane.b32.xlu0 %v3386, 64
  %v3393 = vpop.permute.xlu0 %3392
  %v3395 = vmul.f32 %v3385, %v3393
  %3397 = vrot.lane.b32.xlu0 %v3395, 32
  %v3398 = vpop.permute.xlu0 %3397
  %v3400 = vadd.f32 %v3390, %v3398
  %v3401 = vtanh.pop %v3400
  %3403 = vrot.lane.b32.xlu0 %v3401, 64
  %v3404 = vpop.permute.xlu0 %3403
  %v3406 = vmul.f32 %v3385, %v3404
  %3408 = vrot.lane.b32.xlu0 %v3406, 32
  %v3409 = vpop.permute.xlu0 %3408
  %3411 = vst.msk [vmem:[#allocation3 + $0x8] sm:$0x3] %vm2333, %v3409
  %v3412 = vpack.c.bf16 %v3406, %v3406
  %3414 = vrot.lane.b32.xlu0 %v3412, 32
  %v3415 = vpop.permute.xlu0 %3414
  %v3417 = vsel %vm23, %v3415, 0
  %3419 = vmatprep.subr.bf16.mxu0 0
  %3420 = vmatpush1.bf16.msra.mxu0 %v3006
  %3421 = vmatprep.subr.bf16.mxu0 0
  %3422 = vmatpush1.bf16.msra.mxu0 %v3007
  %3423 = vmatprep.subr.bf16.mxu0 0
  %3424 = vmatpush1.bf16.msra.mxu0 0
  %3425 = vmatprep.subr.bf16.mxu0 0
  %3426 = vmatpush1.bf16.msra.mxu0 0
  %3427 = vmatprep.subr.bf16.mxu0 0
  %3428 = vmatpush1.bf16.msra.mxu0 0
  %3429 = vmatprep.subr.bf16.mxu0 0
  %3430 = vmatpush1.bf16.msra.mxu0 0
  %3431 = vmatprep.subr.bf16.mxu0 0
  %3432 = vmatpush1.bf16.msra.mxu0 0
  %3433 = vmatprep.subr.bf16.mxu0 0
  %3434 = vmatpush1.bf16.msra.mxu0 0
  %3435 = vmatprep.subr.bf16.mxu0 0
  %3436 = vmatpush1.bf16.msra.mxu0 0
  %3437 = vmatprep.subr.bf16.mxu0 0
  %3438 = vmatpush1.bf16.msra.mxu0 0
  %3439 = vmatprep.subr.bf16.mxu0 0
  %3440 = vmatpush1.bf16.msra.mxu0 0
  %3441 = vmatprep.subr.bf16.mxu0 0
  %3442 = vmatpush1.bf16.msra.mxu0 0
  %3443 = vmatprep.subr.bf16.mxu0 0
  %3444 = vmatpush1.bf16.msra.mxu0 0
  %3445 = vmatprep.subr.bf16.mxu0 0
  %3446 = vmatpush1.bf16.msra.mxu0 0
  %3447 = vmatprep.subr.bf16.mxu0 0
  %3448 = vmatpush1.bf16.msra.mxu0 0
  %3449 = vmatprep.subr.bf16.mxu0 0
  %3450 = vmatpush1.bf16.msra.mxu0 0
  %3451 = vmatprep.mubr.bf16.mxu0 0
  %3452 = vmatmul.mubr.bf16.gmra.mrb[0].mxu0 %v3417
  %v3453 = vpop.f32.mrb[0].mxu0
  %v3454 = vadd.f32 0.0, %v3453
  %v3455 = vpop.f32.mrb[0].mxu0
  %v3456 = vpop.f32.mrb[0].mxu0
  %v3457 = vpop.f32.mrb[0].mxu0
  %3458 = vdwg.mxu0
  %v3460 = vrot.slane %v3454, 6
  %v3462 = vadd.f32 %v2995, %v3460
  %v3463 = vxor.u32 %v3462, 2147483648
  %v3464 = vmul.f32 %v3463, 1.442695
  %v3465 = vpow.pop %v3464
  %v3466 = vadd.f32 %v3465, 1.0
  %v3467 = vrcp.pop %v3466
  %v3468 = vmul.f32 1.0, %v3467
  %v3469 = vtanh.pop %v3462
  %v3471 = vrot.slane %v3400, 6
  %v3473 = vmul.f32 %v3468, %v3471
  %3475 = vrot.lane.b32.xlu0 %v3469, 64
  %v3476 = vpop.permute.xlu0 %3475
  %v3478 = vmul.f32 %v3468, %v3476
  %3480 = vrot.lane.b32.xlu0 %v3478, 32
  %v3481 = vpop.permute.xlu0 %3480
  %v3483 = vadd.f32 %v3473, %v3481
  %v3484 = vtanh.pop %v3483
  %3486 = vrot.lane.b32.xlu0 %v3484, 64
  %v3487 = vpop.permute.xlu0 %3486
  %v3489 = vmul.f32 %v3468, %v3487
  %3491 = vrot.lane.b32.xlu0 %v3489, 32
  %v3492 = vpop.permute.xlu0 %3491
  %3494 = vst.msk [vmem:[#allocation3 + $0x8] sm:$0xc] %vm2417, %v3492
  %v3495 = vpack.c.bf16 %v3489, %v3489
  %v3497 = vrot.slane %v3495, 1
  %3498 = vrot.lane.b32.xlu0 %v3497, 32
  %v3499 = vpop.permute.xlu0 %3498
  %v3501 = vsel %vm23, %v3499, 0
  %3503 = vmatprep.subr.bf16.mxu0 0
  %3504 = vmatpush1.bf16.msra.mxu0 %v3006
  %3505 = vmatprep.subr.bf16.mxu0 0
  %3506 = vmatpush1.bf16.msra.mxu0 %v3007
  %3507 = vmatprep.subr.bf16.mxu0 0
  %3508 = vmatpush1.bf16.msra.mxu0 0
  %3509 = vmatprep.subr.bf16.mxu0 0
  %3510 = vmatpush1.bf16.msra.mxu0 0
  %3511 = vmatprep.subr.bf16.mxu0 0
  %3512 = vmatpush1.bf16.msra.mxu0 0
  %3513 = vmatprep.subr.bf16.mxu0 0
  %3514 = vmatpush1.bf16.msra.mxu0 0
  %3515 = vmatprep.subr.bf16.mxu0 0
  %3516 = vmatpush1.bf16.msra.mxu0 0
  %3517 = vmatprep.subr.bf16.mxu0 0
  %3518 = vmatpush1.bf16.msra.mxu0 0
  %3519 = vmatprep.subr.bf16.mxu0 0
  %3520 = vmatpush1.bf16.msra.mxu0 0
  %3521 = vmatprep.subr.bf16.mxu0 0
  %3522 = vmatpush1.bf16.msra.mxu0 0
  %3523 = vmatprep.subr.bf16.mxu0 0
  %3524 = vmatpush1.bf16.msra.mxu0 0
  %3525 = vmatprep.subr.bf16.mxu0 0
  %3526 = vmatpush1.bf16.msra.mxu0 0
  %3527 = vmatprep.subr.bf16.mxu0 0
  %3528 = vmatpush1.bf16.msra.mxu0 0
  %3529 = vmatprep.subr.bf16.mxu0 0
  %3530 = vmatpush1.bf16.msra.mxu0 0
  %3531 = vmatprep.subr.bf16.mxu0 0
  %3532 = vmatpush1.bf16.msra.mxu0 0
  %3533 = vmatprep.subr.bf16.mxu0 0
  %3534 = vmatpush1.bf16.msra.mxu0 0
  %3535 = vmatprep.mubr.bf16.mxu0 0
  %3536 = vmatmul.mubr.bf16.gmra.mrb[0].mxu0 %v3501
  %v3537 = vpop.f32.mrb[0].mxu0
  %v3538 = vadd.f32 0.0, %v3537
  %v3539 = vpop.f32.mrb[0].mxu0
  %v3540 = vpop.f32.mrb[0].mxu0
  %v3541 = vpop.f32.mrb[0].mxu0
  %3542 = vdwg.mxu0
  %v3544 = vrot.slane %v3538, 4
  %v3546 = vadd.f32 %v2995, %v3544
  %v3547 = vxor.u32 %v3546, 2147483648
  %v3548 = vmul.f32 %v3547, 1.442695
  %v3549 = vpow.pop %v3548
  %v3550 = vadd.f32 %v3549, 1.0
  %v3551 = vrcp.pop %v3550
  %v3552 = vmul.f32 1.0, %v3551
  %v3553 = vtanh.pop %v3546
  %v3555 = vrot.slane %v3483, 6
  %v3557 = vmul.f32 %v3552, %v3555
  %3559 = vrot.lane.b32.xlu0 %v3553, 64
  %v3560 = vpop.permute.xlu0 %3559
  %v3562 = vmul.f32 %v3552, %v3560
  %3564 = vrot.lane.b32.xlu0 %v3562, 32
  %v3565 = vpop.permute.xlu0 %3564
  %v3567 = vadd.f32 %v3557, %v3565
  %v3568 = vtanh.pop %v3567
  %3570 = vrot.lane.b32.xlu0 %v3568, 64
  %v3571 = vpop.permute.xlu0 %3570
  %v3573 = vmul.f32 %v3552, %v3571
  %3575 = vrot.lane.b32.xlu0 %v3573, 32
  %v3576 = vpop.permute.xlu0 %3575
  %3578 = vst.msk [vmem:[#allocation3 + $0x8] sm:$0x30] %vm2502, %v3576
  %v3579 = vpack.c.bf16 %v3573, %v3573
  %v3581 = vrot.slane %v3579, 2
  %3582 = vrot.lane.b32.xlu0 %v3581, 32
  %v3583 = vpop.permute.xlu0 %3582
  %v3585 = vsel %vm23, %v3583, 0
  %3587 = vmatprep.subr.bf16.mxu0 0
  %3588 = vmatpush1.bf16.msra.mxu0 %v3006
  %3589 = vmatprep.subr.bf16.mxu0 0
  %3590 = vmatpush1.bf16.msra.mxu0 %v3007
  %3591 = vmatprep.subr.bf16.mxu0 0
  %3592 = vmatpush1.bf16.msra.mxu0 0
  %3593 = vmatprep.subr.bf16.mxu0 0
  %3594 = vmatpush1.bf16.msra.mxu0 0
  %3595 = vmatprep.subr.bf16.mxu0 0
  %3596 = vmatpush1.bf16.msra.mxu0 0
  %3597 = vmatprep.subr.bf16.mxu0 0
  %3598 = vmatpush1.bf16.msra.mxu0 0
  %3599 = vmatprep.subr.bf16.mxu0 0
  %3600 = vmatpush1.bf16.msra.mxu0 0
  %3601 = vmatprep.subr.bf16.mxu0 0
  %3602 = vmatpush1.bf16.msra.mxu0 0
  %3603 = vmatprep.subr.bf16.mxu0 0
  %3604 = vmatpush1.bf16.msra.mxu0 0
  %3605 = vmatprep.subr.bf16.mxu0 0
  %3606 = vmatpush1.bf16.msra.mxu0 0
  %3607 = vmatprep.subr.bf16.mxu0 0
  %3608 = vmatpush1.bf16.msra.mxu0 0
  %3609 = vmatprep.subr.bf16.mxu0 0
  %3610 = vmatpush1.bf16.msra.mxu0 0
  %3611 = vmatprep.subr.bf16.mxu0 0
  %3612 = vmatpush1.bf16.msra.mxu0 0
  %3613 = vmatprep.subr.bf16.mxu0 0
  %3614 = vmatpush1.bf16.msra.mxu0 0
  %3615 = vmatprep.subr.bf16.mxu0 0
  %3616 = vmatpush1.bf16.msra.mxu0 0
  %3617 = vmatprep.subr.bf16.mxu0 0
  %3618 = vmatpush1.bf16.msra.mxu0 0
  %3619 = vmatprep.mubr.bf16.mxu0 0
  %3620 = vmatmul.mubr.bf16.gmra.mrb[0].mxu0 %v3585
  %v3621 = vpop.f32.mrb[0].mxu0
  %v3622 = vadd.f32 0.0, %v3621
  %v3623 = vpop.f32.mrb[0].mxu0
  %v3624 = vpop.f32.mrb[0].mxu0
  %v3625 = vpop.f32.mrb[0].mxu0
  %3626 = vdwg.mxu0
  %v3628 = vrot.slane %v3622, 2
  %v3630 = vadd.f32 %v2995, %v3628
  %v3631 = vxor.u32 %v3630, 2147483648
  %v3632 = vmul.f32 %v3631, 1.442695
  %v3633 = vpow.pop %v3632
  %v3634 = vadd.f32 %v3633, 1.0
  %v3635 = vrcp.pop %v3634
  %v3636 = vmul.f32 1.0, %v3635
  %v3637 = vtanh.pop %v3630
  %v3639 = vrot.slane %v3567, 6
  %v3641 = vmul.f32 %v3636, %v3639
  %3643 = vrot.lane.b32.xlu0 %v3637, 64
  %v3644 = vpop.permute.xlu0 %3643
  %v3646 = vmul.f32 %v3636, %v3644
  %3648 = vrot.lane.b32.xlu0 %v3646, 32
  %v3649 = vpop.permute.xlu0 %3648
  %v3651 = vadd.f32 %v3641, %v3649
  %v3652 = vtanh.pop %v3651
  %3654 = vrot.lane.b32.xlu0 %v3652, 64
  %v3655 = vpop.permute.xlu0 %3654
  %v3657 = vmul.f32 %v3636, %v3655
  %3659 = vrot.lane.b32.xlu0 %v3657, 32
  %v3660 = vpop.permute.xlu0 %3659
  %3662 = vst.msk [vmem:[#allocation3 + $0x8] sm:$0xc0] %vm2587, %v3660
  %v3663 = vld [vmem:[#allocation3] sm:$0xff]
  %v3664 = vld [vmem:[#allocation3 + $0x8] sm:$0xff]
  %s3665 = scalar_lea.vmem %s2, 384
  %v3666 = vld [vmem:[%s3665] sm:$0xf]
  %v3667 = vld [vmem:[%s3665 + $0x4] sm:$0xf]
  %v3668 = vld [vmem:[%s3665 + $0x8] sm:$0xf]
  %v3669 = vld [vmem:[%s3665 + $0xc] sm:$0xf]
  %v3670 = vpack.c.bf16 %v3664, %v3663
  %s3671 = scalar_lea.vmem %s3, 20
  %v3672 = vld [vmem:[%s3671] sm:$0x1]
  %v3674 = vlaneseq
  %v3675 = vshrl.u32 %v3674, 7
  %v3676 = vsub.s32 0, %v3675
  %v3677 = vrot.slane %v3672, %v3676
  %v3683 = vunpack.c.l.b16 %v3666
  %v3684 = vunpack.c.l.b16 %v3667
  %v3685 = vunpack.c.l.b16 %v3668
  %v3686 = vunpack.c.l.b16 %v3669
  %v3687 = vpack.c.b16 %v3684, %v3683
  %v3688 = vpack.c.b16 %v3686, %v3685
  %v3692 = vsel %vm23, %v3670, 0
  %3694 = vmatprep.subr.bf16.mxu0 0
  %3695 = vmatpush1.bf16.msra.mxu0 %v3687
  %3696 = vmatprep.subr.bf16.mxu0 0
  %3697 = vmatpush1.bf16.msra.mxu0 %v3688
  %3698 = vmatprep.subr.bf16.mxu0 0
  %3699 = vmatpush1.bf16.msra.mxu0 0
  %3700 = vmatprep.subr.bf16.mxu0 0
  %3701 = vmatpush1.bf16.msra.mxu0 0
  %3702 = vmatprep.subr.bf16.mxu0 0
  %3703 = vmatpush1.bf16.msra.mxu0 0
  %3704 = vmatprep.subr.bf16.mxu0 0
  %3705 = vmatpush1.bf16.msra.mxu0 0
  %3706 = vmatprep.subr.bf16.mxu0 0
  %3707 = vmatpush1.bf16.msra.mxu0 0
  %3708 = vmatprep.subr.bf16.mxu0 0
  %3709 = vmatpush1.bf16.msra.mxu0 0
  %3710 = vmatprep.subr.bf16.mxu0 0
  %3711 = vmatpush1.bf16.msra.mxu0 0
  %3712 = vmatprep.subr.bf16.mxu0 0
  %3713 = vmatpush1.bf16.msra.mxu0 0
  %3714 = vmatprep.subr.bf16.mxu0 0
  %3715 = vmatpush1.bf16.msra.mxu0 0
  %3716 = vmatprep.subr.bf16.mxu0 0
  %3717 = vmatpush1.bf16.msra.mxu0 0
  %3718 = vmatprep.subr.bf16.mxu0 0
  %3719 = vmatpush1.bf16.msra.mxu0 0
  %3720 = vmatprep.subr.bf16.mxu0 0
  %3721 = vmatpush1.bf16.msra.mxu0 0
  %3722 = vmatprep.subr.bf16.mxu0 0
  %3723 = vmatpush1.bf16.msra.mxu0 0
  %3724 = vmatprep.subr.bf16.mxu0 0
  %3725 = vmatpush1.bf16.msra.mxu0 0
  %3726 = vmatprep.mubr.bf16.mxu0 0
  %3727 = vmatmul.mubr.bf16.gmra.mrb[0].mxu0 %v3692
  %v3728 = vpop.f32.mrb[0].mxu0
  %v3729 = vadd.f32 %v3677, %v3728
  %v3730 = vpop.f32.mrb[0].mxu0
  %v3731 = vpop.f32.mrb[0].mxu0
  %v3732 = vadd.f32 %v3677, %v3731
  %v3733 = vpop.f32.mrb[0].mxu0
  %3734 = vdwg.mxu0
  %3735 = vst [vmem:[%s4] sm:$0xff] %v3729
  %3736 = vst [vmem:[%s4 + $0x8] sm:$0xff] %v3732
  // Predicated region
  $region18: #{bert_sum_lstm_forward.1} parent=0 // pred_check
    _
  $region19: #{bert_sum_lstm_forward.1} parent=0 // pred_check_branch
    %3738 = sbr.rel (0) target = $region21
  $region20: #{bert_sum_lstm_forward.1} parent=0 // pred_region
    _
  $region21: #{bert_sum_lstm_forward.1} parent=0 // pred_fallthru
    _
  // Predicated region
  $region22: #{bert_sum_lstm_forward.1} parent=0 // pred_check
    _
  $region23: #{bert_sum_lstm_forward.1} parent=0 // pred_check_branch
    %3740 = sbr.rel (0) target = $region25
  $region24: #{bert_sum_lstm_forward.1} parent=0 // pred_region
    _
  $region25: #{bert_sum_lstm_forward.1} parent=0 // pred_fallthru
    _

</llo_original>
